<compile_context>
chip_gen: v5e
topology: v5e:2x2
jax: 0.10.0
libtpu: 0.0.40
codegen_flags: <defaults>
</compile_context>

<pallas_src>
import math

import jax
import jax.numpy as jnp
from jax.experimental import pallas as pl
from jax.experimental.pallas import tpu as pltpu


def _round_up(a, b):
    return ((a + b - 1) // b) * b


def _sublane_rows(dtype):
    # Native second-minor tile: 8 rows for 32-bit, 16 for 16-bit, 32 for 8-bit.
    return 8 * (4 // jnp.dtype(dtype).itemsize)


def _physical_vmem_bytes():
    try:
        return int(pltpu.get_tpu_info().vmem_capacity_bytes)
    except Exception:
        return 64 * 1024 * 1024  # conservative default (v7x per-TC VMEM)


def _linear_resblock_kernel(x_ref, w1_ref, b1_ref, w2_ref, wr_ref, bo_ref, o_ref):
    # x_ref: (tm, in_dim) row tile of the flattened (M, in_dim) input (HBM dtype).
    cdt = w1_ref.dtype                 # matmul operand dtype (bf16 by default)
    x = x_ref[...].astype(cdt)         # per-tile cast; no wrapper-side HBM pass
    a = jnp.maximum(x, 0.0)            # relu(feature)

    # hidden = relu(relu(x) @ W1 + b1), f32 MXU accumulation.
    h = jnp.dot(a, w1_ref[...], preferred_element_type=jnp.float32) + b1_ref[...]
    h = jnp.maximum(h, 0.0)

    # main branch: h @ W2 ; residual branch: x @ Wr (raw feature, no ReLU).
    main = jnp.dot(h.astype(cdt), w2_ref[...], preferred_element_type=jnp.float32)
    short = jnp.dot(x, wr_ref[...], preferred_element_type=jnp.float32)

    # bo = b2 + br (folded in the wrapper); single lane-dense store.
    o_ref[...] = (main + short + bo_ref[...]).astype(o_ref.dtype)


def linear_resblock_forward(x, w1, b1, w2, b2, wr, br, *, tm=512,
                            compute_dtype=jnp.bfloat16, out_dtype=None):
    """Pallas forward of Linear_ResBlock.

    x: (..., in_dim).  Weights are stored pre-transposed relative to PyTorch
    nn.Linear: w1 is (in_dim, in_dim), w2/wr are (in_dim, out_dim) (pass
    torch_weight.T when porting parameters).  For best performance pre-cast
    w1/w2/wr to `compute_dtype` once at load time (the wrapper only casts if
    the dtypes differ).  compute_dtype=None runs exact-f32 matmuls.
    """
    in_dim = x.shape[-1]
    out_dim = w2.shape[1]
    lead = x.shape[:-1]
    M = math.prod(lead) if lead else 1
    out_dtype = jnp.dtype(x.dtype if out_dtype is None else out_dtype)

    # Flatten leading dims; channels stay on the lane axis -> no transposes.
    # NOTE: x is NOT cast here — the kernel casts each tile (a wrapper astype
    # would be a separate, un-fused HBM read+write pass over the activations).
    x2d = x.reshape(M, in_dim)

    if compute_dtype is not None:
        compute_dtype = jnp.dtype(compute_dtype)
        w1 = w1 if w1.dtype == compute_dtype else w1.astype(compute_dtype)
        w2 = w2 if w2.dtype == compute_dtype else w2.astype(compute_dtype)
        wr = wr if wr.dtype == compute_dtype else wr.astype(compute_dtype)

    b1_2d = b1.astype(jnp.float32).reshape(1, in_dim)
    bo_2d = (b2.astype(jnp.float32) + br.astype(jnp.float32)).reshape(1, out_dim)

    itx = jnp.dtype(x2d.dtype).itemsize
    itw = jnp.dtype(w1.dtype).itemsize
    ito = out_dtype.itemsize

    # Row alignment follows sublane packing of the x / out block dtypes.
    row_align = max(_sublane_rows(x2d.dtype), _sublane_rows(out_dtype))

    # Row tile: large (amortizes ~0.35us/grid-step), but (a) capped so the grid
    # has >= 2 steps when M allows it (v7x megacore) and (b) shrunk until the
    # VMEM estimate fits the per-generation budget.
    tm_eff = max(row_align, min(tm, _round_up(pl.cdiv(M, 2), row_align)))

    def vmem_needed(tm_):
        x_tiles = 2 * tm_ * in_dim * itx                    # double-buffered x rows
        o_tiles = 2 * tm_ * out_dim * ito                   # double-buffered out rows
        consts = ((in_dim * in_dim + 2 * in_dim * out_dim) * itw
                  + (in_dim + out_dim) * 4)                 # W1/W2/Wr + biases (1 buf)
        temps = (tm_ * in_dim * (3 * itw + 4)               # x cast, relu, h f32, h cast
                 + tm_ * out_dim * 3 * 4)                   # main, short, sum (f32)
        return x_tiles + o_tiles + consts + temps

    phys = _physical_vmem_bytes()
    # ~56 MiB ceiling on v7x (64 MiB physical), ~100 MiB on v5e/v6e (128 MiB).
    vmem_cap = (56 << 20) if phys <= (64 << 20) else min(100 << 20, phys - (28 << 20))
    while tm_eff > row_align and vmem_needed(tm_eff) > vmem_cap:
        tm_eff = max(row_align, _round_up(tm_eff // 2, row_align))
    vmem_limit = int(min(max(vmem_needed(tm_eff) + (4 << 20), 32 << 20), vmem_cap))

    grid = (pl.cdiv(M, tm_eff),)

    def run(single_buffer_consts):
        def const_spec(shape):
            if single_buffer_consts:
                # Constant index_map -> DMA'd once; 2nd pipeline copy is dead VMEM.
                return pl.BlockSpec(shape, lambda i: (0, 0),
                                    pipeline_mode=pl.Buffered(1))
            return pl.BlockSpec(shape, lambda i: (0, 0))

        return pl.pallas_call(
            _linear_resblock_kernel,
            out_shape=jax.ShapeDtypeStruct((M, out_dim), out_dtype),
            grid_spec=pltpu.PrefetchScalarGridSpec(
                num_scalar_prefetch=0,
                grid=grid,
                in_specs=[
                    # Streaming x tile keeps the default Buffered(2) pipeline depth.
                    pl.BlockSpec((tm_eff, in_dim), lambda i: (i, 0)),
                    const_spec((in_dim, in_dim)),     # W1 (resident)
                    const_spec((1, in_dim)),          # b1
                    const_spec((in_dim, out_dim)),    # W2
                    const_spec((in_dim, out_dim)),    # Wr
                    const_spec((1, out_dim)),         # b2 + br (folded)
                ],
                out_specs=pl.BlockSpec((tm_eff, out_dim), lambda i: (i, 0)),
            ),
            compiler_params=pltpu.CompilerParams(
                dimension_semantics=("parallel",),   # row tiles shard across TCs (v7x)
                vmem_limit_bytes=vmem_limit,
            ),
        )(x2d, w1, b1_2d, w2, wr, bo_2d)

    if hasattr(pl, "Buffered"):
        try:
            out2d = run(True)
        except Exception:
            # Fallback if this jax build rejects buffer_count=1 on a pipelined spec.
            out2d = run(False)
    else:
        out2d = run(False)

    return out2d.reshape(*lead, out_dim)


def _reference_forward(x, w1, b1, w2, b2, wr, br):
    # Pure-JAX reference of the PyTorch forward (weights stored (in, out)).
    a = jnp.maximum(x, 0.0)
    h = jnp.maximum(a @ w1 + b1, 0.0)
    return h @ w2 + b2 + x @ wr + br


if __name__ == "__main__":
    # Small Linear_ResBlock (module default is 1024 -> 256; kept small and
    # lane-aligned here): input_size=256, output_size=128,
    # feature = (batch=2, seq=192, 256) -> 384 rows; default tm gives a 2-step grid.
    in_dim, out_dim = 256, 128
    B, S = 2, 192

    key = jax.random.PRNGKey(0)
    kx, k1, kb1, k2, kb2, kr, kbr = jax.random.split(key, 7)

    x = jax.random.normal(kx, (B, S, in_dim), dtype=jnp.float32)

    scale = 1.0 / math.sqrt(in_dim)
    w1 = jax.random.normal(k1, (in_dim, in_dim), dtype=jnp.float32) * scale
    b1 = jax.random.normal(kb1, (in_dim,), dtype=jnp.float32) * 0.1
    w2 = jax.random.normal(k2, (in_dim, out_dim), dtype=jnp.float32) * scale
    b2 = jax.random.normal(kb2, (out_dim,), dtype=jnp.float32) * 0.1
    wr = jax.random.normal(kr, (in_dim, out_dim), dtype=jnp.float32) * scale
    br = jax.random.normal(kbr, (out_dim,), dtype=jnp.float32) * 0.1

    ref = _reference_forward(x, w1, b1, w2, b2, wr, br)

    # Default path: bf16 MXU operands (weights pre-cast once, as a real model
    # would cache them), f32 accumulation, f32 output.
    w1_bf, w2_bf, wr_bf = (w.astype(jnp.bfloat16) for w in (w1, w2, wr))
    out = linear_resblock_forward(x, w1_bf, b1, w2_bf, b2, wr_bf, br)
    out = jax.block_until_ready(out)
    assert out.shape == (B, S, out_dim), out.shape
    err_bf16 = float(jnp.max(jnp.abs(out - ref)))
    assert err_bf16 < 8e-2, err_bf16   # bf16-operand quantization tolerance

    # Exact-f32 path (compute_dtype=None) stays tight to the f32 reference.
    out32 = linear_resblock_forward(x, w1, b1, w2, b2, wr, br, compute_dtype=None)
    out32 = jax.block_until_ready(out32)
    err_f32 = float(jnp.max(jnp.abs(out32 - ref)))
    assert err_f32 < 2e-3, err_f32

    print("KERNEL_OK")
</pallas_src>

<mosaic_0001>
module attributes {stable_mosaic.version = 11 : i64} {
  func.func @_linear_resblock_kernel(%arg0: i32, %arg1: memref<192x256xf32, #tpu.memory_space<vmem>>, %arg2: memref<256x256xbf16, #tpu.memory_space<vmem>>, %arg3: memref<1x256xf32, #tpu.memory_space<vmem>>, %arg4: memref<256x128xbf16, #tpu.memory_space<vmem>>, %arg5: memref<256x128xbf16, #tpu.memory_space<vmem>>, %arg6: memref<1x128xf32, #tpu.memory_space<vmem>>, %arg7: memref<192x128xf32, #tpu.memory_space<vmem>>) attributes {dimension_semantics = [#tpu.dimension_semantics<parallel>], iteration_bounds = array<i64: 2>, scalar_prefetch = 0 : i64, scratch_operands = 0 : i64, tpu.core_type = #tpu.core_type<tc>, window_params = [{transform_indices = @transform_0, window_bounds = array<i64: 192, 256>}, {pipeline_mode = #tpu.pipeline_mode<synchronous>, transform_indices = @transform_1, window_bounds = array<i64: 256, 256>}, {pipeline_mode = #tpu.pipeline_mode<synchronous>, transform_indices = @transform_2, window_bounds = array<i64: 1, 256>}, {pipeline_mode = #tpu.pipeline_mode<synchronous>, transform_indices = @transform_3, window_bounds = array<i64: 256, 128>}, {pipeline_mode = #tpu.pipeline_mode<synchronous>, transform_indices = @transform_4, window_bounds = array<i64: 256, 128>}, {pipeline_mode = #tpu.pipeline_mode<synchronous>, transform_indices = @transform_5, window_bounds = array<i64: 1, 128>}, {transform_indices = @transform_6, window_bounds = array<i64: 192, 128>}]} {
    %c0 = arith.constant 0 : index
    %c0_0 = arith.constant 0 : index
    %0 = vector.load %arg1[%c0, %c0_0] : memref<192x256xf32, #tpu.memory_space<vmem>>, vector<192x256xf32>
    %1 = arith.truncf %0 : vector<192x256xf32> to vector<192x256xbf16>
    %cst = arith.constant 0.000000e+00 : bf16
    %2 = vector.broadcast %cst : bf16 to vector<192x256xbf16>
    %3 = arith.maximumf %1, %2 : vector<192x256xbf16>
    %c0_1 = arith.constant 0 : index
    %c0_2 = arith.constant 0 : index
    %4 = vector.load %arg2[%c0_1, %c0_2] : memref<256x256xbf16, #tpu.memory_space<vmem>>, vector<256x256xbf16>
    %cst_3 = arith.constant dense<0.000000e+00> : vector<192x256xf32>
    %5 = tpu.matmul %3, %4, %cst_3 {dimension_numbers = #tpu.dot_dimension_numbers<[1], [0], [0], [1], [0, 0, 1, 1], [], []>} : vector<192x256xbf16>, vector<256x256xbf16>, vector<192x256xf32> -> vector<192x256xf32>
    %c0_4 = arith.constant 0 : index
    %c0_5 = arith.constant 0 : index
    %6 = vector.load %arg3[%c0_4, %c0_5] : memref<1x256xf32, #tpu.memory_space<vmem>>, vector<1x256xf32>
    %7 = vector.broadcast %6 : vector<1x256xf32> to vector<192x256xf32>
    %8 = arith.addf %5, %7 : vector<192x256xf32>
    %cst_6 = arith.constant 0.000000e+00 : f32
    %9 = vector.broadcast %cst_6 : f32 to vector<192x256xf32>
    %10 = arith.maximumf %8, %9 : vector<192x256xf32>
    %11 = arith.truncf %10 : vector<192x256xf32> to vector<192x256xbf16>
    %c0_7 = arith.constant 0 : index
    %c0_8 = arith.constant 0 : index
    %12 = vector.load %arg4[%c0_7, %c0_8] : memref<256x128xbf16, #tpu.memory_space<vmem>>, vector<256x128xbf16>
    %cst_9 = arith.constant dense<0.000000e+00> : vector<192x128xf32>
    %13 = tpu.matmul %11, %12, %cst_9 {dimension_numbers = #tpu.dot_dimension_numbers<[1], [0], [0], [1], [0, 0, 1, 1], [], []>} : vector<192x256xbf16>, vector<256x128xbf16>, vector<192x128xf32> -> vector<192x128xf32>
    %c0_10 = arith.constant 0 : index
    %c0_11 = arith.constant 0 : index
    %14 = vector.load %arg5[%c0_10, %c0_11] : memref<256x128xbf16, #tpu.memory_space<vmem>>, vector<256x128xbf16>
    %cst_12 = arith.constant dense<0.000000e+00> : vector<192x128xf32>
    %15 = tpu.matmul %1, %14, %cst_12 {dimension_numbers = #tpu.dot_dimension_numbers<[1], [0], [0], [1], [0, 0, 1, 1], [], []>} : vector<192x256xbf16>, vector<256x128xbf16>, vector<192x128xf32> -> vector<192x128xf32>
    %16 = arith.addf %13, %15 : vector<192x128xf32>
    %c0_13 = arith.constant 0 : index
    %c0_14 = arith.constant 0 : index
    %17 = vector.load %arg6[%c0_13, %c0_14] : memref<1x128xf32, #tpu.memory_space<vmem>>, vector<1x128xf32>
    %18 = vector.broadcast %17 : vector<1x128xf32> to vector<192x128xf32>
    %19 = arith.addf %16, %18 : vector<192x128xf32>
    %c0_15 = arith.constant 0 : index
    %c0_16 = arith.constant 0 : index
    %20 = vector.load %arg7[%c0_15, %c0_16] : memref<192x128xf32, #tpu.memory_space<vmem>>, vector<192x128xf32>
    tpu.vector_store %arg7[%c0_15, %c0_16], %19 {strides = array<i32>} : memref<192x128xf32, #tpu.memory_space<vmem>>, vector<192x128xf32>,
    return
  }
  func.func @transform_0(%arg0: i32) -> (i32, i32) {
    %c0_i32 = arith.constant 0 : i32
    %c0_i32_0 = arith.constant 0 : i32
    return %arg0, %c0_i32 : i32, i32
  }
  func.func @transform_1(%arg0: i32) -> (i32, i32) {
    %c0_i32 = arith.constant 0 : i32
    %c0_i32_0 = arith.constant 0 : i32
    %c0_i32_1 = arith.constant 0 : i32
    return %c0_i32, %c0_i32_0 : i32, i32
  }
  func.func @transform_2(%arg0: i32) -> (i32, i32) {
    %c0_i32 = arith.constant 0 : i32
    %c0_i32_0 = arith.constant 0 : i32
    %c0_i32_1 = arith.constant 0 : i32
    return %c0_i32, %c0_i32_0 : i32, i32
  }
  func.func @transform_3(%arg0: i32) -> (i32, i32) {
    %c0_i32 = arith.constant 0 : i32
    %c0_i32_0 = arith.constant 0 : i32
    %c0_i32_1 = arith.constant 0 : i32
    return %c0_i32, %c0_i32_0 : i32, i32
  }
  func.func @transform_4(%arg0: i32) -> (i32, i32) {
    %c0_i32 = arith.constant 0 : i32
    %c0_i32_0 = arith.constant 0 : i32
    %c0_i32_1 = arith.constant 0 : i32
    return %c0_i32, %c0_i32_0 : i32, i32
  }
  func.func @transform_5(%arg0: i32) -> (i32, i32) {
    %c0_i32 = arith.constant 0 : i32
    %c0_i32_0 = arith.constant 0 : i32
    %c0_i32_1 = arith.constant 0 : i32
    return %c0_i32, %c0_i32_0 : i32, i32
  }
  func.func @transform_6(%arg0: i32) -> (i32, i32) {
    %c0_i32 = arith.constant 0 : i32
    %c0_i32_0 = arith.constant 0 : i32
    return %arg0, %c0_i32 : i32, i32
  }
}

module attributes {stable_mosaic.version = 11 : i64} {
  func.func @_linear_resblock_kernel(%arg0: i32, %arg1: memref<192x256xf32, #tpu.memory_space<vmem>>, %arg2: memref<256x256xbf16, #tpu.memory_space<vmem>>, %arg3: memref<1x256xf32, #tpu.memory_space<vmem>>, %arg4: memref<256x128xbf16, #tpu.memory_space<vmem>>, %arg5: memref<256x128xbf16, #tpu.memory_space<vmem>>, %arg6: memref<1x128xf32, #tpu.memory_space<vmem>>, %arg7: memref<192x128xf32, #tpu.memory_space<vmem>>) attributes {dimension_semantics = [#tpu.dimension_semantics<parallel>], iteration_bounds = array<i64: 2>, scalar_prefetch = 0 : i64, scratch_operands = 0 : i64, tpu.core_type = #tpu.core_type<tc>, window_params = [{transform_indices = @transform_0, window_bounds = array<i64: 192, 256>}, {pipeline_mode = #tpu.pipeline_mode<synchronous>, transform_indices = @transform_1, window_bounds = array<i64: 256, 256>}, {pipeline_mode = #tpu.pipeline_mode<synchronous>, transform_indices = @transform_2, window_bounds = array<i64: 1, 256>}, {pipeline_mode = #tpu.pipeline_mode<synchronous>, transform_indices = @transform_3, window_bounds = array<i64: 256, 128>}, {pipeline_mode = #tpu.pipeline_mode<synchronous>, transform_indices = @transform_4, window_bounds = array<i64: 256, 128>}, {pipeline_mode = #tpu.pipeline_mode<synchronous>, transform_indices = @transform_5, window_bounds = array<i64: 1, 128>}, {transform_indices = @transform_6, window_bounds = array<i64: 192, 128>}]} {
    %c0 = arith.constant 0 : index
    %c0_0 = arith.constant 0 : index
    %0 = vector.load %arg1[%c0, %c0_0] : memref<192x256xf32, #tpu.memory_space<vmem>>, vector<192x256xf32>
    %1 = arith.truncf %0 : vector<192x256xf32> to vector<192x256xbf16>
    %cst = arith.constant 0.000000e+00 : bf16
    %2 = vector.broadcast %cst : bf16 to vector<192x256xbf16>
    %3 = arith.maximumf %1, %2 : vector<192x256xbf16>
    %c0_1 = arith.constant 0 : index
    %c0_2 = arith.constant 0 : index
    %4 = vector.load %arg2[%c0_1, %c0_2] : memref<256x256xbf16, #tpu.memory_space<vmem>>, vector<256x256xbf16>
    %cst_3 = arith.constant dense<0.000000e+00> : vector<192x256xf32>
    %5 = tpu.matmul %3, %4, %cst_3 {dimension_numbers = #tpu.dot_dimension_numbers<[1], [0], [0], [1], [0, 0, 1, 1], [], []>} : vector<192x256xbf16>, vector<256x256xbf16>, vector<192x256xf32> -> vector<192x256xf32>
    %c0_4 = arith.constant 0 : index
    %c0_5 = arith.constant 0 : index
    %6 = vector.load %arg3[%c0_4, %c0_5] : memref<1x256xf32, #tpu.memory_space<vmem>>, vector<1x256xf32>
    %7 = vector.broadcast %6 : vector<1x256xf32> to vector<192x256xf32>
    %8 = arith.addf %5, %7 : vector<192x256xf32>
    %cst_6 = arith.constant 0.000000e+00 : f32
    %9 = vector.broadcast %cst_6 : f32 to vector<192x256xf32>
    %10 = arith.maximumf %8, %9 : vector<192x256xf32>
    %11 = arith.truncf %10 : vector<192x256xf32> to vector<192x256xbf16>
    %c0_7 = arith.constant 0 : index
    %c0_8 = arith.constant 0 : index
    %12 = vector.load %arg4[%c0_7, %c0_8] : memref<256x128xbf16, #tpu.memory_space<vmem>>, vector<256x128xbf16>
    %cst_9 = arith.constant dense<0.000000e+00> : vector<192x128xf32>
    %13 = tpu.matmul %11, %12, %cst_9 {dimension_numbers = #tpu.dot_dimension_numbers<[1], [0], [0], [1], [0, 0, 1, 1], [], []>} : vector<192x256xbf16>, vector<256x128xbf16>, vector<192x128xf32> -> vector<192x128xf32>
    %c0_10 = arith.constant 0 : index
    %c0_11 = arith.constant 0 : index
    %14 = vector.load %arg5[%c0_10, %c0_11] : memref<256x128xbf16, #tpu.memory_space<vmem>>, vector<256x128xbf16>
    %cst_12 = arith.constant dense<0.000000e+00> : vector<192x128xf32>
    %15 = tpu.matmul %1, %14, %cst_12 {dimension_numbers = #tpu.dot_dimension_numbers<[1], [0], [0], [1], [0, 0, 1, 1], [], []>} : vector<192x256xbf16>, vector<256x128xbf16>, vector<192x128xf32> -> vector<192x128xf32>
    %16 = arith.addf %13, %15 : vector<192x128xf32>
    %c0_13 = arith.constant 0 : index
    %c0_14 = arith.constant 0 : index
    %17 = vector.load %arg6[%c0_13, %c0_14] : memref<1x128xf32, #tpu.memory_space<vmem>>, vector<1x128xf32>
    %18 = vector.broadcast %17 : vector<1x128xf32> to vector<192x128xf32>
    %19 = arith.addf %16, %18 : vector<192x128xf32>
    %c0_15 = arith.constant 0 : index
    %c0_16 = arith.constant 0 : index
    %20 = vector.load %arg7[%c0_15, %c0_16] : memref<192x128xf32, #tpu.memory_space<vmem>>, vector<192x128xf32>
    tpu.vector_store %arg7[%c0_15, %c0_16], %19 {strides = array<i32>} : memref<192x128xf32, #tpu.memory_space<vmem>>, vector<192x128xf32>,
    return
  }
  func.func @transform_0(%arg0: i32) -> (i32, i32) {
    %c0_i32 = arith.constant 0 : i32
    %c0_i32_0 = arith.constant 0 : i32
    return %arg0, %c0_i32 : i32, i32
  }
  func.func @transform_1(%arg0: i32) -> (i32, i32) {
    %c0_i32 = arith.constant 0 : i32
    %c0_i32_0 = arith.constant 0 : i32
    %c0_i32_1 = arith.constant 0 : i32
    return %c0_i32, %c0_i32_0 : i32, i32
  }
  func.func @transform_2(%arg0: i32) -> (i32, i32) {
    %c0_i32 = arith.constant 0 : i32
    %c0_i32_0 = arith.constant 0 : i32
    %c0_i32_1 = arith.constant 0 : i32
    return %c0_i32, %c0_i32_0 : i32, i32
  }
  func.func @transform_3(%arg0: i32) -> (i32, i32) {
    %c0_i32 = arith.constant 0 : i32
    %c0_i32_0 = arith.constant 0 : i32
    %c0_i32_1 = arith.constant 0 : i32
    return %c0_i32, %c0_i32_0 : i32, i32
  }
  func.func @transform_4(%arg0: i32) -> (i32, i32) {
    %c0_i32 = arith.constant 0 : i32
    %c0_i32_0 = arith.constant 0 : i32
    %c0_i32_1 = arith.constant 0 : i32
    return %c0_i32, %c0_i32_0 : i32, i32
  }
  func.func @transform_5(%arg0: i32) -> (i32, i32) {
    %c0_i32 = arith.constant 0 : i32
    %c0_i32_0 = arith.constant 0 : i32
    %c0_i32_1 = arith.constant 0 : i32
    return %c0_i32, %c0_i32_0 : i32, i32
  }
  func.func @transform_6(%arg0: i32) -> (i32, i32) {
    %c0_i32 = arith.constant 0 : i32
    %c0_i32_0 = arith.constant 0 : i32
    return %arg0, %c0_i32 : i32, i32
  }
}

</mosaic_0001>

<llo_original>
// kernel: tpu_custom_call.1
$region0: #{tpu_custom_call.1}
  #allocation0 [shape = 'u32[]', space=smem, size = 0x4, offset = 0x4, fixed_abs, tag = 'smem constant byte address 0x4 - core index']
  #allocation1 [shape = 'u32[72,128]{1,0:T(1,128)}', space=vmem, size = 0x9000, scoped, tag = 'internal scratch']
  %s0 = inlined_call_operand.hbm [shape: f32[384,256], index: 0, kind: input, shape index: {}]
  %s1 = inlined_call_operand.hbm [shape: bf16[256,256], index: 1, kind: input, shape index: {}]
  %s2 = inlined_call_operand.hbm [shape: f32[1,256], index: 2, kind: input, shape index: {}]
  %s3 = inlined_call_operand.hbm [shape: bf16[256,128], index: 3, kind: input, shape index: {}]
  %s4 = inlined_call_operand.hbm [shape: bf16[256,128], index: 4, kind: input, shape index: {}]
  %s5 = inlined_call_operand.vmem [shape: f32[1,128], index: 5, kind: input, shape index: {}]
  %s6 = inlined_call_operand.hbm [shape: f32[384,128], index: 6, kind: output, shape index: {}]
  %s7 = sld [smem:[#allocation0]]
  $region77: #{tpu_custom_call.1} parent=0
    _
  %s9 = ssub.s32 1, %s7
  %s10 = scalar_select 0, %s9, %s7
  $region1: #{tpu_custom_call.1} parent=0
    #allocation2 [shape = 'u8[393216]{0}', space=vmem, size = 0x60000, scoped, tag = 'input window, operand 0']
    #allocation3 [shape = 's32[2]{0}', space=sflag, size = 0x8, scoped, tag = 'scoped memory for tpu_custom_call.1']
    #allocation4 [shape = 's32[2]{0}', space=sflag, size = 0x8, scoped, tag = 'scoped memory for tpu_custom_call.1']
    #allocation5 [shape = 'u8[131072]{0}', space=vmem, size = 0x20000, scoped, tag = 'input window, operand 1, single buffered']
    #allocation6 [shape = 's32[1]{0}', space=sflag, size = 0x4, scoped, tag = 'scoped memory for tpu_custom_call.1']
    #allocation7 [shape = 'u8[1024]{0}', space=vmem, size = 0x400, scoped, tag = 'input window, operand 2, single buffered']
    #allocation8 [shape = 'u8[65536]{0}', space=vmem, size = 0x10000, scoped, tag = 'input window, operand 3, single buffered']
    #allocation9 [shape = 's32[1]{0}', space=sflag, size = 0x4, scoped, tag = 'scoped memory for tpu_custom_call.1']
    #allocation10 [shape = 'u8[65536]{0}', space=vmem, size = 0x10000, scoped, tag = 'input window, operand 4, single buffered']
    #allocation11 [shape = 'u8[196608]{0}', space=vmem, size = 0x30000, scoped, tag = 'output window, operand 0']
    %11 = vsyncpa [#allocation3], 0
    %s12 = scalar_lea.sflag [#allocation3], 1
    %13 = vsyncpa %s12, 0
    %14 = vsyncpa [#allocation6], 0
    %15 = vsyncpa [#allocation9], 0
    %16 = vsyncpa [#allocation4], 0
    %s17 = scalar_lea.sflag [#allocation4], 1
    %18 = vsyncpa %s17, 0
    loop: start=0, step=1, limit=4
    $region2: #{tpu_custom_call.1} parent=1 // loop_pre_header
      _
    $region3: #{tpu_custom_call.1} parent=1 // loop_header
      %s20 = sphi 0, %s24
      %p21 = scmp.ge.s32.totalorder %s20, 4
      %s30 = sphi 0, %s32
      %s33 = sphi 0, %s30
      %s34 = sphi 0, %s33
      %s50 = sphi 0, %s34
      %s54 = sphi 0, %s54
      %s56 = sphi 0, %s54
      %s57 = sphi 0, %s56
      %s71 = sphi 0, %s57
      %s75 = sphi 0, %s75
      %s77 = sphi 0, %s75
      %s78 = sphi 0, %s77
      %s92 = sphi 0, %s78
      %s96 = sphi 0, %s96
      %s98 = sphi 0, %s96
      %s99 = sphi 0, %s98
      %s113 = sphi 0, %s99
      %s117 = sphi 0, %s117
      %s119 = sphi 0, %s117
      %s120 = sphi 0, %s119
      %s134 = sphi 0, %s120
      %s138 = sphi 0, %s138
      %s140 = sphi 0, %s138
      %s141 = sphi 0, %s140
      %s155 = sphi 0, %s141
      %s161 = sphi 0, %s163
      %s164 = sphi 0, %s161
      %s165 = sphi 0, %s164
      %s181 = sphi 0, %s165
    $region4: #{tpu_custom_call.1} parent=1 // loop_header_branch
      %23 = sbr.rel (%p21) target = $region8
    $region5: #{tpu_custom_call.1} parent=1 // loop_body
      %s25 = ssub.s32 %s20, 1
      %s26 = ssub.s32 %s20, 2
      %s27 = sadd.s32 %s20, 1
      %s28 = ssub.s32 %s20, %s27
      %p29 = scmp.eq.s32.totalorder %s28, 0
      %s31 = sadd.s32 %s30, 1
      %s32 = scalar_select %p29, %s30, %s31
      %p35 = pneg %p29
      %p36 = scmp.eq.s32.totalorder %s20, 1
      %p37 = por %p35, %p36
      %p38 = scmp.ne.s32.totalorder %s30, %s33
      %p39 = scmp.eq.s32.totalorder %s20, 0
      %p40 = por %p38, %p39
      %p41 = scmp.ne.s32.totalorder %s30, %s33
      %p42 = scmp.eq.s32.totalorder %s25, 1
      %p43 = por %p41, %p42
      %p44 = scmp.ne.s32.totalorder %s33, %s34
      %p45 = scmp.eq.s32.totalorder %s25, 0
      %p46 = por %p44, %p45
      %p47 = scmp.ne.s32.totalorder %s33, %s34
      %p48 = scmp.eq.s32.totalorder %s26, 1
      %p49 = por %p47, %p48
      %p51 = scmp.ne.s32.totalorder %s34, %s50
      %p52 = scmp.eq.s32.totalorder %s26, 0
      %p53 = por %p51, %p52
      %s55 = sadd.s32 %s54, 1
      %p58 = scmp.eq.s32.totalorder %s20, 1
      %p59 = scmp.ne.s32.totalorder %s54, %s56
      %p60 = scmp.eq.s32.totalorder %s20, 0
      %p61 = por %p59, %p60
      %p62 = scmp.ne.s32.totalorder %s54, %s56
      %p63 = scmp.eq.s32.totalorder %s25, 1
      %p64 = por %p62, %p63
      %p65 = scmp.ne.s32.totalorder %s56, %s57
      %p66 = scmp.eq.s32.totalorder %s25, 0
      %p67 = por %p65, %p66
      %p68 = scmp.ne.s32.totalorder %s56, %s57
      %p69 = scmp.eq.s32.totalorder %s26, 1
      %p70 = por %p68, %p69
      %p72 = scmp.ne.s32.totalorder %s57, %s71
      %p73 = scmp.eq.s32.totalorder %s26, 0
      %p74 = por %p72, %p73
      %s76 = sadd.s32 %s75, 1
      %p79 = scmp.eq.s32.totalorder %s20, 1
      %p80 = scmp.ne.s32.totalorder %s75, %s77
      %p81 = scmp.eq.s32.totalorder %s20, 0
      %p82 = por %p80, %p81
      %p83 = scmp.ne.s32.totalorder %s75, %s77
      %p84 = scmp.eq.s32.totalorder %s25, 1
      %p85 = por %p83, %p84
      %p86 = scmp.ne.s32.totalorder %s77, %s78
      %p87 = scmp.eq.s32.totalorder %s25, 0
      %p88 = por %p86, %p87
      %p89 = scmp.ne.s32.totalorder %s77, %s78
      %p90 = scmp.eq.s32.totalorder %s26, 1
      %p91 = por %p89, %p90
      %p93 = scmp.ne.s32.totalorder %s78, %s92
      %p94 = scmp.eq.s32.totalorder %s26, 0
      %p95 = por %p93, %p94
      %s97 = sadd.s32 %s96, 1
      %p100 = scmp.eq.s32.totalorder %s20, 1
      %p101 = scmp.ne.s32.totalorder %s96, %s98
      %p102 = scmp.eq.s32.totalorder %s20, 0
      %p103 = por %p101, %p102
      %p104 = scmp.ne.s32.totalorder %s96, %s98
      %p105 = scmp.eq.s32.totalorder %s25, 1
      %p106 = por %p104, %p105
      %p107 = scmp.ne.s32.totalorder %s98, %s99
      %p108 = scmp.eq.s32.totalorder %s25, 0
      %p109 = por %p107, %p108
      %p110 = scmp.ne.s32.totalorder %s98, %s99
      %p111 = scmp.eq.s32.totalorder %s26, 1
      %p112 = por %p110, %p111
      %p114 = scmp.ne.s32.totalorder %s99, %s113
      %p115 = scmp.eq.s32.totalorder %s26, 0
      %p116 = por %p114, %p115
      %s118 = sadd.s32 %s117, 1
      %p121 = scmp.eq.s32.totalorder %s20, 1
      %p122 = scmp.ne.s32.totalorder %s117, %s119
      %p123 = scmp.eq.s32.totalorder %s20, 0
      %p124 = por %p122, %p123
      %p125 = scmp.ne.s32.totalorder %s117, %s119
      %p126 = scmp.eq.s32.totalorder %s25, 1
      %p127 = por %p125, %p126
      %p128 = scmp.ne.s32.totalorder %s119, %s120
      %p129 = scmp.eq.s32.totalorder %s25, 0
      %p130 = por %p128, %p129
      %p131 = scmp.ne.s32.totalorder %s119, %s120
      %p132 = scmp.eq.s32.totalorder %s26, 1
      %p133 = por %p131, %p132
      %p135 = scmp.ne.s32.totalorder %s120, %s134
      %p136 = scmp.eq.s32.totalorder %s26, 0
      %p137 = por %p135, %p136
      %s139 = sadd.s32 %s138, 1
      %p142 = scmp.eq.s32.totalorder %s20, 1
      %p143 = scmp.ne.s32.totalorder %s138, %s140
      %p144 = scmp.eq.s32.totalorder %s20, 0
      %p145 = por %p143, %p144
      %p146 = scmp.ne.s32.totalorder %s138, %s140
      %p147 = scmp.eq.s32.totalorder %s25, 1
      %p148 = por %p146, %p147
      %p149 = scmp.ne.s32.totalorder %s140, %s141
      %p150 = scmp.eq.s32.totalorder %s25, 0
      %p151 = por %p149, %p150
      %p152 = scmp.ne.s32.totalorder %s140, %s141
      %p153 = scmp.eq.s32.totalorder %s26, 1
      %p154 = por %p152, %p153
      %p156 = scmp.ne.s32.totalorder %s141, %s155
      %p157 = scmp.eq.s32.totalorder %s26, 0
      %p158 = por %p156, %p157
      %s159 = ssub.s32 %s20, %s27
      %p160 = scmp.eq.s32.totalorder %s159, 0
      %s162 = sadd.s32 %s161, 1
      %s163 = scalar_select %p160, %s161, %s162
      %p166 = pneg %p160
      %p167 = scmp.eq.s32.totalorder %s20, 1
      %p168 = por %p166, %p167
      %p169 = scmp.ne.s32.totalorder %s161, %s164
      %p170 = scmp.eq.s32.totalorder %s20, 0
      %p171 = por %p169, %p170
      %p172 = scmp.ne.s32.totalorder %s161, %s164
      %p173 = scmp.eq.s32.totalorder %s25, 1
      %p174 = por %p172, %p173
      %p175 = scmp.ne.s32.totalorder %s164, %s165
      %p176 = scmp.eq.s32.totalorder %s25, 0
      %p177 = por %p175, %p176
      %p178 = scmp.ne.s32.totalorder %s164, %s165
      %p179 = scmp.eq.s32.totalorder %s26, 1
      %p180 = por %p178, %p179
      %p182 = scmp.ne.s32.totalorder %s165, %s181
      %p183 = scmp.eq.s32.totalorder %s26, 0
      %p184 = por %p182, %p183
      %p185 = scmp.le.s32.totalorder 1, %s20
      %p186 = scmp.lt.s32.totalorder %s20, 3
      %p187 = pnand %p185, %p186
      %p188 = pneg %p187
      // Predicated region
      $region9: #{tpu_custom_call.1} parent=5 // pred_check
        _
      $region10: #{tpu_custom_call.1} parent=5 // pred_check_branch
        %190 = sbr.rel (%p187) target = $region12
      $region11: #{tpu_custom_call.1} parent=5 // pred_region
        %s191 = ssub.s32 %s20, 1
        // Predicated region
        $region13: #{tpu_custom_call.1} parent=11 // pred_check
          %p192 = pneg %p67
        $region14: #{tpu_custom_call.1} parent=11 // pred_check_branch
          %194 = sbr.rel (%p192) target = $region16
        $region15: #{tpu_custom_call.1} parent=11 // pred_region
          %196 = vsyncadd [#allocation6], 0
          %s197 = sshll.u32 %s1, 4
          %s198 = int_to_ptr.hbm [resolvable:$true] %s197
          %s199 = sshll.u32 [#allocation5], 4
          %s200 = int_to_ptr.vmem [resolvable:$true] %s199
          %205 = dma.hbm_to_vmem [thread:$0]  %s198, 4096, %s200, [#allocation6], 128, 128, 8
        $region16: #{tpu_custom_call.1} parent=11 // pred_fallthru
          _
        // Predicated region
        $region17: #{tpu_custom_call.1} parent=11 // pred_check
          %p206 = pneg %p88
        $region18: #{tpu_custom_call.1} parent=11 // pred_check_branch
          %208 = sbr.rel (%p206) target = $region20
        $region19: #{tpu_custom_call.1} parent=11 // pred_region
          %210 = vsyncadd [#allocation6], 0
          %s212 = sshll.u32 %s2, 4
          %s213 = int_to_ptr.hbm [resolvable:$true] %s212
          %s214 = sshll.u32 [#allocation7], 4
          %s215 = int_to_ptr.vmem [resolvable:$true] %s214
          %217 = dma.hbm_to_vmem [thread:$0]  %s213, 32, %s215, [#allocation6]
        $region20: #{tpu_custom_call.1} parent=11 // pred_fallthru
          _
        // Predicated region
        $region21: #{tpu_custom_call.1} parent=11 // pred_check
          %p218 = pneg %p109
        $region22: #{tpu_custom_call.1} parent=11 // pred_check_branch
          %220 = sbr.rel (%p218) target = $region24
        $region23: #{tpu_custom_call.1} parent=11 // pred_region
          %222 = vsyncadd [#allocation9], 0
          %s223 = sshll.u32 %s3, 4
          %s224 = int_to_ptr.hbm [resolvable:$true] %s223
          %s225 = sshll.u32 [#allocation8], 4
          %s226 = int_to_ptr.vmem [resolvable:$true] %s225
          %231 = dma.hbm_to_vmem [thread:$0]  %s224, 2048, %s226, [#allocation9], 64, 64, 4
        $region24: #{tpu_custom_call.1} parent=11 // pred_fallthru
          _
        // Predicated region
        $region25: #{tpu_custom_call.1} parent=11 // pred_check
          %p232 = pneg %p130
        $region26: #{tpu_custom_call.1} parent=11 // pred_check_branch
          %234 = sbr.rel (%p232) target = $region28
        $region27: #{tpu_custom_call.1} parent=11 // pred_region
          %236 = vsyncadd [#allocation9], 0
          %s237 = sshll.u32 %s4, 4
          %s238 = int_to_ptr.hbm [resolvable:$true] %s237
          %s239 = sshll.u32 [#allocation10], 4
          %s240 = int_to_ptr.vmem [resolvable:$true] %s239
          %245 = dma.hbm_to_vmem [thread:$0]  %s238, 2048, %s240, [#allocation9], 64, 64, 4
        $region28: #{tpu_custom_call.1} parent=11 // pred_fallthru
          _
        // Predicated region
        $region29: #{tpu_custom_call.1} parent=11 // pred_check
          %p246 = pneg %p151
        $region30: #{tpu_custom_call.1} parent=11 // pred_check_branch
          %248 = sbr.rel (%p246) target = $region32
        $region31: #{tpu_custom_call.1} parent=11 // pred_region
          _
        $region32: #{tpu_custom_call.1} parent=11 // pred_fallthru
          _
      $region12: #{tpu_custom_call.1} parent=5 // pred_fallthru
        _
      %p249 = scmp.lt.s32.totalorder %s20, 2
      // Predicated region
      $region33: #{tpu_custom_call.1} parent=5 // pred_check
        %p250 = pneg %p249
      $region34: #{tpu_custom_call.1} parent=5 // pred_check_branch
        %252 = sbr.rel (%p250) target = $region36
      $region35: #{tpu_custom_call.1} parent=5 // pred_region
        // Predicated region
        $region37: #{tpu_custom_call.1} parent=35 // pred_check
          %p253 = pneg %p40
        $region38: #{tpu_custom_call.1} parent=35 // pred_check_branch
          %255 = sbr.rel (%p253) target = $region40
        $region39: #{tpu_custom_call.1} parent=35 // pred_region
          %s256 = sand.u32 %s30, 1
          %s257 = scalar_lea.sflag [#allocation3], %s256
          %s258 = sand.u32 %s30, 1
          %s259 = smul.addr %s258, 384
          %s260 = scalar_lea.vmem [#allocation2], %s259
          %s261 = smul.u32 24, %s20
          %263 = vsyncadd %s257, 0
          %s264 = smul.addr %s261, 2
          %s265 = smul.addr %s264, 8
          %s266 = scalar_lea.hbm %s0, %s265
          %s267 = sshll.u32 %s266, 4
          %s268 = int_to_ptr.hbm [resolvable:$true] %s267
          %s269 = sshll.u32 %s260, 4
          %s270 = int_to_ptr.vmem [resolvable:$true] %s269
          %275 = dma.hbm_to_vmem [thread:$0]  %s268, 6144, %s270, %s257, 256, 256, 16
        $region40: #{tpu_custom_call.1} parent=35 // pred_fallthru
          _
      $region36: #{tpu_custom_call.1} parent=5 // pred_fallthru
        _
      %p276 = scmp.le.s32.totalorder 1, %s20
      %p277 = scmp.lt.s32.totalorder %s20, 3
      %p278 = pnand %p276, %p277
      %p279 = pneg %p278
      // Predicated region
      $region41: #{tpu_custom_call.1} parent=5 // pred_check
        _
      $region42: #{tpu_custom_call.1} parent=5 // pred_check_branch
        %281 = sbr.rel (%p278) target = $region44
      $region43: #{tpu_custom_call.1} parent=5 // pred_region
        %s282 = ssub.s32 %s20, 1
        %s283 = sand.u32 %s33, 1
        %s284 = scalar_lea.sflag [#allocation3], %s283
        %s285 = sand.u32 %s33, 1
        %s286 = smul.addr %s285, 384
        %s287 = scalar_lea.vmem [#allocation2], %s286
        // Predicated region
        $region45: #{tpu_custom_call.1} parent=43 // pred_check
          %p288 = pneg %p46
        $region46: #{tpu_custom_call.1} parent=43 // pred_check_branch
          %290 = sbr.rel (%p288) target = $region48
        $region47: #{tpu_custom_call.1} parent=43 // pred_region
          %292 = dma.done %s284, 6144
        $region48: #{tpu_custom_call.1} parent=43 // pred_fallthru
          _
        // Predicated region
        $region49: #{tpu_custom_call.1} parent=43 // pred_check
          %p293 = pneg %p67
        $region50: #{tpu_custom_call.1} parent=43 // pred_check_branch
          %295 = sbr.rel (%p293) target = $region52
        $region51: #{tpu_custom_call.1} parent=43 // pred_region
          %297 = dma.done [#allocation6], 4096
        $region52: #{tpu_custom_call.1} parent=43 // pred_fallthru
          _
        // Predicated region
        $region53: #{tpu_custom_call.1} parent=43 // pred_check
          %p298 = pneg %p88
        $region54: #{tpu_custom_call.1} parent=43 // pred_check_branch
          %300 = sbr.rel (%p298) target = $region56
        $region55: #{tpu_custom_call.1} parent=43 // pred_region
          %302 = dma.done [#allocation6], 32
        $region56: #{tpu_custom_call.1} parent=43 // pred_fallthru
          _
        // Predicated region
        $region57: #{tpu_custom_call.1} parent=43 // pred_check
          %p303 = pneg %p109
        $region58: #{tpu_custom_call.1} parent=43 // pred_check_branch
          %305 = sbr.rel (%p303) target = $region60
        $region59: #{tpu_custom_call.1} parent=43 // pred_region
          %307 = dma.done [#allocation9], 2048
        $region60: #{tpu_custom_call.1} parent=43 // pred_fallthru
          _
        // Predicated region
        $region61: #{tpu_custom_call.1} parent=43 // pred_check
          %p308 = pneg %p130
        $region62: #{tpu_custom_call.1} parent=43 // pred_check_branch
          %310 = sbr.rel (%p308) target = $region64
        $region63: #{tpu_custom_call.1} parent=43 // pred_region
          %312 = dma.done [#allocation9], 2048
        $region64: #{tpu_custom_call.1} parent=43 // pred_fallthru
          _
        %s313 = sand.u32 %s33, 1
        %s314 = scalar_lea.sflag [#allocation3], %s313
        %s315 = sand.u32 %s33, 1
        %s316 = smul.addr %s315, 384
        %s317 = scalar_lea.vmem [#allocation2], %s316
        %p318 = pneg %p46
        %p319 = pneg %p43
        %p320 = pneg %p67
        %p321 = pneg %p64
        %p322 = pneg %p88
        %p323 = pneg %p85
        %p324 = pneg %p109
        %p325 = pneg %p106
        %p326 = pneg %p130
        %p327 = pneg %p127
        %p328 = pneg %p151
        %p329 = pneg %p148
        %p330 = pneg %p177
        %p331 = pneg %p174
        %s332 = sand.u32 %s164, 1
        %s333 = scalar_lea.sflag [#allocation4], %s332
        %s334 = sand.u32 %s164, 1
        %s335 = smul.addr %s334, 192
        %s336 = scalar_lea.vmem [#allocation11], %s335
        %s337 = smul.u32 24, %s25
        %s338 = smul.u32 24, %s25
        %v339 = vld [vmem:[%s287] sm:$0xff]
        %v340 = vld [vmem:[%s287 + $0x8] sm:$0xff]
        %v341 = vld [vmem:[%s287 + $0x10] sm:$0xff]
        %v342 = vld [vmem:[%s287 + $0x18] sm:$0xff]
        %v343 = vld [vmem:[%s287 + $0x20] sm:$0xff]
        %v344 = vld [vmem:[%s287 + $0x28] sm:$0xff]
        %v345 = vld [vmem:[%s287 + $0x30] sm:$0xff]
        %v346 = vld [vmem:[%s287 + $0x38] sm:$0xff]
        %v347 = vld [vmem:[%s287 + $0x40] sm:$0xff]
        %v348 = vld [vmem:[%s287 + $0x48] sm:$0xff]
        %v349 = vld [vmem:[%s287 + $0x50] sm:$0xff]
        %v350 = vld [vmem:[%s287 + $0x58] sm:$0xff]
        %v351 = vld [vmem:[%s287 + $0x60] sm:$0xff]
        %v352 = vld [vmem:[%s287 + $0x68] sm:$0xff]
        %v353 = vld [vmem:[%s287 + $0x70] sm:$0xff]
        %v354 = vld [vmem:[%s287 + $0x78] sm:$0xff]
        %v355 = vld [vmem:[%s287 + $0x80] sm:$0xff]
        %v356 = vld [vmem:[%s287 + $0x88] sm:$0xff]
        %v357 = vld [vmem:[%s287 + $0x90] sm:$0xff]
        %v358 = vld [vmem:[%s287 + $0x98] sm:$0xff]
        %v359 = vld [vmem:[%s287 + $0xa0] sm:$0xff]
        %v360 = vld [vmem:[%s287 + $0xa8] sm:$0xff]
        %v361 = vld [vmem:[%s287 + $0xb0] sm:$0xff]
        %v362 = vld [vmem:[%s287 + $0xb8] sm:$0xff]
        %v363 = vld [vmem:[%s287 + $0xc0] sm:$0xff]
        %v364 = vld [vmem:[%s287 + $0xc8] sm:$0xff]
        %v365 = vld [vmem:[%s287 + $0xd0] sm:$0xff]
        %v366 = vld [vmem:[%s287 + $0xd8] sm:$0xff]
        %v367 = vld [vmem:[%s287 + $0xe0] sm:$0xff]
        %v368 = vld [vmem:[%s287 + $0xe8] sm:$0xff]
        %v369 = vld [vmem:[%s287 + $0xf0] sm:$0xff]
        %v370 = vld [vmem:[%s287 + $0xf8] sm:$0xff]
        %v371 = vld [vmem:[%s287 + $0x100] sm:$0xff]
        %v372 = vld [vmem:[%s287 + $0x108] sm:$0xff]
        %v373 = vld [vmem:[%s287 + $0x110] sm:$0xff]
        %v374 = vld [vmem:[%s287 + $0x118] sm:$0xff]
        %v375 = vld [vmem:[%s287 + $0x120] sm:$0xff]
        %v376 = vld [vmem:[%s287 + $0x128] sm:$0xff]
        %v377 = vld [vmem:[%s287 + $0x130] sm:$0xff]
        %v378 = vld [vmem:[%s287 + $0x138] sm:$0xff]
        %v379 = vld [vmem:[%s287 + $0x140] sm:$0xff]
        %v380 = vld [vmem:[%s287 + $0x148] sm:$0xff]
        %v381 = vld [vmem:[%s287 + $0x150] sm:$0xff]
        %v382 = vld [vmem:[%s287 + $0x158] sm:$0xff]
        %v383 = vld [vmem:[%s287 + $0x160] sm:$0xff]
        %v384 = vld [vmem:[%s287 + $0x168] sm:$0xff]
        %v385 = vld [vmem:[%s287 + $0x170] sm:$0xff]
        %v386 = vld [vmem:[%s287 + $0x178] sm:$0xff]
        %v387 = vpack.c.bf16 %v340, %v339
        %v388 = vpack.c.bf16 %v342, %v341
        %v389 = vpack.c.bf16 %v344, %v343
        %v390 = vpack.c.bf16 %v346, %v345
        %v391 = vpack.c.bf16 %v348, %v347
        %v392 = vpack.c.bf16 %v350, %v349
        %v393 = vpack.c.bf16 %v352, %v351
        %v394 = vpack.c.bf16 %v354, %v353
        %v395 = vpack.c.bf16 %v356, %v355
        %v396 = vpack.c.bf16 %v358, %v357
        %v397 = vpack.c.bf16 %v360, %v359
        %v398 = vpack.c.bf16 %v362, %v361
        %v399 = vpack.c.bf16 %v364, %v363
        %v400 = vpack.c.bf16 %v366, %v365
        %v401 = vpack.c.bf16 %v368, %v367
        %v402 = vpack.c.bf16 %v370, %v369
        %v403 = vpack.c.bf16 %v372, %v371
        %v404 = vpack.c.bf16 %v374, %v373
        %v405 = vpack.c.bf16 %v376, %v375
        %v406 = vpack.c.bf16 %v378, %v377
        %v407 = vpack.c.bf16 %v380, %v379
        %v408 = vpack.c.bf16 %v382, %v381
        %v409 = vpack.c.bf16 %v384, %v383
        %v410 = vpack.c.bf16 %v386, %v385
        %v411 = vunpack.c.l.bf16 %v387
        %v412 = vunpack.c.h.bf16 %v387
        %v413 = vunpack.c.l.bf16 %v388
        %v414 = vunpack.c.h.bf16 %v388
        %v415 = vunpack.c.l.bf16 %v389
        %v416 = vunpack.c.h.bf16 %v389
        %v417 = vunpack.c.l.bf16 %v390
        %v418 = vunpack.c.h.bf16 %v390
        %v419 = vunpack.c.l.bf16 %v391
        %v420 = vunpack.c.h.bf16 %v391
        %v421 = vunpack.c.l.bf16 %v392
        %v422 = vunpack.c.h.bf16 %v392
        %v423 = vunpack.c.l.bf16 %v393
        %v424 = vunpack.c.h.bf16 %v393
        %v425 = vunpack.c.l.bf16 %v394
        %v426 = vunpack.c.h.bf16 %v394
        %v427 = vunpack.c.l.bf16 %v395
        %v428 = vunpack.c.h.bf16 %v395
        %v429 = vunpack.c.l.bf16 %v396
        %v430 = vunpack.c.h.bf16 %v396
        %v431 = vunpack.c.l.bf16 %v397
        %v432 = vunpack.c.h.bf16 %v397
        %v433 = vunpack.c.l.bf16 %v398
        %v434 = vunpack.c.h.bf16 %v398
        %v435 = vunpack.c.l.bf16 %v399
        %v436 = vunpack.c.h.bf16 %v399
        %v437 = vunpack.c.l.bf16 %v400
        %v438 = vunpack.c.h.bf16 %v400
        %v439 = vunpack.c.l.bf16 %v401
        %v440 = vunpack.c.h.bf16 %v401
        %v441 = vunpack.c.l.bf16 %v402
        %v442 = vunpack.c.h.bf16 %v402
        %v443 = vunpack.c.l.bf16 %v403
        %v444 = vunpack.c.h.bf16 %v403
        %v445 = vunpack.c.l.bf16 %v404
        %v446 = vunpack.c.h.bf16 %v404
        %v447 = vunpack.c.l.bf16 %v405
        %v448 = vunpack.c.h.bf16 %v405
        %v449 = vunpack.c.l.bf16 %v406
        %v450 = vunpack.c.h.bf16 %v406
        %v451 = vunpack.c.l.bf16 %v407
        %v452 = vunpack.c.h.bf16 %v407
        %v453 = vunpack.c.l.bf16 %v408
        %v454 = vunpack.c.h.bf16 %v408
        %v455 = vunpack.c.l.bf16 %v409
        %v456 = vunpack.c.h.bf16 %v409
        %v457 = vunpack.c.l.bf16 %v410
        %v458 = vunpack.c.h.bf16 %v410
        %v459 = vmax.f32 %v411, 0.0
        %v460 = vmax.f32 %v412, 0.0
        %v461 = vmax.f32 %v413, 0.0
        %v462 = vmax.f32 %v414, 0.0
        %v463 = vmax.f32 %v415, 0.0
        %v464 = vmax.f32 %v416, 0.0
        %v465 = vmax.f32 %v417, 0.0
        %v466 = vmax.f32 %v418, 0.0
        %v467 = vmax.f32 %v419, 0.0
        %v468 = vmax.f32 %v420, 0.0
        %v469 = vmax.f32 %v421, 0.0
        %v470 = vmax.f32 %v422, 0.0
        %v471 = vmax.f32 %v423, 0.0
        %v472 = vmax.f32 %v424, 0.0
        %v473 = vmax.f32 %v425, 0.0
        %v474 = vmax.f32 %v426, 0.0
        %v475 = vmax.f32 %v427, 0.0
        %v476 = vmax.f32 %v428, 0.0
        %v477 = vmax.f32 %v429, 0.0
        %v478 = vmax.f32 %v430, 0.0
        %v479 = vmax.f32 %v431, 0.0
        %v480 = vmax.f32 %v432, 0.0
        %v481 = vmax.f32 %v433, 0.0
        %v482 = vmax.f32 %v434, 0.0
        %v483 = vmax.f32 %v435, 0.0
        %v484 = vmax.f32 %v436, 0.0
        %v485 = vmax.f32 %v437, 0.0
        %v486 = vmax.f32 %v438, 0.0
        %v487 = vmax.f32 %v439, 0.0
        %v488 = vmax.f32 %v440, 0.0
        %v489 = vmax.f32 %v441, 0.0
        %v490 = vmax.f32 %v442, 0.0
        %v491 = vmax.f32 %v443, 0.0
        %v492 = vmax.f32 %v444, 0.0
        %v493 = vmax.f32 %v445, 0.0
        %v494 = vmax.f32 %v446, 0.0
        %v495 = vmax.f32 %v447, 0.0
        %v496 = vmax.f32 %v448, 0.0
        %v497 = vmax.f32 %v449, 0.0
        %v498 = vmax.f32 %v450, 0.0
        %v499 = vmax.f32 %v451, 0.0
        %v500 = vmax.f32 %v452, 0.0
        %v501 = vmax.f32 %v453, 0.0
        %v502 = vmax.f32 %v454, 0.0
        %v503 = vmax.f32 %v455, 0.0
        %v504 = vmax.f32 %v456, 0.0
        %v505 = vmax.f32 %v457, 0.0
        %v506 = vmax.f32 %v458, 0.0
        %v507 = vpack.c.bf16 %v461, %v459
        %v508 = vpack.c.bf16 %v462, %v460
        %v509 = vpack.c.bf16 %v465, %v463
        %v510 = vpack.c.bf16 %v466, %v464
        %v511 = vpack.c.bf16 %v469, %v467
        %v512 = vpack.c.bf16 %v470, %v468
        %v513 = vpack.c.bf16 %v473, %v471
        %v514 = vpack.c.bf16 %v474, %v472
        %v515 = vpack.c.bf16 %v477, %v475
        %v516 = vpack.c.bf16 %v478, %v476
        %v517 = vpack.c.bf16 %v481, %v479
        %v518 = vpack.c.bf16 %v482, %v480
        %v519 = vpack.c.bf16 %v485, %v483
        %v520 = vpack.c.bf16 %v486, %v484
        %v521 = vpack.c.bf16 %v489, %v487
        %v522 = vpack.c.bf16 %v490, %v488
        %v523 = vpack.c.bf16 %v493, %v491
        %v524 = vpack.c.bf16 %v494, %v492
        %v525 = vpack.c.bf16 %v497, %v495
        %v526 = vpack.c.bf16 %v498, %v496
        %v527 = vpack.c.bf16 %v501, %v499
        %v528 = vpack.c.bf16 %v502, %v500
        %v529 = vpack.c.bf16 %v505, %v503
        %v530 = vpack.c.bf16 %v506, %v504
        %v531 = vld [vmem:[#allocation5] sm:$0xff]
        %v532 = vld [vmem:[#allocation5 + $0x8] sm:$0xff]
        %v533 = vld [vmem:[#allocation5 + $0x10] sm:$0xff]
        %v534 = vld [vmem:[#allocation5 + $0x18] sm:$0xff]
        %v535 = vld [vmem:[#allocation5 + $0x20] sm:$0xff]
        %v536 = vld [vmem:[#allocation5 + $0x28] sm:$0xff]
        %v537 = vld [vmem:[#allocation5 + $0x30] sm:$0xff]
        %v538 = vld [vmem:[#allocation5 + $0x38] sm:$0xff]
        %v539 = vld [vmem:[#allocation5 + $0x40] sm:$0xff]
        %v540 = vld [vmem:[#allocation5 + $0x48] sm:$0xff]
        %v541 = vld [vmem:[#allocation5 + $0x50] sm:$0xff]
        %v542 = vld [vmem:[#allocation5 + $0x58] sm:$0xff]
        %v543 = vld [vmem:[#allocation5 + $0x60] sm:$0xff]
        %v544 = vld [vmem:[#allocation5 + $0x68] sm:$0xff]
        %v545 = vld [vmem:[#allocation5 + $0x70] sm:$0xff]
        %v546 = vld [vmem:[#allocation5 + $0x78] sm:$0xff]
        %v547 = vld [vmem:[#allocation5 + $0x80] sm:$0xff]
        %v548 = vld [vmem:[#allocation5 + $0x88] sm:$0xff]
        %v549 = vld [vmem:[#allocation5 + $0x90] sm:$0xff]
        %v550 = vld [vmem:[#allocation5 + $0x98] sm:$0xff]
        %v551 = vld [vmem:[#allocation5 + $0xa0] sm:$0xff]
        %v552 = vld [vmem:[#allocation5 + $0xa8] sm:$0xff]
        %v553 = vld [vmem:[#allocation5 + $0xb0] sm:$0xff]
        %v554 = vld [vmem:[#allocation5 + $0xb8] sm:$0xff]
        %v555 = vld [vmem:[#allocation5 + $0xc0] sm:$0xff]
        %v556 = vld [vmem:[#allocation5 + $0xc8] sm:$0xff]
        %v557 = vld [vmem:[#allocation5 + $0xd0] sm:$0xff]
        %v558 = vld [vmem:[#allocation5 + $0xd8] sm:$0xff]
        %v559 = vld [vmem:[#allocation5 + $0xe0] sm:$0xff]
        %v560 = vld [vmem:[#allocation5 + $0xe8] sm:$0xff]
        %v561 = vld [vmem:[#allocation5 + $0xf0] sm:$0xff]
        %v562 = vld [vmem:[#allocation5 + $0xf8] sm:$0xff]
        %v563 = vld [vmem:[#allocation7] sm:$0x3]
        %v565 = vperm.slane %v563, 0
        %v566 = vperm.slane %v563, 1
        %v601 = vunpack.c.l.b16 %v531
        %v602 = vunpack.c.h.b16 %v531
        %v603 = vunpack.c.l.b16 %v532
        %v604 = vunpack.c.h.b16 %v532
        %v605 = vunpack.c.l.b16 %v533
        %v606 = vunpack.c.h.b16 %v533
        %v607 = vunpack.c.l.b16 %v534
        %v608 = vunpack.c.h.b16 %v534
        %v609 = vunpack.c.l.b16 %v535
        %v610 = vunpack.c.h.b16 %v535
        %v611 = vunpack.c.l.b16 %v536
        %v612 = vunpack.c.h.b16 %v536
        %v613 = vunpack.c.l.b16 %v537
        %v614 = vunpack.c.h.b16 %v537
        %v615 = vunpack.c.l.b16 %v538
        %v616 = vunpack.c.h.b16 %v538
        %v617 = vunpack.c.l.b16 %v539
        %v618 = vunpack.c.h.b16 %v539
        %v619 = vunpack.c.l.b16 %v540
        %v620 = vunpack.c.h.b16 %v540
        %v621 = vunpack.c.l.b16 %v541
        %v622 = vunpack.c.h.b16 %v541
        %v623 = vunpack.c.l.b16 %v542
        %v624 = vunpack.c.h.b16 %v542
        %v625 = vunpack.c.l.b16 %v543
        %v626 = vunpack.c.h.b16 %v543
        %v627 = vunpack.c.l.b16 %v544
        %v628 = vunpack.c.h.b16 %v544
        %v629 = vunpack.c.l.b16 %v545
        %v630 = vunpack.c.h.b16 %v545
        %v631 = vunpack.c.l.b16 %v546
        %v632 = vunpack.c.h.b16 %v546
        %v633 = vunpack.c.l.b16 %v547
        %v634 = vunpack.c.h.b16 %v547
        %v635 = vunpack.c.l.b16 %v548
        %v636 = vunpack.c.h.b16 %v548
        %v637 = vunpack.c.l.b16 %v549
        %v638 = vunpack.c.h.b16 %v549
        %v639 = vunpack.c.l.b16 %v550
        %v640 = vunpack.c.h.b16 %v550
        %v641 = vunpack.c.l.b16 %v551
        %v642 = vunpack.c.h.b16 %v551
        %v643 = vunpack.c.l.b16 %v552
        %v644 = vunpack.c.h.b16 %v552
        %v645 = vunpack.c.l.b16 %v553
        %v646 = vunpack.c.h.b16 %v553
        %v647 = vunpack.c.l.b16 %v554
        %v648 = vunpack.c.h.b16 %v554
        %v649 = vunpack.c.l.b16 %v555
        %v650 = vunpack.c.h.b16 %v555
        %v651 = vunpack.c.l.b16 %v556
        %v652 = vunpack.c.h.b16 %v556
        %v653 = vunpack.c.l.b16 %v557
        %v654 = vunpack.c.h.b16 %v557
        %v655 = vunpack.c.l.b16 %v558
        %v656 = vunpack.c.h.b16 %v558
        %v657 = vunpack.c.l.b16 %v559
        %v658 = vunpack.c.h.b16 %v559
        %v659 = vunpack.c.l.b16 %v560
        %v660 = vunpack.c.h.b16 %v560
        %v661 = vunpack.c.l.b16 %v561
        %v662 = vunpack.c.h.b16 %v561
        %v663 = vunpack.c.l.b16 %v562
        %v664 = vunpack.c.h.b16 %v562
        %v665 = vpack.c.b16 %v603, %v601
        %v666 = vpack.c.b16 %v604, %v602
        %v667 = vpack.c.b16 %v607, %v605
        %v668 = vpack.c.b16 %v608, %v606
        %v669 = vpack.c.b16 %v611, %v609
        %v670 = vpack.c.b16 %v612, %v610
        %v671 = vpack.c.b16 %v615, %v613
        %v672 = vpack.c.b16 %v616, %v614
        %v673 = vpack.c.b16 %v619, %v617
        %v674 = vpack.c.b16 %v620, %v618
        %v675 = vpack.c.b16 %v623, %v621
        %v676 = vpack.c.b16 %v624, %v622
        %v677 = vpack.c.b16 %v627, %v625
        %v678 = vpack.c.b16 %v628, %v626
        %v679 = vpack.c.b16 %v631, %v629
        %v680 = vpack.c.b16 %v632, %v630
        %v681 = vpack.c.b16 %v635, %v633
        %v682 = vpack.c.b16 %v636, %v634
        %v683 = vpack.c.b16 %v639, %v637
        %v684 = vpack.c.b16 %v640, %v638
        %v685 = vpack.c.b16 %v643, %v641
        %v686 = vpack.c.b16 %v644, %v642
        %v687 = vpack.c.b16 %v647, %v645
        %v688 = vpack.c.b16 %v648, %v646
        %v689 = vpack.c.b16 %v651, %v649
        %v690 = vpack.c.b16 %v652, %v650
        %v691 = vpack.c.b16 %v655, %v653
        %v692 = vpack.c.b16 %v656, %v654
        %v693 = vpack.c.b16 %v659, %v657
        %v694 = vpack.c.b16 %v660, %v658
        %v695 = vpack.c.b16 %v663, %v661
        %v696 = vpack.c.b16 %v664, %v662
        %729 = vmatpush.bf16.msra.mxu0 %v679
        %730 = vmatpush.bf16.msra.mxu0 %v677
        %731 = vmatpush.bf16.msra.mxu0 %v675
        %732 = vmatpush.bf16.msra.mxu0 %v673
        %733 = vmatpush.bf16.msra.mxu0 %v671
        %734 = vmatpush.bf16.msra.mxu0 %v669
        %735 = vmatpush.bf16.msra.mxu0 %v667
        %736 = vmatpush.bf16.msra.mxu0 %v665
        %737 = vmatmul.bf16.gmra.mxu0 %v507
        %v738 = vpop.f32.mrf.mxu0
        %v739 = vadd.f32 %v565, %v738
        %v740 = vpop.f32.mrf.mxu0
        %v741 = vadd.f32 %v565, %v740
        %742 = vmatmul.bf16.gmra.mxu0 %v509
        %v743 = vpop.f32.mrf.mxu0
        %v744 = vadd.f32 %v565, %v743
        %v745 = vpop.f32.mrf.mxu0
        %v746 = vadd.f32 %v565, %v745
        %747 = vmatmul.bf16.gmra.mxu0 %v511
        %v748 = vpop.f32.mrf.mxu0
        %v749 = vadd.f32 %v565, %v748
        %v750 = vpop.f32.mrf.mxu0
        %v751 = vadd.f32 %v565, %v750
        %752 = vmatmul.bf16.gmra.mxu0 %v513
        %v753 = vpop.f32.mrf.mxu0
        %v754 = vadd.f32 %v565, %v753
        %v755 = vpop.f32.mrf.mxu0
        %v756 = vadd.f32 %v565, %v755
        %757 = vmatmul.bf16.gmra.mxu0 %v515
        %v758 = vpop.f32.mrf.mxu0
        %v759 = vadd.f32 %v565, %v758
        %v760 = vpop.f32.mrf.mxu0
        %v761 = vadd.f32 %v565, %v760
        %762 = vmatmul.bf16.gmra.mxu0 %v517
        %v763 = vpop.f32.mrf.mxu0
        %v764 = vadd.f32 %v565, %v763
        %v765 = vpop.f32.mrf.mxu0
        %v766 = vadd.f32 %v565, %v765
        %767 = vmatmul.bf16.gmra.mxu0 %v519
        %v768 = vpop.f32.mrf.mxu0
        %v769 = vadd.f32 %v565, %v768
        %v770 = vpop.f32.mrf.mxu0
        %v771 = vadd.f32 %v565, %v770
        %772 = vmatmul.bf16.gmra.mxu0 %v521
        %v773 = vpop.f32.mrf.mxu0
        %v774 = vadd.f32 %v565, %v773
        %v775 = vpop.f32.mrf.mxu0
        %v776 = vadd.f32 %v565, %v775
        %777 = vmatmul.bf16.gmra.mxu0 %v523
        %v778 = vpop.f32.mrf.mxu0
        %v779 = vadd.f32 %v565, %v778
        %v780 = vpop.f32.mrf.mxu0
        %v781 = vadd.f32 %v565, %v780
        %782 = vmatmul.bf16.gmra.mxu0 %v525
        %v783 = vpop.f32.mrf.mxu0
        %v784 = vadd.f32 %v565, %v783
        %v785 = vpop.f32.mrf.mxu0
        %v786 = vadd.f32 %v565, %v785
        %787 = vmatmul.bf16.gmra.mxu0 %v527
        %v788 = vpop.f32.mrf.mxu0
        %v789 = vadd.f32 %v565, %v788
        %v790 = vpop.f32.mrf.mxu0
        %v791 = vadd.f32 %v565, %v790
        %792 = vmatmul.bf16.gmra.mxu0 %v529
        %v793 = vpop.f32.mrf.mxu0
        %v794 = vadd.f32 %v565, %v793
        %v795 = vpop.f32.mrf.mxu0
        %v796 = vadd.f32 %v565, %v795
        %797 = vdwg.mxu0
        %798 = vmatpush.bf16.msra.mxu0 %v695
        %799 = vmatpush.bf16.msra.mxu0 %v693
        %800 = vmatpush.bf16.msra.mxu0 %v691
        %801 = vmatpush.bf16.msra.mxu0 %v689
        %802 = vmatpush.bf16.msra.mxu0 %v687
        %803 = vmatpush.bf16.msra.mxu0 %v685
        %804 = vmatpush.bf16.msra.mxu0 %v683
        %805 = vmatpush.bf16.msra.mxu0 %v681
        %806 = vmatmul.bf16.gmra.mxu0 %v508
        %v807 = vpop.f32.mrf.mxu0
        %v808 = vadd.f32 %v739, %v807
        %v809 = vpop.f32.mrf.mxu0
        %v810 = vadd.f32 %v741, %v809
        %811 = vmatmul.bf16.gmra.mxu0 %v510
        %v812 = vpop.f32.mrf.mxu0
        %v813 = vadd.f32 %v744, %v812
        %v814 = vpop.f32.mrf.mxu0
        %v815 = vadd.f32 %v746, %v814
        %816 = vmatmul.bf16.gmra.mxu0 %v512
        %v817 = vpop.f32.mrf.mxu0
        %v818 = vadd.f32 %v749, %v817
        %v819 = vpop.f32.mrf.mxu0
        %v820 = vadd.f32 %v751, %v819
        %821 = vmatmul.bf16.gmra.mxu0 %v514
        %v822 = vpop.f32.mrf.mxu0
        %v823 = vadd.f32 %v754, %v822
        %v824 = vpop.f32.mrf.mxu0
        %v825 = vadd.f32 %v756, %v824
        %826 = vmatmul.bf16.gmra.mxu0 %v516
        %v827 = vpop.f32.mrf.mxu0
        %v828 = vadd.f32 %v759, %v827
        %v829 = vpop.f32.mrf.mxu0
        %v830 = vadd.f32 %v761, %v829
        %831 = vmatmul.bf16.gmra.mxu0 %v518
        %v832 = vpop.f32.mrf.mxu0
        %v833 = vadd.f32 %v764, %v832
        %v834 = vpop.f32.mrf.mxu0
        %v835 = vadd.f32 %v766, %v834
        %836 = vmatmul.bf16.gmra.mxu0 %v520
        %v837 = vpop.f32.mrf.mxu0
        %v838 = vadd.f32 %v769, %v837
        %v839 = vpop.f32.mrf.mxu0
        %v840 = vadd.f32 %v771, %v839
        %841 = vmatmul.bf16.gmra.mxu0 %v522
        %v842 = vpop.f32.mrf.mxu0
        %v843 = vadd.f32 %v774, %v842
        %v844 = vpop.f32.mrf.mxu0
        %v845 = vadd.f32 %v776, %v844
        %846 = vmatmul.bf16.gmra.mxu0 %v524
        %v847 = vpop.f32.mrf.mxu0
        %v848 = vadd.f32 %v779, %v847
        %v849 = vpop.f32.mrf.mxu0
        %v850 = vadd.f32 %v781, %v849
        %851 = vmatmul.bf16.gmra.mxu0 %v526
        %v852 = vpop.f32.mrf.mxu0
        %v853 = vadd.f32 %v784, %v852
        %v854 = vpop.f32.mrf.mxu0
        %v855 = vadd.f32 %v786, %v854
        %856 = vmatmul.bf16.gmra.mxu0 %v528
        %v857 = vpop.f32.mrf.mxu0
        %v858 = vadd.f32 %v789, %v857
        %v859 = vpop.f32.mrf.mxu0
        %v860 = vadd.f32 %v791, %v859
        %861 = vmatmul.bf16.gmra.mxu0 %v530
        %v862 = vpop.f32.mrf.mxu0
        %v863 = vadd.f32 %v794, %v862
        %v864 = vpop.f32.mrf.mxu0
        %v865 = vadd.f32 %v796, %v864
        %866 = vdwg.mxu0
        %867 = vmatpush.bf16.msra.mxu0 %v680
        %868 = vmatpush.bf16.msra.mxu0 %v678
        %869 = vmatpush.bf16.msra.mxu0 %v676
        %870 = vmatpush.bf16.msra.mxu0 %v674
        %871 = vmatpush.bf16.msra.mxu0 %v672
        %872 = vmatpush.bf16.msra.mxu0 %v670
        %873 = vmatpush.bf16.msra.mxu0 %v668
        %874 = vmatpush.bf16.msra.mxu0 %v666
        %875 = vmatmul.bf16.gmra.mxu0 %v507
        %v876 = vpop.f32.mrf.mxu0
        %v877 = vadd.f32 %v566, %v876
        %v878 = vpop.f32.mrf.mxu0
        %v879 = vadd.f32 %v566, %v878
        %880 = vmatmul.bf16.gmra.mxu0 %v509
        %v881 = vpop.f32.mrf.mxu0
        %v882 = vadd.f32 %v566, %v881
        %v883 = vpop.f32.mrf.mxu0
        %v884 = vadd.f32 %v566, %v883
        %885 = vmatmul.bf16.gmra.mxu0 %v511
        %v886 = vpop.f32.mrf.mxu0
        %v887 = vadd.f32 %v566, %v886
        %v888 = vpop.f32.mrf.mxu0
        %v889 = vadd.f32 %v566, %v888
        %890 = vmatmul.bf16.gmra.mxu0 %v513
        %v891 = vpop.f32.mrf.mxu0
        %v892 = vadd.f32 %v566, %v891
        %v893 = vpop.f32.mrf.mxu0
        %v894 = vadd.f32 %v566, %v893
        %895 = vmatmul.bf16.gmra.mxu0 %v515
        %v896 = vpop.f32.mrf.mxu0
        %v897 = vadd.f32 %v566, %v896
        %v898 = vpop.f32.mrf.mxu0
        %v899 = vadd.f32 %v566, %v898
        %900 = vmatmul.bf16.gmra.mxu0 %v517
        %v901 = vpop.f32.mrf.mxu0
        %v902 = vadd.f32 %v566, %v901
        %v903 = vpop.f32.mrf.mxu0
        %v904 = vadd.f32 %v566, %v903
        %905 = vmatmul.bf16.gmra.mxu0 %v519
        %v906 = vpop.f32.mrf.mxu0
        %v907 = vadd.f32 %v566, %v906
        %v908 = vpop.f32.mrf.mxu0
        %v909 = vadd.f32 %v566, %v908
        %910 = vmatmul.bf16.gmra.mxu0 %v521
        %v911 = vpop.f32.mrf.mxu0
        %v912 = vadd.f32 %v566, %v911
        %v913 = vpop.f32.mrf.mxu0
        %v914 = vadd.f32 %v566, %v913
        %915 = vmatmul.bf16.gmra.mxu0 %v523
        %v916 = vpop.f32.mrf.mxu0
        %v917 = vadd.f32 %v566, %v916
        %v918 = vpop.f32.mrf.mxu0
        %v919 = vadd.f32 %v566, %v918
        %920 = vmatmul.bf16.gmra.mxu0 %v525
        %v921 = vpop.f32.mrf.mxu0
        %v922 = vadd.f32 %v566, %v921
        %v923 = vpop.f32.mrf.mxu0
        %v924 = vadd.f32 %v566, %v923
        %925 = vmatmul.bf16.gmra.mxu0 %v527
        %v926 = vpop.f32.mrf.mxu0
        %v927 = vadd.f32 %v566, %v926
        %v928 = vpop.f32.mrf.mxu0
        %v929 = vadd.f32 %v566, %v928
        %930 = vmatmul.bf16.gmra.mxu0 %v529
        %v931 = vpop.f32.mrf.mxu0
        %v932 = vadd.f32 %v566, %v931
        %v933 = vpop.f32.mrf.mxu0
        %v934 = vadd.f32 %v566, %v933
        %935 = vdwg.mxu0
        %936 = vmatpush.bf16.msra.mxu0 %v696
        %937 = vmatpush.bf16.msra.mxu0 %v694
        %938 = vmatpush.bf16.msra.mxu0 %v692
        %939 = vmatpush.bf16.msra.mxu0 %v690
        %940 = vmatpush.bf16.msra.mxu0 %v688
        %941 = vmatpush.bf16.msra.mxu0 %v686
        %942 = vmatpush.bf16.msra.mxu0 %v684
        %943 = vmatpush.bf16.msra.mxu0 %v682
        %944 = vmatmul.bf16.gmra.mxu0 %v508
        %v945 = vpop.f32.mrf.mxu0
        %v946 = vadd.f32 %v877, %v945
        %v947 = vpop.f32.mrf.mxu0
        %v948 = vadd.f32 %v879, %v947
        %949 = vmatmul.bf16.gmra.mxu0 %v510
        %v950 = vpop.f32.mrf.mxu0
        %v951 = vadd.f32 %v882, %v950
        %v952 = vpop.f32.mrf.mxu0
        %v953 = vadd.f32 %v884, %v952
        %954 = vmatmul.bf16.gmra.mxu0 %v512
        %v955 = vpop.f32.mrf.mxu0
        %v956 = vadd.f32 %v887, %v955
        %v957 = vpop.f32.mrf.mxu0
        %v958 = vadd.f32 %v889, %v957
        %959 = vmatmul.bf16.gmra.mxu0 %v514
        %v960 = vpop.f32.mrf.mxu0
        %v961 = vadd.f32 %v892, %v960
        %v962 = vpop.f32.mrf.mxu0
        %v963 = vadd.f32 %v894, %v962
        %964 = vmatmul.bf16.gmra.mxu0 %v516
        %v965 = vpop.f32.mrf.mxu0
        %v966 = vadd.f32 %v897, %v965
        %v967 = vpop.f32.mrf.mxu0
        %v968 = vadd.f32 %v899, %v967
        %969 = vmatmul.bf16.gmra.mxu0 %v518
        %v970 = vpop.f32.mrf.mxu0
        %v971 = vadd.f32 %v902, %v970
        %v972 = vpop.f32.mrf.mxu0
        %v973 = vadd.f32 %v904, %v972
        %974 = vmatmul.bf16.gmra.mxu0 %v520
        %v975 = vpop.f32.mrf.mxu0
        %v976 = vadd.f32 %v907, %v975
        %v977 = vpop.f32.mrf.mxu0
        %v978 = vadd.f32 %v909, %v977
        %979 = vmatmul.bf16.gmra.mxu0 %v522
        %v980 = vpop.f32.mrf.mxu0
        %v981 = vadd.f32 %v912, %v980
        %v982 = vpop.f32.mrf.mxu0
        %v983 = vadd.f32 %v914, %v982
        %984 = vmatmul.bf16.gmra.mxu0 %v524
        %v985 = vpop.f32.mrf.mxu0
        %v986 = vadd.f32 %v917, %v985
        %v987 = vpop.f32.mrf.mxu0
        %v988 = vadd.f32 %v919, %v987
        %989 = vmatmul.bf16.gmra.mxu0 %v526
        %v990 = vpop.f32.mrf.mxu0
        %v991 = vadd.f32 %v922, %v990
        %v992 = vpop.f32.mrf.mxu0
        %v993 = vadd.f32 %v924, %v992
        %994 = vmatmul.bf16.gmra.mxu0 %v528
        %v995 = vpop.f32.mrf.mxu0
        %v996 = vadd.f32 %v927, %v995
        %v997 = vpop.f32.mrf.mxu0
        %v998 = vadd.f32 %v929, %v997
        %999 = vmatmul.bf16.gmra.mxu0 %v530
        %v1000 = vpop.f32.mrf.mxu0
        %v1001 = vadd.f32 %v932, %v1000
        %v1002 = vpop.f32.mrf.mxu0
        %v1003 = vadd.f32 %v934, %v1002
        %1004 = vdwg.mxu0
        %v1005 = vmax.f32 %v808, 0.0
        %v1006 = vmax.f32 %v946, 0.0
        %v1007 = vmax.f32 %v810, 0.0
        %v1008 = vmax.f32 %v948, 0.0
        %v1009 = vmax.f32 %v813, 0.0
        %v1010 = vmax.f32 %v951, 0.0
        %v1011 = vmax.f32 %v815, 0.0
        %v1012 = vmax.f32 %v953, 0.0
        %v1013 = vmax.f32 %v818, 0.0
        %v1014 = vmax.f32 %v956, 0.0
        %v1015 = vmax.f32 %v820, 0.0
        %v1016 = vmax.f32 %v958, 0.0
        %v1017 = vmax.f32 %v823, 0.0
        %v1018 = vmax.f32 %v961, 0.0
        %v1019 = vmax.f32 %v825, 0.0
        %v1020 = vmax.f32 %v963, 0.0
        %v1021 = vmax.f32 %v828, 0.0
        %v1022 = vmax.f32 %v966, 0.0
        %v1023 = vmax.f32 %v830, 0.0
        %v1024 = vmax.f32 %v968, 0.0
        %v1025 = vmax.f32 %v833, 0.0
        %v1026 = vmax.f32 %v971, 0.0
        %v1027 = vmax.f32 %v835, 0.0
        %v1028 = vmax.f32 %v973, 0.0
        %v1029 = vmax.f32 %v838, 0.0
        %v1030 = vmax.f32 %v976, 0.0
        %v1031 = vmax.f32 %v840, 0.0
        %v1032 = vmax.f32 %v978, 0.0
        %v1033 = vmax.f32 %v843, 0.0
        %v1034 = vmax.f32 %v981, 0.0
        %v1035 = vmax.f32 %v845, 0.0
        %v1036 = vmax.f32 %v983, 0.0
        %v1037 = vmax.f32 %v848, 0.0
        %v1038 = vmax.f32 %v986, 0.0
        %v1039 = vmax.f32 %v850, 0.0
        %v1040 = vmax.f32 %v988, 0.0
        %v1041 = vmax.f32 %v853, 0.0
        %v1042 = vmax.f32 %v991, 0.0
        %v1043 = vmax.f32 %v855, 0.0
        %v1044 = vmax.f32 %v993, 0.0
        %v1045 = vmax.f32 %v858, 0.0
        %v1046 = vmax.f32 %v996, 0.0
        %v1047 = vmax.f32 %v860, 0.0
        %v1048 = vmax.f32 %v998, 0.0
        %v1049 = vmax.f32 %v863, 0.0
        %v1050 = vmax.f32 %v1001, 0.0
        %v1051 = vmax.f32 %v865, 0.0
        %v1052 = vmax.f32 %v1003, 0.0
        %v1053 = vpack.c.bf16 %v1007, %v1005
        %v1054 = vpack.c.bf16 %v1008, %v1006
        %v1055 = vpack.c.bf16 %v1011, %v1009
        %v1056 = vpack.c.bf16 %v1012, %v1010
        %v1057 = vpack.c.bf16 %v1015, %v1013
        %v1058 = vpack.c.bf16 %v1016, %v1014
        %v1059 = vpack.c.bf16 %v1019, %v1017
        %v1060 = vpack.c.bf16 %v1020, %v1018
        %v1061 = vpack.c.bf16 %v1023, %v1021
        %v1062 = vpack.c.bf16 %v1024, %v1022
        %v1063 = vpack.c.bf16 %v1027, %v1025
        %v1064 = vpack.c.bf16 %v1028, %v1026
        %v1065 = vpack.c.bf16 %v1031, %v1029
        %v1066 = vpack.c.bf16 %v1032, %v1030
        %v1067 = vpack.c.bf16 %v1035, %v1033
        %v1068 = vpack.c.bf16 %v1036, %v1034
        %v1069 = vpack.c.bf16 %v1039, %v1037
        %v1070 = vpack.c.bf16 %v1040, %v1038
        %v1071 = vpack.c.bf16 %v1043, %v1041
        %v1072 = vpack.c.bf16 %v1044, %v1042
        %v1073 = vpack.c.bf16 %v1047, %v1045
        %v1074 = vpack.c.bf16 %v1048, %v1046
        %v1075 = vpack.c.bf16 %v1051, %v1049
        %v1076 = vpack.c.bf16 %v1052, %v1050
        %v1077 = vld [vmem:[#allocation8] sm:$0xf]
        %v1078 = vld [vmem:[#allocation8 + $0x4] sm:$0xf]
        %v1079 = vld [vmem:[#allocation8 + $0x8] sm:$0xf]
        %v1080 = vld [vmem:[#allocation8 + $0xc] sm:$0xf]
        %v1081 = vld [vmem:[#allocation8 + $0x10] sm:$0xf]
        %v1082 = vld [vmem:[#allocation8 + $0x14] sm:$0xf]
        %v1083 = vld [vmem:[#allocation8 + $0x18] sm:$0xf]
        %v1084 = vld [vmem:[#allocation8 + $0x1c] sm:$0xf]
        %v1085 = vld [vmem:[#allocation8 + $0x20] sm:$0xf]
        %v1086 = vld [vmem:[#allocation8 + $0x24] sm:$0xf]
        %v1087 = vld [vmem:[#allocation8 + $0x28] sm:$0xf]
        %v1088 = vld [vmem:[#allocation8 + $0x2c] sm:$0xf]
        %v1089 = vld [vmem:[#allocation8 + $0x30] sm:$0xf]
        %v1090 = vld [vmem:[#allocation8 + $0x34] sm:$0xf]
        %v1091 = vld [vmem:[#allocation8 + $0x38] sm:$0xf]
        %v1092 = vld [vmem:[#allocation8 + $0x3c] sm:$0xf]
        %v1093 = vld [vmem:[#allocation8 + $0x40] sm:$0xf]
        %v1094 = vld [vmem:[#allocation8 + $0x44] sm:$0xf]
        %v1095 = vld [vmem:[#allocation8 + $0x48] sm:$0xf]
        %v1096 = vld [vmem:[#allocation8 + $0x4c] sm:$0xf]
        %v1097 = vld [vmem:[#allocation8 + $0x50] sm:$0xf]
        %v1098 = vld [vmem:[#allocation8 + $0x54] sm:$0xf]
        %v1099 = vld [vmem:[#allocation8 + $0x58] sm:$0xf]
        %v1100 = vld [vmem:[#allocation8 + $0x5c] sm:$0xf]
        %v1101 = vld [vmem:[#allocation8 + $0x60] sm:$0xf]
        %v1102 = vld [vmem:[#allocation8 + $0x64] sm:$0xf]
        %v1103 = vld [vmem:[#allocation8 + $0x68] sm:$0xf]
        %v1104 = vld [vmem:[#allocation8 + $0x6c] sm:$0xf]
        %v1105 = vld [vmem:[#allocation8 + $0x70] sm:$0xf]
        %v1106 = vld [vmem:[#allocation8 + $0x74] sm:$0xf]
        %v1107 = vld [vmem:[#allocation8 + $0x78] sm:$0xf]
        %v1108 = vld [vmem:[#allocation8 + $0x7c] sm:$0xf]
        %v1109 = vld [vmem:[#allocation10] sm:$0xf]
        %v1110 = vld [vmem:[#allocation10 + $0x4] sm:$0xf]
        %v1111 = vld [vmem:[#allocation10 + $0x8] sm:$0xf]
        %v1112 = vld [vmem:[#allocation10 + $0xc] sm:$0xf]
        %v1113 = vld [vmem:[#allocation10 + $0x10] sm:$0xf]
        %v1114 = vld [vmem:[#allocation10 + $0x14] sm:$0xf]
        %v1115 = vld [vmem:[#allocation10 + $0x18] sm:$0xf]
        %v1116 = vld [vmem:[#allocation10 + $0x1c] sm:$0xf]
        %v1117 = vld [vmem:[#allocation10 + $0x20] sm:$0xf]
        %v1118 = vld [vmem:[#allocation10 + $0x24] sm:$0xf]
        %v1119 = vld [vmem:[#allocation10 + $0x28] sm:$0xf]
        %v1120 = vld [vmem:[#allocation10 + $0x2c] sm:$0xf]
        %v1121 = vld [vmem:[#allocation10 + $0x30] sm:$0xf]
        %v1122 = vld [vmem:[#allocation10 + $0x34] sm:$0xf]
        %v1123 = vld [vmem:[#allocation10 + $0x38] sm:$0xf]
        %v1124 = vld [vmem:[#allocation10 + $0x3c] sm:$0xf]
        %v1125 = vld [vmem:[#allocation10 + $0x40] sm:$0xf]
        %v1126 = vld [vmem:[#allocation10 + $0x44] sm:$0xf]
        %v1127 = vld [vmem:[#allocation10 + $0x48] sm:$0xf]
        %v1128 = vld [vmem:[#allocation10 + $0x4c] sm:$0xf]
        %v1129 = vld [vmem:[#allocation10 + $0x50] sm:$0xf]
        %v1130 = vld [vmem:[#allocation10 + $0x54] sm:$0xf]
        %v1131 = vld [vmem:[#allocation10 + $0x58] sm:$0xf]
        %v1132 = vld [vmem:[#allocation10 + $0x5c] sm:$0xf]
        %v1133 = vld [vmem:[#allocation10 + $0x60] sm:$0xf]
        %v1134 = vld [vmem:[#allocation10 + $0x64] sm:$0xf]
        %v1135 = vld [vmem:[#allocation10 + $0x68] sm:$0xf]
        %v1136 = vld [vmem:[#allocation10 + $0x6c] sm:$0xf]
        %v1137 = vld [vmem:[#allocation10 + $0x70] sm:$0xf]
        %v1138 = vld [vmem:[#allocation10 + $0x74] sm:$0xf]
        %v1139 = vld [vmem:[#allocation10 + $0x78] sm:$0xf]
        %v1140 = vld [vmem:[#allocation10 + $0x7c] sm:$0xf]
        %v1165 = vunpack.c.l.b16 %v387
        %v1166 = vunpack.c.h.b16 %v387
        %v1167 = vunpack.c.l.b16 %v388
        %v1168 = vunpack.c.h.b16 %v388
        %v1169 = vunpack.c.l.b16 %v389
        %v1170 = vunpack.c.h.b16 %v389
        %v1171 = vunpack.c.l.b16 %v390
        %v1172 = vunpack.c.h.b16 %v390
        %v1173 = vunpack.c.l.b16 %v391
        %v1174 = vunpack.c.h.b16 %v391
        %v1175 = vunpack.c.l.b16 %v392
        %v1176 = vunpack.c.h.b16 %v392
        %v1177 = vunpack.c.l.b16 %v393
        %v1178 = vunpack.c.h.b16 %v393
        %v1179 = vunpack.c.l.b16 %v394
        %v1180 = vunpack.c.h.b16 %v394
        %v1181 = vunpack.c.l.b16 %v395
        %v1182 = vunpack.c.h.b16 %v395
        %v1183 = vunpack.c.l.b16 %v396
        %v1184 = vunpack.c.h.b16 %v396
        %v1185 = vunpack.c.l.b16 %v397
        %v1186 = vunpack.c.h.b16 %v397
        %v1187 = vunpack.c.l.b16 %v398
        %v1188 = vunpack.c.h.b16 %v398
        %v1189 = vunpack.c.l.b16 %v399
        %v1190 = vunpack.c.h.b16 %v399
        %v1191 = vunpack.c.l.b16 %v400
        %v1192 = vunpack.c.h.b16 %v400
        %v1193 = vunpack.c.l.b16 %v401
        %v1194 = vunpack.c.h.b16 %v401
        %v1195 = vunpack.c.l.b16 %v402
        %v1196 = vunpack.c.h.b16 %v402
        %v1197 = vunpack.c.l.b16 %v403
        %v1198 = vunpack.c.h.b16 %v403
        %v1199 = vunpack.c.l.b16 %v404
        %v1200 = vunpack.c.h.b16 %v404
        %v1201 = vunpack.c.l.b16 %v405
        %v1202 = vunpack.c.h.b16 %v405
        %v1203 = vunpack.c.l.b16 %v406
        %v1204 = vunpack.c.h.b16 %v406
        %v1205 = vunpack.c.l.b16 %v407
        %v1206 = vunpack.c.h.b16 %v407
        %v1207 = vunpack.c.l.b16 %v408
        %v1208 = vunpack.c.h.b16 %v408
        %v1209 = vunpack.c.l.b16 %v409
        %v1210 = vunpack.c.h.b16 %v409
        %v1211 = vunpack.c.l.b16 %v410
        %v1212 = vunpack.c.h.b16 %v410
        %v1213 = vpack.c.b16 %v1167, %v1165
        %v1214 = vpack.c.b16 %v1168, %v1166
        %v1215 = vpack.c.b16 %v1171, %v1169
        %v1216 = vpack.c.b16 %v1172, %v1170
        %v1217 = vpack.c.b16 %v1175, %v1173
        %v1218 = vpack.c.b16 %v1176, %v1174
        %v1219 = vpack.c.b16 %v1179, %v1177
        %v1220 = vpack.c.b16 %v1180, %v1178
        %v1221 = vpack.c.b16 %v1183, %v1181
        %v1222 = vpack.c.b16 %v1184, %v1182
        %v1223 = vpack.c.b16 %v1187, %v1185
        %v1224 = vpack.c.b16 %v1188, %v1186
        %v1225 = vpack.c.b16 %v1191, %v1189
        %v1226 = vpack.c.b16 %v1192, %v1190
        %v1227 = vpack.c.b16 %v1195, %v1193
        %v1228 = vpack.c.b16 %v1196, %v1194
        %v1229 = vpack.c.b16 %v1199, %v1197
        %v1230 = vpack.c.b16 %v1200, %v1198
        %v1231 = vpack.c.b16 %v1203, %v1201
        %v1232 = vpack.c.b16 %v1204, %v1202
        %v1233 = vpack.c.b16 %v1207, %v1205
        %v1234 = vpack.c.b16 %v1208, %v1206
        %v1235 = vpack.c.b16 %v1211, %v1209
        %v1236 = vpack.c.b16 %v1212, %v1210
        %v1293 = vunpack.c.l.b16 %v1109
        %v1294 = vunpack.c.l.b16 %v1110
        %v1295 = vunpack.c.l.b16 %v1111
        %v1296 = vunpack.c.l.b16 %v1112
        %v1297 = vunpack.c.l.b16 %v1113
        %v1298 = vunpack.c.l.b16 %v1114
        %v1299 = vunpack.c.l.b16 %v1115
        %v1300 = vunpack.c.l.b16 %v1116
        %v1301 = vunpack.c.l.b16 %v1117
        %v1302 = vunpack.c.l.b16 %v1118
        %v1303 = vunpack.c.l.b16 %v1119
        %v1304 = vunpack.c.l.b16 %v1120
        %v1305 = vunpack.c.l.b16 %v1121
        %v1306 = vunpack.c.l.b16 %v1122
        %v1307 = vunpack.c.l.b16 %v1123
        %v1308 = vunpack.c.l.b16 %v1124
        %v1309 = vunpack.c.l.b16 %v1125
        %v1310 = vunpack.c.l.b16 %v1126
        %v1311 = vunpack.c.l.b16 %v1127
        %v1312 = vunpack.c.l.b16 %v1128
        %v1313 = vunpack.c.l.b16 %v1129
        %v1314 = vunpack.c.l.b16 %v1130
        %v1315 = vunpack.c.l.b16 %v1131
        %v1316 = vunpack.c.l.b16 %v1132
        %v1317 = vunpack.c.l.b16 %v1133
        %v1318 = vunpack.c.l.b16 %v1134
        %v1319 = vunpack.c.l.b16 %v1135
        %v1320 = vunpack.c.l.b16 %v1136
        %v1321 = vunpack.c.l.b16 %v1137
        %v1322 = vunpack.c.l.b16 %v1138
        %v1323 = vunpack.c.l.b16 %v1139
        %v1324 = vunpack.c.l.b16 %v1140
        %v1325 = vpack.c.b16 %v1294, %v1293
        %v1326 = vpack.c.b16 %v1296, %v1295
        %v1327 = vpack.c.b16 %v1298, %v1297
        %v1328 = vpack.c.b16 %v1300, %v1299
        %v1329 = vpack.c.b16 %v1302, %v1301
        %v1330 = vpack.c.b16 %v1304, %v1303
        %v1331 = vpack.c.b16 %v1306, %v1305
        %v1332 = vpack.c.b16 %v1308, %v1307
        %v1333 = vpack.c.b16 %v1310, %v1309
        %v1334 = vpack.c.b16 %v1312, %v1311
        %v1335 = vpack.c.b16 %v1314, %v1313
        %v1336 = vpack.c.b16 %v1316, %v1315
        %v1337 = vpack.c.b16 %v1318, %v1317
        %v1338 = vpack.c.b16 %v1320, %v1319
        %v1339 = vpack.c.b16 %v1322, %v1321
        %v1340 = vpack.c.b16 %v1324, %v1323
        %1357 = vmatpush.bf16.msra.mxu0 %v1332
        %1358 = vmatpush.bf16.msra.mxu0 %v1331
        %1359 = vmatpush.bf16.msra.mxu0 %v1330
        %1360 = vmatpush.bf16.msra.mxu0 %v1329
        %1361 = vmatpush.bf16.msra.mxu0 %v1328
        %1362 = vmatpush.bf16.msra.mxu0 %v1327
        %1363 = vmatpush.bf16.msra.mxu0 %v1326
        %1364 = vmatpush.bf16.msra.mxu0 %v1325
        %1365 = vmatmul.bf16.gmra.mxu0 %v1213
        %v1366 = vpop.f32.mrf.mxu0
        %v1367 = vadd.f32 0.0, %v1366
        %v1368 = vpop.f32.mrf.mxu0
        %v1369 = vadd.f32 0.0, %v1368
        %1370 = vmatmul.bf16.gmra.mxu0 %v1215
        %v1371 = vpop.f32.mrf.mxu0
        %v1372 = vadd.f32 0.0, %v1371
        %v1373 = vpop.f32.mrf.mxu0
        %v1374 = vadd.f32 0.0, %v1373
        %1375 = vmatmul.bf16.gmra.mxu0 %v1217
        %v1376 = vpop.f32.mrf.mxu0
        %v1377 = vadd.f32 0.0, %v1376
        %v1378 = vpop.f32.mrf.mxu0
        %v1379 = vadd.f32 0.0, %v1378
        %1380 = vmatmul.bf16.gmra.mxu0 %v1219
        %v1381 = vpop.f32.mrf.mxu0
        %v1382 = vadd.f32 0.0, %v1381
        %v1383 = vpop.f32.mrf.mxu0
        %v1384 = vadd.f32 0.0, %v1383
        %1385 = vmatmul.bf16.gmra.mxu0 %v1221
        %v1386 = vpop.f32.mrf.mxu0
        %v1387 = vadd.f32 0.0, %v1386
        %v1388 = vpop.f32.mrf.mxu0
        %v1389 = vadd.f32 0.0, %v1388
        %1390 = vmatmul.bf16.gmra.mxu0 %v1223
        %v1391 = vpop.f32.mrf.mxu0
        %v1392 = vadd.f32 0.0, %v1391
        %v1393 = vpop.f32.mrf.mxu0
        %v1394 = vadd.f32 0.0, %v1393
        %1395 = vmatmul.bf16.gmra.mxu0 %v1225
        %v1396 = vpop.f32.mrf.mxu0
        %v1397 = vadd.f32 0.0, %v1396
        %v1398 = vpop.f32.mrf.mxu0
        %v1399 = vadd.f32 0.0, %v1398
        %1400 = vmatmul.bf16.gmra.mxu0 %v1227
        %v1401 = vpop.f32.mrf.mxu0
        %v1402 = vadd.f32 0.0, %v1401
        %v1403 = vpop.f32.mrf.mxu0
        %v1404 = vadd.f32 0.0, %v1403
        %1405 = vmatmul.bf16.gmra.mxu0 %v1229
        %v1406 = vpop.f32.mrf.mxu0
        %v1407 = vadd.f32 0.0, %v1406
        %v1408 = vpop.f32.mrf.mxu0
        %v1409 = vadd.f32 0.0, %v1408
        %1410 = vmatmul.bf16.gmra.mxu0 %v1231
        %v1411 = vpop.f32.mrf.mxu0
        %v1412 = vadd.f32 0.0, %v1411
        %v1413 = vpop.f32.mrf.mxu0
        %v1414 = vadd.f32 0.0, %v1413
        %1415 = vmatmul.bf16.gmra.mxu0 %v1233
        %v1416 = vpop.f32.mrf.mxu0
        %v1417 = vadd.f32 0.0, %v1416
        %v1418 = vpop.f32.mrf.mxu0
        %v1419 = vadd.f32 0.0, %v1418
        %1420 = vmatmul.bf16.gmra.mxu0 %v1235
        %v1421 = vpop.f32.mrf.mxu0
        %v1422 = vadd.f32 0.0, %v1421
        %v1423 = vpop.f32.mrf.mxu0
        %v1424 = vadd.f32 0.0, %v1423
        %1425 = vdwg.mxu0
        %1426 = vmatpush.bf16.msra.mxu0 %v1340
        %1427 = vmatpush.bf16.msra.mxu0 %v1339
        %1428 = vmatpush.bf16.msra.mxu0 %v1338
        %1429 = vmatpush.bf16.msra.mxu0 %v1337
        %1430 = vmatpush.bf16.msra.mxu0 %v1336
        %1431 = vmatpush.bf16.msra.mxu0 %v1335
        %1432 = vmatpush.bf16.msra.mxu0 %v1334
        %1433 = vmatpush.bf16.msra.mxu0 %v1333
        %1434 = vmatmul.bf16.gmra.mxu0 %v1214
        %v1435 = vpop.f32.mrf.mxu0
        %v1436 = vadd.f32 %v1367, %v1435
        %v1437 = vpop.f32.mrf.mxu0
        %v1438 = vadd.f32 %v1369, %v1437
        %1439 = vmatmul.bf16.gmra.mxu0 %v1216
        %v1440 = vpop.f32.mrf.mxu0
        %v1441 = vadd.f32 %v1372, %v1440
        %v1442 = vpop.f32.mrf.mxu0
        %v1443 = vadd.f32 %v1374, %v1442
        %1444 = vmatmul.bf16.gmra.mxu0 %v1218
        %v1445 = vpop.f32.mrf.mxu0
        %v1446 = vadd.f32 %v1377, %v1445
        %v1447 = vpop.f32.mrf.mxu0
        %v1448 = vadd.f32 %v1379, %v1447
        %1449 = vmatmul.bf16.gmra.mxu0 %v1220
        %v1450 = vpop.f32.mrf.mxu0
        %v1451 = vadd.f32 %v1382, %v1450
        %v1452 = vpop.f32.mrf.mxu0
        %v1453 = vadd.f32 %v1384, %v1452
        %1454 = vmatmul.bf16.gmra.mxu0 %v1222
        %v1455 = vpop.f32.mrf.mxu0
        %v1456 = vadd.f32 %v1387, %v1455
        %v1457 = vpop.f32.mrf.mxu0
        %v1458 = vadd.f32 %v1389, %v1457
        %1459 = vmatmul.bf16.gmra.mxu0 %v1224
        %v1460 = vpop.f32.mrf.mxu0
        %v1461 = vadd.f32 %v1392, %v1460
        %v1462 = vpop.f32.mrf.mxu0
        %v1463 = vadd.f32 %v1394, %v1462
        %1464 = vmatmul.bf16.gmra.mxu0 %v1226
        %v1465 = vpop.f32.mrf.mxu0
        %v1466 = vadd.f32 %v1397, %v1465
        %v1467 = vpop.f32.mrf.mxu0
        %v1468 = vadd.f32 %v1399, %v1467
        %1469 = vmatmul.bf16.gmra.mxu0 %v1228
        %v1470 = vpop.f32.mrf.mxu0
        %v1471 = vadd.f32 %v1402, %v1470
        %v1472 = vpop.f32.mrf.mxu0
        %v1473 = vadd.f32 %v1404, %v1472
        %1474 = vmatmul.bf16.gmra.mxu0 %v1230
        %v1475 = vpop.f32.mrf.mxu0
        %v1476 = vadd.f32 %v1407, %v1475
        %v1477 = vpop.f32.mrf.mxu0
        %v1478 = vadd.f32 %v1409, %v1477
        %1479 = vmatmul.bf16.gmra.mxu0 %v1232
        %v1480 = vpop.f32.mrf.mxu0
        %v1481 = vadd.f32 %v1412, %v1480
        %v1482 = vpop.f32.mrf.mxu0
        %v1483 = vadd.f32 %v1414, %v1482
        %1484 = vmatmul.bf16.gmra.mxu0 %v1234
        %v1485 = vpop.f32.mrf.mxu0
        %v1486 = vadd.f32 %v1417, %v1485
        %v1487 = vpop.f32.mrf.mxu0
        %v1488 = vadd.f32 %v1419, %v1487
        %1489 = vmatmul.bf16.gmra.mxu0 %v1236
        %v1490 = vpop.f32.mrf.mxu0
        %v1491 = vadd.f32 %v1422, %v1490
        %v1492 = vpop.f32.mrf.mxu0
        %v1493 = vadd.f32 %v1424, %v1492
        %1494 = vdwg.mxu0
        %v1527 = vunpack.c.l.b16 %v1077
        %v1528 = vunpack.c.l.b16 %v1078
        %v1529 = vunpack.c.l.b16 %v1079
        %v1530 = vunpack.c.l.b16 %v1080
        %v1531 = vunpack.c.l.b16 %v1081
        %v1532 = vunpack.c.l.b16 %v1082
        %v1533 = vunpack.c.l.b16 %v1083
        %v1534 = vunpack.c.l.b16 %v1084
        %v1535 = vunpack.c.l.b16 %v1085
        %v1536 = vunpack.c.l.b16 %v1086
        %v1537 = vunpack.c.l.b16 %v1087
        %v1538 = vunpack.c.l.b16 %v1088
        %v1539 = vunpack.c.l.b16 %v1089
        %v1540 = vunpack.c.l.b16 %v1090
        %v1541 = vunpack.c.l.b16 %v1091
        %v1542 = vunpack.c.l.b16 %v1092
        %v1543 = vunpack.c.l.b16 %v1093
        %v1544 = vunpack.c.l.b16 %v1094
        %v1545 = vunpack.c.l.b16 %v1095
        %v1546 = vunpack.c.l.b16 %v1096
        %v1547 = vunpack.c.l.b16 %v1097
        %v1548 = vunpack.c.l.b16 %v1098
        %v1549 = vunpack.c.l.b16 %v1099
        %v1550 = vunpack.c.l.b16 %v1100
        %v1551 = vunpack.c.l.b16 %v1101
        %v1552 = vunpack.c.l.b16 %v1102
        %v1553 = vunpack.c.l.b16 %v1103
        %v1554 = vunpack.c.l.b16 %v1104
        %v1555 = vunpack.c.l.b16 %v1105
        %v1556 = vunpack.c.l.b16 %v1106
        %v1557 = vunpack.c.l.b16 %v1107
        %v1558 = vunpack.c.l.b16 %v1108
        %v1559 = vpack.c.b16 %v1528, %v1527
        %v1560 = vpack.c.b16 %v1530, %v1529
        %v1561 = vpack.c.b16 %v1532, %v1531
        %v1562 = vpack.c.b16 %v1534, %v1533
        %v1563 = vpack.c.b16 %v1536, %v1535
        %v1564 = vpack.c.b16 %v1538, %v1537
        %v1565 = vpack.c.b16 %v1540, %v1539
        %v1566 = vpack.c.b16 %v1542, %v1541
        %v1567 = vpack.c.b16 %v1544, %v1543
        %v1568 = vpack.c.b16 %v1546, %v1545
        %v1569 = vpack.c.b16 %v1548, %v1547
        %v1570 = vpack.c.b16 %v1550, %v1549
        %v1571 = vpack.c.b16 %v1552, %v1551
        %v1572 = vpack.c.b16 %v1554, %v1553
        %v1573 = vpack.c.b16 %v1556, %v1555
        %v1574 = vpack.c.b16 %v1558, %v1557
        %1591 = vmatpush.bf16.msra.mxu0 %v1566
        %1592 = vmatpush.bf16.msra.mxu0 %v1565
        %1593 = vmatpush.bf16.msra.mxu0 %v1564
        %1594 = vmatpush.bf16.msra.mxu0 %v1563
        %1595 = vmatpush.bf16.msra.mxu0 %v1562
        %1596 = vmatpush.bf16.msra.mxu0 %v1561
        %1597 = vmatpush.bf16.msra.mxu0 %v1560
        %1598 = vmatpush.bf16.msra.mxu0 %v1559
        %1599 = vmatmul.bf16.gmra.mxu0 %v1053
        %v1600 = vpop.f32.mrf.mxu0
        %v1601 = vadd.f32 %v1436, %v1600
        %v1602 = vpop.f32.mrf.mxu0
        %v1603 = vadd.f32 %v1438, %v1602
        %1604 = vmatmul.bf16.gmra.mxu0 %v1055
        %v1605 = vpop.f32.mrf.mxu0
        %v1606 = vadd.f32 %v1441, %v1605
        %v1607 = vpop.f32.mrf.mxu0
        %v1608 = vadd.f32 %v1443, %v1607
        %1609 = vmatmul.bf16.gmra.mxu0 %v1057
        %v1610 = vpop.f32.mrf.mxu0
        %v1611 = vadd.f32 %v1446, %v1610
        %v1612 = vpop.f32.mrf.mxu0
        %v1613 = vadd.f32 %v1448, %v1612
        %1614 = vmatmul.bf16.gmra.mxu0 %v1059
        %v1615 = vpop.f32.mrf.mxu0
        %v1616 = vadd.f32 %v1451, %v1615
        %v1617 = vpop.f32.mrf.mxu0
        %v1618 = vadd.f32 %v1453, %v1617
        %1619 = vmatmul.bf16.gmra.mxu0 %v1061
        %v1620 = vpop.f32.mrf.mxu0
        %v1621 = vadd.f32 %v1456, %v1620
        %v1622 = vpop.f32.mrf.mxu0
        %v1623 = vadd.f32 %v1458, %v1622
        %1624 = vmatmul.bf16.gmra.mxu0 %v1063
        %v1625 = vpop.f32.mrf.mxu0
        %v1626 = vadd.f32 %v1461, %v1625
        %v1627 = vpop.f32.mrf.mxu0
        %v1628 = vadd.f32 %v1463, %v1627
        %1629 = vmatmul.bf16.gmra.mxu0 %v1065
        %v1630 = vpop.f32.mrf.mxu0
        %v1631 = vadd.f32 %v1466, %v1630
        %v1632 = vpop.f32.mrf.mxu0
        %v1633 = vadd.f32 %v1468, %v1632
        %1634 = vmatmul.bf16.gmra.mxu0 %v1067
        %v1635 = vpop.f32.mrf.mxu0
        %v1636 = vadd.f32 %v1471, %v1635
        %v1637 = vpop.f32.mrf.mxu0
        %v1638 = vadd.f32 %v1473, %v1637
        %1639 = vmatmul.bf16.gmra.mxu0 %v1069
        %v1640 = vpop.f32.mrf.mxu0
        %v1641 = vadd.f32 %v1476, %v1640
        %v1642 = vpop.f32.mrf.mxu0
        %v1643 = vadd.f32 %v1478, %v1642
        %1644 = vmatmul.bf16.gmra.mxu0 %v1071
        %v1645 = vpop.f32.mrf.mxu0
        %v1646 = vadd.f32 %v1481, %v1645
        %v1647 = vpop.f32.mrf.mxu0
        %v1648 = vadd.f32 %v1483, %v1647
        %1649 = vmatmul.bf16.gmra.mxu0 %v1073
        %v1650 = vpop.f32.mrf.mxu0
        %v1651 = vadd.f32 %v1486, %v1650
        %v1652 = vpop.f32.mrf.mxu0
        %v1653 = vadd.f32 %v1488, %v1652
        %1654 = vmatmul.bf16.gmra.mxu0 %v1075
        %v1655 = vpop.f32.mrf.mxu0
        %v1656 = vadd.f32 %v1491, %v1655
        %v1657 = vpop.f32.mrf.mxu0
        %v1658 = vadd.f32 %v1493, %v1657
        %1659 = vdwg.mxu0
        %1660 = vmatpush.bf16.msra.mxu0 %v1574
        %1661 = vmatpush.bf16.msra.mxu0 %v1573
        %1662 = vmatpush.bf16.msra.mxu0 %v1572
        %1663 = vmatpush.bf16.msra.mxu0 %v1571
        %1664 = vmatpush.bf16.msra.mxu0 %v1570
        %1665 = vmatpush.bf16.msra.mxu0 %v1569
        %1666 = vmatpush.bf16.msra.mxu0 %v1568
        %1667 = vmatpush.bf16.msra.mxu0 %v1567
        %1668 = vmatmul.bf16.gmra.mxu0 %v1054
        %v1669 = vpop.f32.mrf.mxu0
        %v1670 = vadd.f32 %v1601, %v1669
        %v1671 = vpop.f32.mrf.mxu0
        %v1672 = vadd.f32 %v1603, %v1671
        %1673 = vmatmul.bf16.gmra.mxu0 %v1056
        %v1674 = vpop.f32.mrf.mxu0
        %v1675 = vadd.f32 %v1606, %v1674
        %v1676 = vpop.f32.mrf.mxu0
        %v1677 = vadd.f32 %v1608, %v1676
        %1678 = vmatmul.bf16.gmra.mxu0 %v1058
        %v1679 = vpop.f32.mrf.mxu0
        %v1680 = vadd.f32 %v1611, %v1679
        %v1681 = vpop.f32.mrf.mxu0
        %v1682 = vadd.f32 %v1613, %v1681
        %1683 = vmatmul.bf16.gmra.mxu0 %v1060
        %v1684 = vpop.f32.mrf.mxu0
        %v1685 = vadd.f32 %v1616, %v1684
        %v1686 = vpop.f32.mrf.mxu0
        %v1687 = vadd.f32 %v1618, %v1686
        %1688 = vmatmul.bf16.gmra.mxu0 %v1062
        %v1689 = vpop.f32.mrf.mxu0
        %v1690 = vadd.f32 %v1621, %v1689
        %v1691 = vpop.f32.mrf.mxu0
        %v1692 = vadd.f32 %v1623, %v1691
        %1693 = vmatmul.bf16.gmra.mxu0 %v1064
        %v1694 = vpop.f32.mrf.mxu0
        %v1695 = vadd.f32 %v1626, %v1694
        %v1696 = vpop.f32.mrf.mxu0
        %v1697 = vadd.f32 %v1628, %v1696
        %1698 = vmatmul.bf16.gmra.mxu0 %v1066
        %v1699 = vpop.f32.mrf.mxu0
        %v1700 = vadd.f32 %v1631, %v1699
        %v1701 = vpop.f32.mrf.mxu0
        %v1702 = vadd.f32 %v1633, %v1701
        %1703 = vmatmul.bf16.gmra.mxu0 %v1068
        %v1704 = vpop.f32.mrf.mxu0
        %v1705 = vadd.f32 %v1636, %v1704
        %v1706 = vpop.f32.mrf.mxu0
        %v1707 = vadd.f32 %v1638, %v1706
        %1708 = vmatmul.bf16.gmra.mxu0 %v1070
        %v1709 = vpop.f32.mrf.mxu0
        %v1710 = vadd.f32 %v1641, %v1709
        %v1711 = vpop.f32.mrf.mxu0
        %v1712 = vadd.f32 %v1643, %v1711
        %1713 = vmatmul.bf16.gmra.mxu0 %v1072
        %v1714 = vpop.f32.mrf.mxu0
        %v1715 = vadd.f32 %v1646, %v1714
        %v1716 = vpop.f32.mrf.mxu0
        %v1717 = vadd.f32 %v1648, %v1716
        %1718 = vmatmul.bf16.gmra.mxu0 %v1074
        %v1719 = vpop.f32.mrf.mxu0
        %v1720 = vadd.f32 %v1651, %v1719
        %v1721 = vpop.f32.mrf.mxu0
        %v1722 = vadd.f32 %v1653, %v1721
        %1723 = vmatmul.bf16.gmra.mxu0 %v1076
        %v1724 = vpop.f32.mrf.mxu0
        %v1725 = vadd.f32 %v1656, %v1724
        %v1726 = vpop.f32.mrf.mxu0
        %v1727 = vadd.f32 %v1658, %v1726
        %1728 = vdwg.mxu0
        %v1729 = vld [vmem:[%s5] sm:$0x1]
        %v1731 = vperm.slane %v1729, 0
        %v1733 = vadd.f32 %v1670, %v1731
        %v1734 = vadd.f32 %v1672, %v1731
        %v1735 = vadd.f32 %v1675, %v1731
        %v1736 = vadd.f32 %v1677, %v1731
        %v1737 = vadd.f32 %v1680, %v1731
        %v1738 = vadd.f32 %v1682, %v1731
        %v1739 = vadd.f32 %v1685, %v1731
        %v1740 = vadd.f32 %v1687, %v1731
        %v1741 = vadd.f32 %v1690, %v1731
        %v1742 = vadd.f32 %v1692, %v1731
        %v1743 = vadd.f32 %v1695, %v1731
        %v1744 = vadd.f32 %v1697, %v1731
        %v1745 = vadd.f32 %v1700, %v1731
        %v1746 = vadd.f32 %v1702, %v1731
        %v1747 = vadd.f32 %v1705, %v1731
        %v1748 = vadd.f32 %v1707, %v1731
        %v1749 = vadd.f32 %v1710, %v1731
        %v1750 = vadd.f32 %v1712, %v1731
        %v1751 = vadd.f32 %v1715, %v1731
        %v1752 = vadd.f32 %v1717, %v1731
        %v1753 = vadd.f32 %v1720, %v1731
        %v1754 = vadd.f32 %v1722, %v1731
        %v1755 = vadd.f32 %v1725, %v1731
        %v1756 = vadd.f32 %v1727, %v1731
        %1757 = vst [vmem:[%s336] sm:$0xff] %v1733
        %1758 = vst [vmem:[%s336 + $0x8] sm:$0xff] %v1734
        %1759 = vst [vmem:[%s336 + $0x10] sm:$0xff] %v1735
        %1760 = vst [vmem:[%s336 + $0x18] sm:$0xff] %v1736
        %1761 = vst [vmem:[%s336 + $0x20] sm:$0xff] %v1737
        %1762 = vst [vmem:[%s336 + $0x28] sm:$0xff] %v1738
        %1763 = vst [vmem:[%s336 + $0x30] sm:$0xff] %v1739
        %1764 = vst [vmem:[%s336 + $0x38] sm:$0xff] %v1740
        %1765 = vst [vmem:[%s336 + $0x40] sm:$0xff] %v1741
        %1766 = vst [vmem:[%s336 + $0x48] sm:$0xff] %v1742
        %1767 = vst [vmem:[%s336 + $0x50] sm:$0xff] %v1743
        %1768 = vst [vmem:[%s336 + $0x58] sm:$0xff] %v1744
        %1769 = vst [vmem:[%s336 + $0x60] sm:$0xff] %v1745
        %1770 = vst [vmem:[%s336 + $0x68] sm:$0xff] %v1746
        %1771 = vst [vmem:[%s336 + $0x70] sm:$0xff] %v1747
        %1772 = vst [vmem:[%s336 + $0x78] sm:$0xff] %v1748
        %1773 = vst [vmem:[%s336 + $0x80] sm:$0xff] %v1749
        %1774 = vst [vmem:[%s336 + $0x88] sm:$0xff] %v1750
        %1775 = vst [vmem:[%s336 + $0x90] sm:$0xff] %v1751
        %1776 = vst [vmem:[%s336 + $0x98] sm:$0xff] %v1752
        %1777 = vst [vmem:[%s336 + $0xa0] sm:$0xff] %v1753
        %1778 = vst [vmem:[%s336 + $0xa8] sm:$0xff] %v1754
        %1779 = vst [vmem:[%s336 + $0xb0] sm:$0xff] %v1755
        %1780 = vst [vmem:[%s336 + $0xb8] sm:$0xff] %v1756
        %s1781 = sand.u32 %s164, 1
        %s1782 = scalar_lea.sflag [#allocation4], %s1781
        %s1783 = sand.u32 %s164, 1
        %s1784 = smul.addr %s1783, 192
        %s1785 = scalar_lea.vmem [#allocation11], %s1784
        // Predicated region
        $region65: #{tpu_custom_call.1} parent=43 // pred_check
          %p1786 = pneg %p174
        $region66: #{tpu_custom_call.1} parent=43 // pred_check_branch
          %1788 = sbr.rel (%p1786) target = $region68
        $region67: #{tpu_custom_call.1} parent=43 // pred_region
          %s1789 = smul.u32 24, %s25
          %1791 = vsyncadd %s1782, 0
          %s1792 = smul.addr %s1789, 8
          %s1793 = scalar_lea.hbm %s6, %s1792
          %s1794 = sshll.u32 %s1785, 4
          %s1795 = int_to_ptr.vmem [resolvable:$true] %s1794
          %s1796 = sshll.u32 %s1793, 4
          %s1797 = int_to_ptr.hbm [resolvable:$true] %s1796
          %1802 = dma.vmem_to_hbm [thread:$0]  %s1795, 3072, %s1797, %s1782, 128, 128, 8
        $region68: #{tpu_custom_call.1} parent=43 // pred_fallthru
          _
      $region44: #{tpu_custom_call.1} parent=5 // pred_fallthru
        _
      %p1803 = scmp.le.s32.totalorder 2, %s20
      // Predicated region
      $region69: #{tpu_custom_call.1} parent=5 // pred_check
        %p1804 = pneg %p1803
      $region70: #{tpu_custom_call.1} parent=5 // pred_check_branch
        %1806 = sbr.rel (%p1804) target = $region72
      $region71: #{tpu_custom_call.1} parent=5 // pred_region
        %s1807 = ssub.s32 %s20, 2
        // Predicated region
        $region73: #{tpu_custom_call.1} parent=71 // pred_check
          %p1808 = pneg %p180
        $region74: #{tpu_custom_call.1} parent=71 // pred_check_branch
          %1810 = sbr.rel (%p1808) target = $region76
        $region75: #{tpu_custom_call.1} parent=71 // pred_region
          %s1811 = sand.u32 %s165, 1
          %s1812 = scalar_lea.sflag [#allocation4], %s1811
          %s1813 = sand.u32 %s165, 1
          %s1814 = smul.addr %s1813, 192
          %s1815 = scalar_lea.vmem [#allocation11], %s1814
          %1817 = dma.done %s1812, 3072
        $region76: #{tpu_custom_call.1} parent=71 // pred_fallthru
          _
      $region72: #{tpu_custom_call.1} parent=5 // pred_fallthru
        _
    $region6: #{tpu_custom_call.1} parent=1 // loop_footer
      %s24 = sadd.s32 1, %s20
    $region7: #{tpu_custom_call.1} parent=1 // loop_footer_branch
      %19 = sbr.rel target = $region3
    $region8: #{tpu_custom_call.1} parent=1 // loop_exit
      _
    %1818 = vsyncpa [#allocation3], 1
    %s1819 = scalar_lea.sflag [#allocation3], 1
    %1820 = vsyncpa %s1819, 1
    %1821 = vsyncpa [#allocation6], 1
    %1822 = vsyncpa [#allocation9], 1
    %1823 = vsyncpa [#allocation4], 1
    %s1824 = scalar_lea.sflag [#allocation4], 1
    %1825 = vsyncpa %s1824, 1

// kernel: tpu_custom_call.1
$region0: #{tpu_custom_call.1}
  #allocation0 [shape = 'u32[]', space=smem, size = 0x4, offset = 0x4, fixed_abs, tag = 'smem constant byte address 0x4 - core index']
  #allocation1 [shape = 'u32[72,128]{1,0:T(1,128)}', space=vmem, size = 0x9000, scoped, tag = 'internal scratch']
  %s0 = inlined_call_operand.hbm [shape: f32[384,256], index: 0, kind: input, shape index: {}]
  %s1 = inlined_call_operand.hbm [shape: bf16[256,256], index: 1, kind: input, shape index: {}]
  %s2 = inlined_call_operand.hbm [shape: f32[1,256], index: 2, kind: input, shape index: {}]
  %s3 = inlined_call_operand.hbm [shape: bf16[256,128], index: 3, kind: input, shape index: {}]
  %s4 = inlined_call_operand.hbm [shape: bf16[256,128], index: 4, kind: input, shape index: {}]
  %s5 = inlined_call_operand.vmem [shape: f32[1,128], index: 5, kind: input, shape index: {}]
  %s6 = inlined_call_operand.hbm [shape: f32[384,128], index: 6, kind: output, shape index: {}]
  %s7 = sld [smem:[#allocation0]]
  $region77: #{tpu_custom_call.1} parent=0
    _
  %s9 = ssub.s32 1, %s7
  %s10 = scalar_select 0, %s9, %s7
  $region1: #{tpu_custom_call.1} parent=0
    #allocation2 [shape = 'u8[393216]{0}', space=vmem, size = 0x60000, scoped, tag = 'input window, operand 0']
    #allocation3 [shape = 's32[2]{0}', space=sflag, size = 0x8, scoped, tag = 'scoped memory for tpu_custom_call.1']
    #allocation4 [shape = 's32[2]{0}', space=sflag, size = 0x8, scoped, tag = 'scoped memory for tpu_custom_call.1']
    #allocation5 [shape = 'u8[131072]{0}', space=vmem, size = 0x20000, scoped, tag = 'input window, operand 1, single buffered']
    #allocation6 [shape = 's32[1]{0}', space=sflag, size = 0x4, scoped, tag = 'scoped memory for tpu_custom_call.1']
    #allocation7 [shape = 'u8[1024]{0}', space=vmem, size = 0x400, scoped, tag = 'input window, operand 2, single buffered']
    #allocation8 [shape = 'u8[65536]{0}', space=vmem, size = 0x10000, scoped, tag = 'input window, operand 3, single buffered']
    #allocation9 [shape = 's32[1]{0}', space=sflag, size = 0x4, scoped, tag = 'scoped memory for tpu_custom_call.1']
    #allocation10 [shape = 'u8[65536]{0}', space=vmem, size = 0x10000, scoped, tag = 'input window, operand 4, single buffered']
    #allocation11 [shape = 'u8[196608]{0}', space=vmem, size = 0x30000, scoped, tag = 'output window, operand 0']
    %11 = vsyncpa [#allocation3], 0
    %s12 = scalar_lea.sflag [#allocation3], 1
    %13 = vsyncpa %s12, 0
    %14 = vsyncpa [#allocation6], 0
    %15 = vsyncpa [#allocation9], 0
    %16 = vsyncpa [#allocation4], 0
    %s17 = scalar_lea.sflag [#allocation4], 1
    %18 = vsyncpa %s17, 0
    loop: start=0, step=1, limit=4
    $region2: #{tpu_custom_call.1} parent=1 // loop_pre_header
      _
    $region3: #{tpu_custom_call.1} parent=1 // loop_header
      %s20 = sphi 0, %s24
      %p21 = scmp.ge.s32.totalorder %s20, 4
      %s30 = sphi 0, %s32
      %s33 = sphi 0, %s30
      %s34 = sphi 0, %s33
      %s50 = sphi 0, %s34
      %s54 = sphi 0, %s54
      %s56 = sphi 0, %s54
      %s57 = sphi 0, %s56
      %s71 = sphi 0, %s57
      %s75 = sphi 0, %s75
      %s77 = sphi 0, %s75
      %s78 = sphi 0, %s77
      %s92 = sphi 0, %s78
      %s96 = sphi 0, %s96
      %s98 = sphi 0, %s96
      %s99 = sphi 0, %s98
      %s113 = sphi 0, %s99
      %s117 = sphi 0, %s117
      %s119 = sphi 0, %s117
      %s120 = sphi 0, %s119
      %s134 = sphi 0, %s120
      %s138 = sphi 0, %s138
      %s140 = sphi 0, %s138
      %s141 = sphi 0, %s140
      %s155 = sphi 0, %s141
      %s161 = sphi 0, %s163
      %s164 = sphi 0, %s161
      %s165 = sphi 0, %s164
      %s181 = sphi 0, %s165
    $region4: #{tpu_custom_call.1} parent=1 // loop_header_branch
      %23 = sbr.rel (%p21) target = $region8
    $region5: #{tpu_custom_call.1} parent=1 // loop_body
      %s25 = ssub.s32 %s20, 1
      %s26 = ssub.s32 %s20, 2
      %s27 = sadd.s32 %s20, 1
      %s28 = ssub.s32 %s20, %s27
      %p29 = scmp.eq.s32.totalorder %s28, 0
      %s31 = sadd.s32 %s30, 1
      %s32 = scalar_select %p29, %s30, %s31
      %p35 = pneg %p29
      %p36 = scmp.eq.s32.totalorder %s20, 1
      %p37 = por %p35, %p36
      %p38 = scmp.ne.s32.totalorder %s30, %s33
      %p39 = scmp.eq.s32.totalorder %s20, 0
      %p40 = por %p38, %p39
      %p41 = scmp.ne.s32.totalorder %s30, %s33
      %p42 = scmp.eq.s32.totalorder %s25, 1
      %p43 = por %p41, %p42
      %p44 = scmp.ne.s32.totalorder %s33, %s34
      %p45 = scmp.eq.s32.totalorder %s25, 0
      %p46 = por %p44, %p45
      %p47 = scmp.ne.s32.totalorder %s33, %s34
      %p48 = scmp.eq.s32.totalorder %s26, 1
      %p49 = por %p47, %p48
      %p51 = scmp.ne.s32.totalorder %s34, %s50
      %p52 = scmp.eq.s32.totalorder %s26, 0
      %p53 = por %p51, %p52
      %s55 = sadd.s32 %s54, 1
      %p58 = scmp.eq.s32.totalorder %s20, 1
      %p59 = scmp.ne.s32.totalorder %s54, %s56
      %p60 = scmp.eq.s32.totalorder %s20, 0
      %p61 = por %p59, %p60
      %p62 = scmp.ne.s32.totalorder %s54, %s56
      %p63 = scmp.eq.s32.totalorder %s25, 1
      %p64 = por %p62, %p63
      %p65 = scmp.ne.s32.totalorder %s56, %s57
      %p66 = scmp.eq.s32.totalorder %s25, 0
      %p67 = por %p65, %p66
      %p68 = scmp.ne.s32.totalorder %s56, %s57
      %p69 = scmp.eq.s32.totalorder %s26, 1
      %p70 = por %p68, %p69
      %p72 = scmp.ne.s32.totalorder %s57, %s71
      %p73 = scmp.eq.s32.totalorder %s26, 0
      %p74 = por %p72, %p73
      %s76 = sadd.s32 %s75, 1
      %p79 = scmp.eq.s32.totalorder %s20, 1
      %p80 = scmp.ne.s32.totalorder %s75, %s77
      %p81 = scmp.eq.s32.totalorder %s20, 0
      %p82 = por %p80, %p81
      %p83 = scmp.ne.s32.totalorder %s75, %s77
      %p84 = scmp.eq.s32.totalorder %s25, 1
      %p85 = por %p83, %p84
      %p86 = scmp.ne.s32.totalorder %s77, %s78
      %p87 = scmp.eq.s32.totalorder %s25, 0
      %p88 = por %p86, %p87
      %p89 = scmp.ne.s32.totalorder %s77, %s78
      %p90 = scmp.eq.s32.totalorder %s26, 1
      %p91 = por %p89, %p90
      %p93 = scmp.ne.s32.totalorder %s78, %s92
      %p94 = scmp.eq.s32.totalorder %s26, 0
      %p95 = por %p93, %p94
      %s97 = sadd.s32 %s96, 1
      %p100 = scmp.eq.s32.totalorder %s20, 1
      %p101 = scmp.ne.s32.totalorder %s96, %s98
      %p102 = scmp.eq.s32.totalorder %s20, 0
      %p103 = por %p101, %p102
      %p104 = scmp.ne.s32.totalorder %s96, %s98
      %p105 = scmp.eq.s32.totalorder %s25, 1
      %p106 = por %p104, %p105
      %p107 = scmp.ne.s32.totalorder %s98, %s99
      %p108 = scmp.eq.s32.totalorder %s25, 0
      %p109 = por %p107, %p108
      %p110 = scmp.ne.s32.totalorder %s98, %s99
      %p111 = scmp.eq.s32.totalorder %s26, 1
      %p112 = por %p110, %p111
      %p114 = scmp.ne.s32.totalorder %s99, %s113
      %p115 = scmp.eq.s32.totalorder %s26, 0
      %p116 = por %p114, %p115
      %s118 = sadd.s32 %s117, 1
      %p121 = scmp.eq.s32.totalorder %s20, 1
      %p122 = scmp.ne.s32.totalorder %s117, %s119
      %p123 = scmp.eq.s32.totalorder %s20, 0
      %p124 = por %p122, %p123
      %p125 = scmp.ne.s32.totalorder %s117, %s119
      %p126 = scmp.eq.s32.totalorder %s25, 1
      %p127 = por %p125, %p126
      %p128 = scmp.ne.s32.totalorder %s119, %s120
      %p129 = scmp.eq.s32.totalorder %s25, 0
      %p130 = por %p128, %p129
      %p131 = scmp.ne.s32.totalorder %s119, %s120
      %p132 = scmp.eq.s32.totalorder %s26, 1
      %p133 = por %p131, %p132
      %p135 = scmp.ne.s32.totalorder %s120, %s134
      %p136 = scmp.eq.s32.totalorder %s26, 0
      %p137 = por %p135, %p136
      %s139 = sadd.s32 %s138, 1
      %p142 = scmp.eq.s32.totalorder %s20, 1
      %p143 = scmp.ne.s32.totalorder %s138, %s140
      %p144 = scmp.eq.s32.totalorder %s20, 0
      %p145 = por %p143, %p144
      %p146 = scmp.ne.s32.totalorder %s138, %s140
      %p147 = scmp.eq.s32.totalorder %s25, 1
      %p148 = por %p146, %p147
      %p149 = scmp.ne.s32.totalorder %s140, %s141
      %p150 = scmp.eq.s32.totalorder %s25, 0
      %p151 = por %p149, %p150
      %p152 = scmp.ne.s32.totalorder %s140, %s141
      %p153 = scmp.eq.s32.totalorder %s26, 1
      %p154 = por %p152, %p153
      %p156 = scmp.ne.s32.totalorder %s141, %s155
      %p157 = scmp.eq.s32.totalorder %s26, 0
      %p158 = por %p156, %p157
      %s159 = ssub.s32 %s20, %s27
      %p160 = scmp.eq.s32.totalorder %s159, 0
      %s162 = sadd.s32 %s161, 1
      %s163 = scalar_select %p160, %s161, %s162
      %p166 = pneg %p160
      %p167 = scmp.eq.s32.totalorder %s20, 1
      %p168 = por %p166, %p167
      %p169 = scmp.ne.s32.totalorder %s161, %s164
      %p170 = scmp.eq.s32.totalorder %s20, 0
      %p171 = por %p169, %p170
      %p172 = scmp.ne.s32.totalorder %s161, %s164
      %p173 = scmp.eq.s32.totalorder %s25, 1
      %p174 = por %p172, %p173
      %p175 = scmp.ne.s32.totalorder %s164, %s165
      %p176 = scmp.eq.s32.totalorder %s25, 0
      %p177 = por %p175, %p176
      %p178 = scmp.ne.s32.totalorder %s164, %s165
      %p179 = scmp.eq.s32.totalorder %s26, 1
      %p180 = por %p178, %p179
      %p182 = scmp.ne.s32.totalorder %s165, %s181
      %p183 = scmp.eq.s32.totalorder %s26, 0
      %p184 = por %p182, %p183
      %p185 = scmp.le.s32.totalorder 1, %s20
      %p186 = scmp.lt.s32.totalorder %s20, 3
      %p187 = pnand %p185, %p186
      %p188 = pneg %p187
      // Predicated region
      $region9: #{tpu_custom_call.1} parent=5 // pred_check
        _
      $region10: #{tpu_custom_call.1} parent=5 // pred_check_branch
        %190 = sbr.rel (%p187) target = $region12
      $region11: #{tpu_custom_call.1} parent=5 // pred_region
        %s191 = ssub.s32 %s20, 1
        // Predicated region
        $region13: #{tpu_custom_call.1} parent=11 // pred_check
          %p192 = pneg %p67
        $region14: #{tpu_custom_call.1} parent=11 // pred_check_branch
          %194 = sbr.rel (%p192) target = $region16
        $region15: #{tpu_custom_call.1} parent=11 // pred_region
          %196 = vsyncadd [#allocation6], 0
          %s197 = sshll.u32 %s1, 4
          %s198 = int_to_ptr.hbm [resolvable:$true] %s197
          %s199 = sshll.u32 [#allocation5], 4
          %s200 = int_to_ptr.vmem [resolvable:$true] %s199
          %205 = dma.hbm_to_vmem [thread:$0]  %s198, 4096, %s200, [#allocation6], 128, 128, 8
        $region16: #{tpu_custom_call.1} parent=11 // pred_fallthru
          _
        // Predicated region
        $region17: #{tpu_custom_call.1} parent=11 // pred_check
          %p206 = pneg %p88
        $region18: #{tpu_custom_call.1} parent=11 // pred_check_branch
          %208 = sbr.rel (%p206) target = $region20
        $region19: #{tpu_custom_call.1} parent=11 // pred_region
          %210 = vsyncadd [#allocation6], 0
          %s212 = sshll.u32 %s2, 4
          %s213 = int_to_ptr.hbm [resolvable:$true] %s212
          %s214 = sshll.u32 [#allocation7], 4
          %s215 = int_to_ptr.vmem [resolvable:$true] %s214
          %217 = dma.hbm_to_vmem [thread:$0]  %s213, 32, %s215, [#allocation6]
        $region20: #{tpu_custom_call.1} parent=11 // pred_fallthru
          _
        // Predicated region
        $region21: #{tpu_custom_call.1} parent=11 // pred_check
          %p218 = pneg %p109
        $region22: #{tpu_custom_call.1} parent=11 // pred_check_branch
          %220 = sbr.rel (%p218) target = $region24
        $region23: #{tpu_custom_call.1} parent=11 // pred_region
          %222 = vsyncadd [#allocation9], 0
          %s223 = sshll.u32 %s3, 4
          %s224 = int_to_ptr.hbm [resolvable:$true] %s223
          %s225 = sshll.u32 [#allocation8], 4
          %s226 = int_to_ptr.vmem [resolvable:$true] %s225
          %231 = dma.hbm_to_vmem [thread:$0]  %s224, 2048, %s226, [#allocation9], 64, 64, 4
        $region24: #{tpu_custom_call.1} parent=11 // pred_fallthru
          _
        // Predicated region
        $region25: #{tpu_custom_call.1} parent=11 // pred_check
          %p232 = pneg %p130
        $region26: #{tpu_custom_call.1} parent=11 // pred_check_branch
          %234 = sbr.rel (%p232) target = $region28
        $region27: #{tpu_custom_call.1} parent=11 // pred_region
          %236 = vsyncadd [#allocation9], 0
          %s237 = sshll.u32 %s4, 4
          %s238 = int_to_ptr.hbm [resolvable:$true] %s237
          %s239 = sshll.u32 [#allocation10], 4
          %s240 = int_to_ptr.vmem [resolvable:$true] %s239
          %245 = dma.hbm_to_vmem [thread:$0]  %s238, 2048, %s240, [#allocation9], 64, 64, 4
        $region28: #{tpu_custom_call.1} parent=11 // pred_fallthru
          _
        // Predicated region
        $region29: #{tpu_custom_call.1} parent=11 // pred_check
          %p246 = pneg %p151
        $region30: #{tpu_custom_call.1} parent=11 // pred_check_branch
          %248 = sbr.rel (%p246) target = $region32
        $region31: #{tpu_custom_call.1} parent=11 // pred_region
          _
        $region32: #{tpu_custom_call.1} parent=11 // pred_fallthru
          _
      $region12: #{tpu_custom_call.1} parent=5 // pred_fallthru
        _
      %p249 = scmp.lt.s32.totalorder %s20, 2
      // Predicated region
      $region33: #{tpu_custom_call.1} parent=5 // pred_check
        %p250 = pneg %p249
      $region34: #{tpu_custom_call.1} parent=5 // pred_check_branch
        %252 = sbr.rel (%p250) target = $region36
      $region35: #{tpu_custom_call.1} parent=5 // pred_region
        // Predicated region
        $region37: #{tpu_custom_call.1} parent=35 // pred_check
          %p253 = pneg %p40
        $region38: #{tpu_custom_call.1} parent=35 // pred_check_branch
          %255 = sbr.rel (%p253) target = $region40
        $region39: #{tpu_custom_call.1} parent=35 // pred_region
          %s256 = sand.u32 %s30, 1
          %s257 = scalar_lea.sflag [#allocation3], %s256
          %s258 = sand.u32 %s30, 1
          %s259 = smul.addr %s258, 384
          %s260 = scalar_lea.vmem [#allocation2], %s259
          %s261 = smul.u32 24, %s20
          %263 = vsyncadd %s257, 0
          %s264 = smul.addr %s261, 2
          %s265 = smul.addr %s264, 8
          %s266 = scalar_lea.hbm %s0, %s265
          %s267 = sshll.u32 %s266, 4
          %s268 = int_to_ptr.hbm [resolvable:$true] %s267
          %s269 = sshll.u32 %s260, 4
          %s270 = int_to_ptr.vmem [resolvable:$true] %s269
          %275 = dma.hbm_to_vmem [thread:$0]  %s268, 6144, %s270, %s257, 256, 256, 16
        $region40: #{tpu_custom_call.1} parent=35 // pred_fallthru
          _
      $region36: #{tpu_custom_call.1} parent=5 // pred_fallthru
        _
      %p276 = scmp.le.s32.totalorder 1, %s20
      %p277 = scmp.lt.s32.totalorder %s20, 3
      %p278 = pnand %p276, %p277
      %p279 = pneg %p278
      // Predicated region
      $region41: #{tpu_custom_call.1} parent=5 // pred_check
        _
      $region42: #{tpu_custom_call.1} parent=5 // pred_check_branch
        %281 = sbr.rel (%p278) target = $region44
      $region43: #{tpu_custom_call.1} parent=5 // pred_region
        %s282 = ssub.s32 %s20, 1
        %s283 = sand.u32 %s33, 1
        %s284 = scalar_lea.sflag [#allocation3], %s283
        %s285 = sand.u32 %s33, 1
        %s286 = smul.addr %s285, 384
        %s287 = scalar_lea.vmem [#allocation2], %s286
        // Predicated region
        $region45: #{tpu_custom_call.1} parent=43 // pred_check
          %p288 = pneg %p46
        $region46: #{tpu_custom_call.1} parent=43 // pred_check_branch
          %290 = sbr.rel (%p288) target = $region48
        $region47: #{tpu_custom_call.1} parent=43 // pred_region
          %292 = dma.done %s284, 6144
        $region48: #{tpu_custom_call.1} parent=43 // pred_fallthru
          _
        // Predicated region
        $region49: #{tpu_custom_call.1} parent=43 // pred_check
          %p293 = pneg %p67
        $region50: #{tpu_custom_call.1} parent=43 // pred_check_branch
          %295 = sbr.rel (%p293) target = $region52
        $region51: #{tpu_custom_call.1} parent=43 // pred_region
          %297 = dma.done [#allocation6], 4096
        $region52: #{tpu_custom_call.1} parent=43 // pred_fallthru
          _
        // Predicated region
        $region53: #{tpu_custom_call.1} parent=43 // pred_check
          %p298 = pneg %p88
        $region54: #{tpu_custom_call.1} parent=43 // pred_check_branch
          %300 = sbr.rel (%p298) target = $region56
        $region55: #{tpu_custom_call.1} parent=43 // pred_region
          %302 = dma.done [#allocation6], 32
        $region56: #{tpu_custom_call.1} parent=43 // pred_fallthru
          _
        // Predicated region
        $region57: #{tpu_custom_call.1} parent=43 // pred_check
          %p303 = pneg %p109
        $region58: #{tpu_custom_call.1} parent=43 // pred_check_branch
          %305 = sbr.rel (%p303) target = $region60
        $region59: #{tpu_custom_call.1} parent=43 // pred_region
          %307 = dma.done [#allocation9], 2048
        $region60: #{tpu_custom_call.1} parent=43 // pred_fallthru
          _
        // Predicated region
        $region61: #{tpu_custom_call.1} parent=43 // pred_check
          %p308 = pneg %p130
        $region62: #{tpu_custom_call.1} parent=43 // pred_check_branch
          %310 = sbr.rel (%p308) target = $region64
        $region63: #{tpu_custom_call.1} parent=43 // pred_region
          %312 = dma.done [#allocation9], 2048
        $region64: #{tpu_custom_call.1} parent=43 // pred_fallthru
          _
        %s313 = sand.u32 %s33, 1
        %s314 = scalar_lea.sflag [#allocation3], %s313
        %s315 = sand.u32 %s33, 1
        %s316 = smul.addr %s315, 384
        %s317 = scalar_lea.vmem [#allocation2], %s316
        %p318 = pneg %p46
        %p319 = pneg %p43
        %p320 = pneg %p67
        %p321 = pneg %p64
        %p322 = pneg %p88
        %p323 = pneg %p85
        %p324 = pneg %p109
        %p325 = pneg %p106
        %p326 = pneg %p130
        %p327 = pneg %p127
        %p328 = pneg %p151
        %p329 = pneg %p148
        %p330 = pneg %p177
        %p331 = pneg %p174
        %s332 = sand.u32 %s164, 1
        %s333 = scalar_lea.sflag [#allocation4], %s332
        %s334 = sand.u32 %s164, 1
        %s335 = smul.addr %s334, 192
        %s336 = scalar_lea.vmem [#allocation11], %s335
        %s337 = smul.u32 24, %s25
        %s338 = smul.u32 24, %s25
        %v339 = vld [vmem:[%s287] sm:$0xff]
        %v340 = vld [vmem:[%s287 + $0x8] sm:$0xff]
        %v341 = vld [vmem:[%s287 + $0x10] sm:$0xff]
        %v342 = vld [vmem:[%s287 + $0x18] sm:$0xff]
        %v343 = vld [vmem:[%s287 + $0x20] sm:$0xff]
        %v344 = vld [vmem:[%s287 + $0x28] sm:$0xff]
        %v345 = vld [vmem:[%s287 + $0x30] sm:$0xff]
        %v346 = vld [vmem:[%s287 + $0x38] sm:$0xff]
        %v347 = vld [vmem:[%s287 + $0x40] sm:$0xff]
        %v348 = vld [vmem:[%s287 + $0x48] sm:$0xff]
        %v349 = vld [vmem:[%s287 + $0x50] sm:$0xff]
        %v350 = vld [vmem:[%s287 + $0x58] sm:$0xff]
        %v351 = vld [vmem:[%s287 + $0x60] sm:$0xff]
        %v352 = vld [vmem:[%s287 + $0x68] sm:$0xff]
        %v353 = vld [vmem:[%s287 + $0x70] sm:$0xff]
        %v354 = vld [vmem:[%s287 + $0x78] sm:$0xff]
        %v355 = vld [vmem:[%s287 + $0x80] sm:$0xff]
        %v356 = vld [vmem:[%s287 + $0x88] sm:$0xff]
        %v357 = vld [vmem:[%s287 + $0x90] sm:$0xff]
        %v358 = vld [vmem:[%s287 + $0x98] sm:$0xff]
        %v359 = vld [vmem:[%s287 + $0xa0] sm:$0xff]
        %v360 = vld [vmem:[%s287 + $0xa8] sm:$0xff]
        %v361 = vld [vmem:[%s287 + $0xb0] sm:$0xff]
        %v362 = vld [vmem:[%s287 + $0xb8] sm:$0xff]
        %v363 = vld [vmem:[%s287 + $0xc0] sm:$0xff]
        %v364 = vld [vmem:[%s287 + $0xc8] sm:$0xff]
        %v365 = vld [vmem:[%s287 + $0xd0] sm:$0xff]
        %v366 = vld [vmem:[%s287 + $0xd8] sm:$0xff]
        %v367 = vld [vmem:[%s287 + $0xe0] sm:$0xff]
        %v368 = vld [vmem:[%s287 + $0xe8] sm:$0xff]
        %v369 = vld [vmem:[%s287 + $0xf0] sm:$0xff]
        %v370 = vld [vmem:[%s287 + $0xf8] sm:$0xff]
        %v371 = vld [vmem:[%s287 + $0x100] sm:$0xff]
        %v372 = vld [vmem:[%s287 + $0x108] sm:$0xff]
        %v373 = vld [vmem:[%s287 + $0x110] sm:$0xff]
        %v374 = vld [vmem:[%s287 + $0x118] sm:$0xff]
        %v375 = vld [vmem:[%s287 + $0x120] sm:$0xff]
        %v376 = vld [vmem:[%s287 + $0x128] sm:$0xff]
        %v377 = vld [vmem:[%s287 + $0x130] sm:$0xff]
        %v378 = vld [vmem:[%s287 + $0x138] sm:$0xff]
        %v379 = vld [vmem:[%s287 + $0x140] sm:$0xff]
        %v380 = vld [vmem:[%s287 + $0x148] sm:$0xff]
        %v381 = vld [vmem:[%s287 + $0x150] sm:$0xff]
        %v382 = vld [vmem:[%s287 + $0x158] sm:$0xff]
        %v383 = vld [vmem:[%s287 + $0x160] sm:$0xff]
        %v384 = vld [vmem:[%s287 + $0x168] sm:$0xff]
        %v385 = vld [vmem:[%s287 + $0x170] sm:$0xff]
        %v386 = vld [vmem:[%s287 + $0x178] sm:$0xff]
        %v387 = vpack.c.bf16 %v340, %v339
        %v388 = vpack.c.bf16 %v342, %v341
        %v389 = vpack.c.bf16 %v344, %v343
        %v390 = vpack.c.bf16 %v346, %v345
        %v391 = vpack.c.bf16 %v348, %v347
        %v392 = vpack.c.bf16 %v350, %v349
        %v393 = vpack.c.bf16 %v352, %v351
        %v394 = vpack.c.bf16 %v354, %v353
        %v395 = vpack.c.bf16 %v356, %v355
        %v396 = vpack.c.bf16 %v358, %v357
        %v397 = vpack.c.bf16 %v360, %v359
        %v398 = vpack.c.bf16 %v362, %v361
        %v399 = vpack.c.bf16 %v364, %v363
        %v400 = vpack.c.bf16 %v366, %v365
        %v401 = vpack.c.bf16 %v368, %v367
        %v402 = vpack.c.bf16 %v370, %v369
        %v403 = vpack.c.bf16 %v372, %v371
        %v404 = vpack.c.bf16 %v374, %v373
        %v405 = vpack.c.bf16 %v376, %v375
        %v406 = vpack.c.bf16 %v378, %v377
        %v407 = vpack.c.bf16 %v380, %v379
        %v408 = vpack.c.bf16 %v382, %v381
        %v409 = vpack.c.bf16 %v384, %v383
        %v410 = vpack.c.bf16 %v386, %v385
        %v411 = vunpack.c.l.bf16 %v387
        %v412 = vunpack.c.h.bf16 %v387
        %v413 = vunpack.c.l.bf16 %v388
        %v414 = vunpack.c.h.bf16 %v388
        %v415 = vunpack.c.l.bf16 %v389
        %v416 = vunpack.c.h.bf16 %v389
        %v417 = vunpack.c.l.bf16 %v390
        %v418 = vunpack.c.h.bf16 %v390
        %v419 = vunpack.c.l.bf16 %v391
        %v420 = vunpack.c.h.bf16 %v391
        %v421 = vunpack.c.l.bf16 %v392
        %v422 = vunpack.c.h.bf16 %v392
        %v423 = vunpack.c.l.bf16 %v393
        %v424 = vunpack.c.h.bf16 %v393
        %v425 = vunpack.c.l.bf16 %v394
        %v426 = vunpack.c.h.bf16 %v394
        %v427 = vunpack.c.l.bf16 %v395
        %v428 = vunpack.c.h.bf16 %v395
        %v429 = vunpack.c.l.bf16 %v396
        %v430 = vunpack.c.h.bf16 %v396
        %v431 = vunpack.c.l.bf16 %v397
        %v432 = vunpack.c.h.bf16 %v397
        %v433 = vunpack.c.l.bf16 %v398
        %v434 = vunpack.c.h.bf16 %v398
        %v435 = vunpack.c.l.bf16 %v399
        %v436 = vunpack.c.h.bf16 %v399
        %v437 = vunpack.c.l.bf16 %v400
        %v438 = vunpack.c.h.bf16 %v400
        %v439 = vunpack.c.l.bf16 %v401
        %v440 = vunpack.c.h.bf16 %v401
        %v441 = vunpack.c.l.bf16 %v402
        %v442 = vunpack.c.h.bf16 %v402
        %v443 = vunpack.c.l.bf16 %v403
        %v444 = vunpack.c.h.bf16 %v403
        %v445 = vunpack.c.l.bf16 %v404
        %v446 = vunpack.c.h.bf16 %v404
        %v447 = vunpack.c.l.bf16 %v405
        %v448 = vunpack.c.h.bf16 %v405
        %v449 = vunpack.c.l.bf16 %v406
        %v450 = vunpack.c.h.bf16 %v406
        %v451 = vunpack.c.l.bf16 %v407
        %v452 = vunpack.c.h.bf16 %v407
        %v453 = vunpack.c.l.bf16 %v408
        %v454 = vunpack.c.h.bf16 %v408
        %v455 = vunpack.c.l.bf16 %v409
        %v456 = vunpack.c.h.bf16 %v409
        %v457 = vunpack.c.l.bf16 %v410
        %v458 = vunpack.c.h.bf16 %v410
        %v459 = vmax.f32 %v411, 0.0
        %v460 = vmax.f32 %v412, 0.0
        %v461 = vmax.f32 %v413, 0.0
        %v462 = vmax.f32 %v414, 0.0
        %v463 = vmax.f32 %v415, 0.0
        %v464 = vmax.f32 %v416, 0.0
        %v465 = vmax.f32 %v417, 0.0
        %v466 = vmax.f32 %v418, 0.0
        %v467 = vmax.f32 %v419, 0.0
        %v468 = vmax.f32 %v420, 0.0
        %v469 = vmax.f32 %v421, 0.0
        %v470 = vmax.f32 %v422, 0.0
        %v471 = vmax.f32 %v423, 0.0
        %v472 = vmax.f32 %v424, 0.0
        %v473 = vmax.f32 %v425, 0.0
        %v474 = vmax.f32 %v426, 0.0
        %v475 = vmax.f32 %v427, 0.0
        %v476 = vmax.f32 %v428, 0.0
        %v477 = vmax.f32 %v429, 0.0
        %v478 = vmax.f32 %v430, 0.0
        %v479 = vmax.f32 %v431, 0.0
        %v480 = vmax.f32 %v432, 0.0
        %v481 = vmax.f32 %v433, 0.0
        %v482 = vmax.f32 %v434, 0.0
        %v483 = vmax.f32 %v435, 0.0
        %v484 = vmax.f32 %v436, 0.0
        %v485 = vmax.f32 %v437, 0.0
        %v486 = vmax.f32 %v438, 0.0
        %v487 = vmax.f32 %v439, 0.0
        %v488 = vmax.f32 %v440, 0.0
        %v489 = vmax.f32 %v441, 0.0
        %v490 = vmax.f32 %v442, 0.0
        %v491 = vmax.f32 %v443, 0.0
        %v492 = vmax.f32 %v444, 0.0
        %v493 = vmax.f32 %v445, 0.0
        %v494 = vmax.f32 %v446, 0.0
        %v495 = vmax.f32 %v447, 0.0
        %v496 = vmax.f32 %v448, 0.0
        %v497 = vmax.f32 %v449, 0.0
        %v498 = vmax.f32 %v450, 0.0
        %v499 = vmax.f32 %v451, 0.0
        %v500 = vmax.f32 %v452, 0.0
        %v501 = vmax.f32 %v453, 0.0
        %v502 = vmax.f32 %v454, 0.0
        %v503 = vmax.f32 %v455, 0.0
        %v504 = vmax.f32 %v456, 0.0
        %v505 = vmax.f32 %v457, 0.0
        %v506 = vmax.f32 %v458, 0.0
        %v507 = vpack.c.bf16 %v461, %v459
        %v508 = vpack.c.bf16 %v462, %v460
        %v509 = vpack.c.bf16 %v465, %v463
        %v510 = vpack.c.bf16 %v466, %v464
        %v511 = vpack.c.bf16 %v469, %v467
        %v512 = vpack.c.bf16 %v470, %v468
        %v513 = vpack.c.bf16 %v473, %v471
        %v514 = vpack.c.bf16 %v474, %v472
        %v515 = vpack.c.bf16 %v477, %v475
        %v516 = vpack.c.bf16 %v478, %v476
        %v517 = vpack.c.bf16 %v481, %v479
        %v518 = vpack.c.bf16 %v482, %v480
        %v519 = vpack.c.bf16 %v485, %v483
        %v520 = vpack.c.bf16 %v486, %v484
        %v521 = vpack.c.bf16 %v489, %v487
        %v522 = vpack.c.bf16 %v490, %v488
        %v523 = vpack.c.bf16 %v493, %v491
        %v524 = vpack.c.bf16 %v494, %v492
        %v525 = vpack.c.bf16 %v497, %v495
        %v526 = vpack.c.bf16 %v498, %v496
        %v527 = vpack.c.bf16 %v501, %v499
        %v528 = vpack.c.bf16 %v502, %v500
        %v529 = vpack.c.bf16 %v505, %v503
        %v530 = vpack.c.bf16 %v506, %v504
        %v531 = vld [vmem:[#allocation5] sm:$0xff]
        %v532 = vld [vmem:[#allocation5 + $0x8] sm:$0xff]
        %v533 = vld [vmem:[#allocation5 + $0x10] sm:$0xff]
        %v534 = vld [vmem:[#allocation5 + $0x18] sm:$0xff]
        %v535 = vld [vmem:[#allocation5 + $0x20] sm:$0xff]
        %v536 = vld [vmem:[#allocation5 + $0x28] sm:$0xff]
        %v537 = vld [vmem:[#allocation5 + $0x30] sm:$0xff]
        %v538 = vld [vmem:[#allocation5 + $0x38] sm:$0xff]
        %v539 = vld [vmem:[#allocation5 + $0x40] sm:$0xff]
        %v540 = vld [vmem:[#allocation5 + $0x48] sm:$0xff]
        %v541 = vld [vmem:[#allocation5 + $0x50] sm:$0xff]
        %v542 = vld [vmem:[#allocation5 + $0x58] sm:$0xff]
        %v543 = vld [vmem:[#allocation5 + $0x60] sm:$0xff]
        %v544 = vld [vmem:[#allocation5 + $0x68] sm:$0xff]
        %v545 = vld [vmem:[#allocation5 + $0x70] sm:$0xff]
        %v546 = vld [vmem:[#allocation5 + $0x78] sm:$0xff]
        %v547 = vld [vmem:[#allocation5 + $0x80] sm:$0xff]
        %v548 = vld [vmem:[#allocation5 + $0x88] sm:$0xff]
        %v549 = vld [vmem:[#allocation5 + $0x90] sm:$0xff]
        %v550 = vld [vmem:[#allocation5 + $0x98] sm:$0xff]
        %v551 = vld [vmem:[#allocation5 + $0xa0] sm:$0xff]
        %v552 = vld [vmem:[#allocation5 + $0xa8] sm:$0xff]
        %v553 = vld [vmem:[#allocation5 + $0xb0] sm:$0xff]
        %v554 = vld [vmem:[#allocation5 + $0xb8] sm:$0xff]
        %v555 = vld [vmem:[#allocation5 + $0xc0] sm:$0xff]
        %v556 = vld [vmem:[#allocation5 + $0xc8] sm:$0xff]
        %v557 = vld [vmem:[#allocation5 + $0xd0] sm:$0xff]
        %v558 = vld [vmem:[#allocation5 + $0xd8] sm:$0xff]
        %v559 = vld [vmem:[#allocation5 + $0xe0] sm:$0xff]
        %v560 = vld [vmem:[#allocation5 + $0xe8] sm:$0xff]
        %v561 = vld [vmem:[#allocation5 + $0xf0] sm:$0xff]
        %v562 = vld [vmem:[#allocation5 + $0xf8] sm:$0xff]
        %v563 = vld [vmem:[#allocation7] sm:$0x3]
        %v565 = vperm.slane %v563, 0
        %v566 = vperm.slane %v563, 1
        %v601 = vunpack.c.l.b16 %v531
        %v602 = vunpack.c.h.b16 %v531
        %v603 = vunpack.c.l.b16 %v532
        %v604 = vunpack.c.h.b16 %v532
        %v605 = vunpack.c.l.b16 %v533
        %v606 = vunpack.c.h.b16 %v533
        %v607 = vunpack.c.l.b16 %v534
        %v608 = vunpack.c.h.b16 %v534
        %v609 = vunpack.c.l.b16 %v535
        %v610 = vunpack.c.h.b16 %v535
        %v611 = vunpack.c.l.b16 %v536
        %v612 = vunpack.c.h.b16 %v536
        %v613 = vunpack.c.l.b16 %v537
        %v614 = vunpack.c.h.b16 %v537
        %v615 = vunpack.c.l.b16 %v538
        %v616 = vunpack.c.h.b16 %v538
        %v617 = vunpack.c.l.b16 %v539
        %v618 = vunpack.c.h.b16 %v539
        %v619 = vunpack.c.l.b16 %v540
        %v620 = vunpack.c.h.b16 %v540
        %v621 = vunpack.c.l.b16 %v541
        %v622 = vunpack.c.h.b16 %v541
        %v623 = vunpack.c.l.b16 %v542
        %v624 = vunpack.c.h.b16 %v542
        %v625 = vunpack.c.l.b16 %v543
        %v626 = vunpack.c.h.b16 %v543
        %v627 = vunpack.c.l.b16 %v544
        %v628 = vunpack.c.h.b16 %v544
        %v629 = vunpack.c.l.b16 %v545
        %v630 = vunpack.c.h.b16 %v545
        %v631 = vunpack.c.l.b16 %v546
        %v632 = vunpack.c.h.b16 %v546
        %v633 = vunpack.c.l.b16 %v547
        %v634 = vunpack.c.h.b16 %v547
        %v635 = vunpack.c.l.b16 %v548
        %v636 = vunpack.c.h.b16 %v548
        %v637 = vunpack.c.l.b16 %v549
        %v638 = vunpack.c.h.b16 %v549
        %v639 = vunpack.c.l.b16 %v550
        %v640 = vunpack.c.h.b16 %v550
        %v641 = vunpack.c.l.b16 %v551
        %v642 = vunpack.c.h.b16 %v551
        %v643 = vunpack.c.l.b16 %v552
        %v644 = vunpack.c.h.b16 %v552
        %v645 = vunpack.c.l.b16 %v553
        %v646 = vunpack.c.h.b16 %v553
        %v647 = vunpack.c.l.b16 %v554
        %v648 = vunpack.c.h.b16 %v554
        %v649 = vunpack.c.l.b16 %v555
        %v650 = vunpack.c.h.b16 %v555
        %v651 = vunpack.c.l.b16 %v556
        %v652 = vunpack.c.h.b16 %v556
        %v653 = vunpack.c.l.b16 %v557
        %v654 = vunpack.c.h.b16 %v557
        %v655 = vunpack.c.l.b16 %v558
        %v656 = vunpack.c.h.b16 %v558
        %v657 = vunpack.c.l.b16 %v559
        %v658 = vunpack.c.h.b16 %v559
        %v659 = vunpack.c.l.b16 %v560
        %v660 = vunpack.c.h.b16 %v560
        %v661 = vunpack.c.l.b16 %v561
        %v662 = vunpack.c.h.b16 %v561
        %v663 = vunpack.c.l.b16 %v562
        %v664 = vunpack.c.h.b16 %v562
        %v665 = vpack.c.b16 %v603, %v601
        %v666 = vpack.c.b16 %v604, %v602
        %v667 = vpack.c.b16 %v607, %v605
        %v668 = vpack.c.b16 %v608, %v606
        %v669 = vpack.c.b16 %v611, %v609
        %v670 = vpack.c.b16 %v612, %v610
        %v671 = vpack.c.b16 %v615, %v613
        %v672 = vpack.c.b16 %v616, %v614
        %v673 = vpack.c.b16 %v619, %v617
        %v674 = vpack.c.b16 %v620, %v618
        %v675 = vpack.c.b16 %v623, %v621
        %v676 = vpack.c.b16 %v624, %v622
        %v677 = vpack.c.b16 %v627, %v625
        %v678 = vpack.c.b16 %v628, %v626
        %v679 = vpack.c.b16 %v631, %v629
        %v680 = vpack.c.b16 %v632, %v630
        %v681 = vpack.c.b16 %v635, %v633
        %v682 = vpack.c.b16 %v636, %v634
        %v683 = vpack.c.b16 %v639, %v637
        %v684 = vpack.c.b16 %v640, %v638
        %v685 = vpack.c.b16 %v643, %v641
        %v686 = vpack.c.b16 %v644, %v642
        %v687 = vpack.c.b16 %v647, %v645
        %v688 = vpack.c.b16 %v648, %v646
        %v689 = vpack.c.b16 %v651, %v649
        %v690 = vpack.c.b16 %v652, %v650
        %v691 = vpack.c.b16 %v655, %v653
        %v692 = vpack.c.b16 %v656, %v654
        %v693 = vpack.c.b16 %v659, %v657
        %v694 = vpack.c.b16 %v660, %v658
        %v695 = vpack.c.b16 %v663, %v661
        %v696 = vpack.c.b16 %v664, %v662
        %729 = vmatpush.bf16.msra.mxu0 %v679
        %730 = vmatpush.bf16.msra.mxu0 %v677
        %731 = vmatpush.bf16.msra.mxu0 %v675
        %732 = vmatpush.bf16.msra.mxu0 %v673
        %733 = vmatpush.bf16.msra.mxu0 %v671
        %734 = vmatpush.bf16.msra.mxu0 %v669
        %735 = vmatpush.bf16.msra.mxu0 %v667
        %736 = vmatpush.bf16.msra.mxu0 %v665
        %737 = vmatmul.bf16.gmra.mxu0 %v507
        %v738 = vpop.f32.mrf.mxu0
        %v739 = vadd.f32 %v565, %v738
        %v740 = vpop.f32.mrf.mxu0
        %v741 = vadd.f32 %v565, %v740
        %742 = vmatmul.bf16.gmra.mxu0 %v509
        %v743 = vpop.f32.mrf.mxu0
        %v744 = vadd.f32 %v565, %v743
        %v745 = vpop.f32.mrf.mxu0
        %v746 = vadd.f32 %v565, %v745
        %747 = vmatmul.bf16.gmra.mxu0 %v511
        %v748 = vpop.f32.mrf.mxu0
        %v749 = vadd.f32 %v565, %v748
        %v750 = vpop.f32.mrf.mxu0
        %v751 = vadd.f32 %v565, %v750
        %752 = vmatmul.bf16.gmra.mxu0 %v513
        %v753 = vpop.f32.mrf.mxu0
        %v754 = vadd.f32 %v565, %v753
        %v755 = vpop.f32.mrf.mxu0
        %v756 = vadd.f32 %v565, %v755
        %757 = vmatmul.bf16.gmra.mxu0 %v515
        %v758 = vpop.f32.mrf.mxu0
        %v759 = vadd.f32 %v565, %v758
        %v760 = vpop.f32.mrf.mxu0
        %v761 = vadd.f32 %v565, %v760
        %762 = vmatmul.bf16.gmra.mxu0 %v517
        %v763 = vpop.f32.mrf.mxu0
        %v764 = vadd.f32 %v565, %v763
        %v765 = vpop.f32.mrf.mxu0
        %v766 = vadd.f32 %v565, %v765
        %767 = vmatmul.bf16.gmra.mxu0 %v519
        %v768 = vpop.f32.mrf.mxu0
        %v769 = vadd.f32 %v565, %v768
        %v770 = vpop.f32.mrf.mxu0
        %v771 = vadd.f32 %v565, %v770
        %772 = vmatmul.bf16.gmra.mxu0 %v521
        %v773 = vpop.f32.mrf.mxu0
        %v774 = vadd.f32 %v565, %v773
        %v775 = vpop.f32.mrf.mxu0
        %v776 = vadd.f32 %v565, %v775
        %777 = vmatmul.bf16.gmra.mxu0 %v523
        %v778 = vpop.f32.mrf.mxu0
        %v779 = vadd.f32 %v565, %v778
        %v780 = vpop.f32.mrf.mxu0
        %v781 = vadd.f32 %v565, %v780
        %782 = vmatmul.bf16.gmra.mxu0 %v525
        %v783 = vpop.f32.mrf.mxu0
        %v784 = vadd.f32 %v565, %v783
        %v785 = vpop.f32.mrf.mxu0
        %v786 = vadd.f32 %v565, %v785
        %787 = vmatmul.bf16.gmra.mxu0 %v527
        %v788 = vpop.f32.mrf.mxu0
        %v789 = vadd.f32 %v565, %v788
        %v790 = vpop.f32.mrf.mxu0
        %v791 = vadd.f32 %v565, %v790
        %792 = vmatmul.bf16.gmra.mxu0 %v529
        %v793 = vpop.f32.mrf.mxu0
        %v794 = vadd.f32 %v565, %v793
        %v795 = vpop.f32.mrf.mxu0
        %v796 = vadd.f32 %v565, %v795
        %797 = vdwg.mxu0
        %798 = vmatpush.bf16.msra.mxu0 %v695
        %799 = vmatpush.bf16.msra.mxu0 %v693
        %800 = vmatpush.bf16.msra.mxu0 %v691
        %801 = vmatpush.bf16.msra.mxu0 %v689
        %802 = vmatpush.bf16.msra.mxu0 %v687
        %803 = vmatpush.bf16.msra.mxu0 %v685
        %804 = vmatpush.bf16.msra.mxu0 %v683
        %805 = vmatpush.bf16.msra.mxu0 %v681
        %806 = vmatmul.bf16.gmra.mxu0 %v508
        %v807 = vpop.f32.mrf.mxu0
        %v808 = vadd.f32 %v739, %v807
        %v809 = vpop.f32.mrf.mxu0
        %v810 = vadd.f32 %v741, %v809
        %811 = vmatmul.bf16.gmra.mxu0 %v510
        %v812 = vpop.f32.mrf.mxu0
        %v813 = vadd.f32 %v744, %v812
        %v814 = vpop.f32.mrf.mxu0
        %v815 = vadd.f32 %v746, %v814
        %816 = vmatmul.bf16.gmra.mxu0 %v512
        %v817 = vpop.f32.mrf.mxu0
        %v818 = vadd.f32 %v749, %v817
        %v819 = vpop.f32.mrf.mxu0
        %v820 = vadd.f32 %v751, %v819
        %821 = vmatmul.bf16.gmra.mxu0 %v514
        %v822 = vpop.f32.mrf.mxu0
        %v823 = vadd.f32 %v754, %v822
        %v824 = vpop.f32.mrf.mxu0
        %v825 = vadd.f32 %v756, %v824
        %826 = vmatmul.bf16.gmra.mxu0 %v516
        %v827 = vpop.f32.mrf.mxu0
        %v828 = vadd.f32 %v759, %v827
        %v829 = vpop.f32.mrf.mxu0
        %v830 = vadd.f32 %v761, %v829
        %831 = vmatmul.bf16.gmra.mxu0 %v518
        %v832 = vpop.f32.mrf.mxu0
        %v833 = vadd.f32 %v764, %v832
        %v834 = vpop.f32.mrf.mxu0
        %v835 = vadd.f32 %v766, %v834
        %836 = vmatmul.bf16.gmra.mxu0 %v520
        %v837 = vpop.f32.mrf.mxu0
        %v838 = vadd.f32 %v769, %v837
        %v839 = vpop.f32.mrf.mxu0
        %v840 = vadd.f32 %v771, %v839
        %841 = vmatmul.bf16.gmra.mxu0 %v522
        %v842 = vpop.f32.mrf.mxu0
        %v843 = vadd.f32 %v774, %v842
        %v844 = vpop.f32.mrf.mxu0
        %v845 = vadd.f32 %v776, %v844
        %846 = vmatmul.bf16.gmra.mxu0 %v524
        %v847 = vpop.f32.mrf.mxu0
        %v848 = vadd.f32 %v779, %v847
        %v849 = vpop.f32.mrf.mxu0
        %v850 = vadd.f32 %v781, %v849
        %851 = vmatmul.bf16.gmra.mxu0 %v526
        %v852 = vpop.f32.mrf.mxu0
        %v853 = vadd.f32 %v784, %v852
        %v854 = vpop.f32.mrf.mxu0
        %v855 = vadd.f32 %v786, %v854
        %856 = vmatmul.bf16.gmra.mxu0 %v528
        %v857 = vpop.f32.mrf.mxu0
        %v858 = vadd.f32 %v789, %v857
        %v859 = vpop.f32.mrf.mxu0
        %v860 = vadd.f32 %v791, %v859
        %861 = vmatmul.bf16.gmra.mxu0 %v530
        %v862 = vpop.f32.mrf.mxu0
        %v863 = vadd.f32 %v794, %v862
        %v864 = vpop.f32.mrf.mxu0
        %v865 = vadd.f32 %v796, %v864
        %866 = vdwg.mxu0
        %867 = vmatpush.bf16.msra.mxu0 %v680
        %868 = vmatpush.bf16.msra.mxu0 %v678
        %869 = vmatpush.bf16.msra.mxu0 %v676
        %870 = vmatpush.bf16.msra.mxu0 %v674
        %871 = vmatpush.bf16.msra.mxu0 %v672
        %872 = vmatpush.bf16.msra.mxu0 %v670
        %873 = vmatpush.bf16.msra.mxu0 %v668
        %874 = vmatpush.bf16.msra.mxu0 %v666
        %875 = vmatmul.bf16.gmra.mxu0 %v507
        %v876 = vpop.f32.mrf.mxu0
        %v877 = vadd.f32 %v566, %v876
        %v878 = vpop.f32.mrf.mxu0
        %v879 = vadd.f32 %v566, %v878
        %880 = vmatmul.bf16.gmra.mxu0 %v509
        %v881 = vpop.f32.mrf.mxu0
        %v882 = vadd.f32 %v566, %v881
        %v883 = vpop.f32.mrf.mxu0
        %v884 = vadd.f32 %v566, %v883
        %885 = vmatmul.bf16.gmra.mxu0 %v511
        %v886 = vpop.f32.mrf.mxu0
        %v887 = vadd.f32 %v566, %v886
        %v888 = vpop.f32.mrf.mxu0
        %v889 = vadd.f32 %v566, %v888
        %890 = vmatmul.bf16.gmra.mxu0 %v513
        %v891 = vpop.f32.mrf.mxu0
        %v892 = vadd.f32 %v566, %v891
        %v893 = vpop.f32.mrf.mxu0
        %v894 = vadd.f32 %v566, %v893
        %895 = vmatmul.bf16.gmra.mxu0 %v515
        %v896 = vpop.f32.mrf.mxu0
        %v897 = vadd.f32 %v566, %v896
        %v898 = vpop.f32.mrf.mxu0
        %v899 = vadd.f32 %v566, %v898
        %900 = vmatmul.bf16.gmra.mxu0 %v517
        %v901 = vpop.f32.mrf.mxu0
        %v902 = vadd.f32 %v566, %v901
        %v903 = vpop.f32.mrf.mxu0
        %v904 = vadd.f32 %v566, %v903
        %905 = vmatmul.bf16.gmra.mxu0 %v519
        %v906 = vpop.f32.mrf.mxu0
        %v907 = vadd.f32 %v566, %v906
        %v908 = vpop.f32.mrf.mxu0
        %v909 = vadd.f32 %v566, %v908
        %910 = vmatmul.bf16.gmra.mxu0 %v521
        %v911 = vpop.f32.mrf.mxu0
        %v912 = vadd.f32 %v566, %v911
        %v913 = vpop.f32.mrf.mxu0
        %v914 = vadd.f32 %v566, %v913
        %915 = vmatmul.bf16.gmra.mxu0 %v523
        %v916 = vpop.f32.mrf.mxu0
        %v917 = vadd.f32 %v566, %v916
        %v918 = vpop.f32.mrf.mxu0
        %v919 = vadd.f32 %v566, %v918
        %920 = vmatmul.bf16.gmra.mxu0 %v525
        %v921 = vpop.f32.mrf.mxu0
        %v922 = vadd.f32 %v566, %v921
        %v923 = vpop.f32.mrf.mxu0
        %v924 = vadd.f32 %v566, %v923
        %925 = vmatmul.bf16.gmra.mxu0 %v527
        %v926 = vpop.f32.mrf.mxu0
        %v927 = vadd.f32 %v566, %v926
        %v928 = vpop.f32.mrf.mxu0
        %v929 = vadd.f32 %v566, %v928
        %930 = vmatmul.bf16.gmra.mxu0 %v529
        %v931 = vpop.f32.mrf.mxu0
        %v932 = vadd.f32 %v566, %v931
        %v933 = vpop.f32.mrf.mxu0
        %v934 = vadd.f32 %v566, %v933
        %935 = vdwg.mxu0
        %936 = vmatpush.bf16.msra.mxu0 %v696
        %937 = vmatpush.bf16.msra.mxu0 %v694
        %938 = vmatpush.bf16.msra.mxu0 %v692
        %939 = vmatpush.bf16.msra.mxu0 %v690
        %940 = vmatpush.bf16.msra.mxu0 %v688
        %941 = vmatpush.bf16.msra.mxu0 %v686
        %942 = vmatpush.bf16.msra.mxu0 %v684
        %943 = vmatpush.bf16.msra.mxu0 %v682
        %944 = vmatmul.bf16.gmra.mxu0 %v508
        %v945 = vpop.f32.mrf.mxu0
        %v946 = vadd.f32 %v877, %v945
        %v947 = vpop.f32.mrf.mxu0
        %v948 = vadd.f32 %v879, %v947
        %949 = vmatmul.bf16.gmra.mxu0 %v510
        %v950 = vpop.f32.mrf.mxu0
        %v951 = vadd.f32 %v882, %v950
        %v952 = vpop.f32.mrf.mxu0
        %v953 = vadd.f32 %v884, %v952
        %954 = vmatmul.bf16.gmra.mxu0 %v512
        %v955 = vpop.f32.mrf.mxu0
        %v956 = vadd.f32 %v887, %v955
        %v957 = vpop.f32.mrf.mxu0
        %v958 = vadd.f32 %v889, %v957
        %959 = vmatmul.bf16.gmra.mxu0 %v514
        %v960 = vpop.f32.mrf.mxu0
        %v961 = vadd.f32 %v892, %v960
        %v962 = vpop.f32.mrf.mxu0
        %v963 = vadd.f32 %v894, %v962
        %964 = vmatmul.bf16.gmra.mxu0 %v516
        %v965 = vpop.f32.mrf.mxu0
        %v966 = vadd.f32 %v897, %v965
        %v967 = vpop.f32.mrf.mxu0
        %v968 = vadd.f32 %v899, %v967
        %969 = vmatmul.bf16.gmra.mxu0 %v518
        %v970 = vpop.f32.mrf.mxu0
        %v971 = vadd.f32 %v902, %v970
        %v972 = vpop.f32.mrf.mxu0
        %v973 = vadd.f32 %v904, %v972
        %974 = vmatmul.bf16.gmra.mxu0 %v520
        %v975 = vpop.f32.mrf.mxu0
        %v976 = vadd.f32 %v907, %v975
        %v977 = vpop.f32.mrf.mxu0
        %v978 = vadd.f32 %v909, %v977
        %979 = vmatmul.bf16.gmra.mxu0 %v522
        %v980 = vpop.f32.mrf.mxu0
        %v981 = vadd.f32 %v912, %v980
        %v982 = vpop.f32.mrf.mxu0
        %v983 = vadd.f32 %v914, %v982
        %984 = vmatmul.bf16.gmra.mxu0 %v524
        %v985 = vpop.f32.mrf.mxu0
        %v986 = vadd.f32 %v917, %v985
        %v987 = vpop.f32.mrf.mxu0
        %v988 = vadd.f32 %v919, %v987
        %989 = vmatmul.bf16.gmra.mxu0 %v526
        %v990 = vpop.f32.mrf.mxu0
        %v991 = vadd.f32 %v922, %v990
        %v992 = vpop.f32.mrf.mxu0
        %v993 = vadd.f32 %v924, %v992
        %994 = vmatmul.bf16.gmra.mxu0 %v528
        %v995 = vpop.f32.mrf.mxu0
        %v996 = vadd.f32 %v927, %v995
        %v997 = vpop.f32.mrf.mxu0
        %v998 = vadd.f32 %v929, %v997
        %999 = vmatmul.bf16.gmra.mxu0 %v530
        %v1000 = vpop.f32.mrf.mxu0
        %v1001 = vadd.f32 %v932, %v1000
        %v1002 = vpop.f32.mrf.mxu0
        %v1003 = vadd.f32 %v934, %v1002
        %1004 = vdwg.mxu0
        %v1005 = vmax.f32 %v808, 0.0
        %v1006 = vmax.f32 %v946, 0.0
        %v1007 = vmax.f32 %v810, 0.0
        %v1008 = vmax.f32 %v948, 0.0
        %v1009 = vmax.f32 %v813, 0.0
        %v1010 = vmax.f32 %v951, 0.0
        %v1011 = vmax.f32 %v815, 0.0
        %v1012 = vmax.f32 %v953, 0.0
        %v1013 = vmax.f32 %v818, 0.0
        %v1014 = vmax.f32 %v956, 0.0
        %v1015 = vmax.f32 %v820, 0.0
        %v1016 = vmax.f32 %v958, 0.0
        %v1017 = vmax.f32 %v823, 0.0
        %v1018 = vmax.f32 %v961, 0.0
        %v1019 = vmax.f32 %v825, 0.0
        %v1020 = vmax.f32 %v963, 0.0
        %v1021 = vmax.f32 %v828, 0.0
        %v1022 = vmax.f32 %v966, 0.0
        %v1023 = vmax.f32 %v830, 0.0
        %v1024 = vmax.f32 %v968, 0.0
        %v1025 = vmax.f32 %v833, 0.0
        %v1026 = vmax.f32 %v971, 0.0
        %v1027 = vmax.f32 %v835, 0.0
        %v1028 = vmax.f32 %v973, 0.0
        %v1029 = vmax.f32 %v838, 0.0
        %v1030 = vmax.f32 %v976, 0.0
        %v1031 = vmax.f32 %v840, 0.0
        %v1032 = vmax.f32 %v978, 0.0
        %v1033 = vmax.f32 %v843, 0.0
        %v1034 = vmax.f32 %v981, 0.0
        %v1035 = vmax.f32 %v845, 0.0
        %v1036 = vmax.f32 %v983, 0.0
        %v1037 = vmax.f32 %v848, 0.0
        %v1038 = vmax.f32 %v986, 0.0
        %v1039 = vmax.f32 %v850, 0.0
        %v1040 = vmax.f32 %v988, 0.0
        %v1041 = vmax.f32 %v853, 0.0
        %v1042 = vmax.f32 %v991, 0.0
        %v1043 = vmax.f32 %v855, 0.0
        %v1044 = vmax.f32 %v993, 0.0
        %v1045 = vmax.f32 %v858, 0.0
        %v1046 = vmax.f32 %v996, 0.0
        %v1047 = vmax.f32 %v860, 0.0
        %v1048 = vmax.f32 %v998, 0.0
        %v1049 = vmax.f32 %v863, 0.0
        %v1050 = vmax.f32 %v1001, 0.0
        %v1051 = vmax.f32 %v865, 0.0
        %v1052 = vmax.f32 %v1003, 0.0
        %v1053 = vpack.c.bf16 %v1007, %v1005
        %v1054 = vpack.c.bf16 %v1008, %v1006
        %v1055 = vpack.c.bf16 %v1011, %v1009
        %v1056 = vpack.c.bf16 %v1012, %v1010
        %v1057 = vpack.c.bf16 %v1015, %v1013
        %v1058 = vpack.c.bf16 %v1016, %v1014
        %v1059 = vpack.c.bf16 %v1019, %v1017
        %v1060 = vpack.c.bf16 %v1020, %v1018
        %v1061 = vpack.c.bf16 %v1023, %v1021
        %v1062 = vpack.c.bf16 %v1024, %v1022
        %v1063 = vpack.c.bf16 %v1027, %v1025
        %v1064 = vpack.c.bf16 %v1028, %v1026
        %v1065 = vpack.c.bf16 %v1031, %v1029
        %v1066 = vpack.c.bf16 %v1032, %v1030
        %v1067 = vpack.c.bf16 %v1035, %v1033
        %v1068 = vpack.c.bf16 %v1036, %v1034
        %v1069 = vpack.c.bf16 %v1039, %v1037
        %v1070 = vpack.c.bf16 %v1040, %v1038
        %v1071 = vpack.c.bf16 %v1043, %v1041
        %v1072 = vpack.c.bf16 %v1044, %v1042
        %v1073 = vpack.c.bf16 %v1047, %v1045
        %v1074 = vpack.c.bf16 %v1048, %v1046
        %v1075 = vpack.c.bf16 %v1051, %v1049
        %v1076 = vpack.c.bf16 %v1052, %v1050
        %v1077 = vld [vmem:[#allocation8] sm:$0xf]
        %v1078 = vld [vmem:[#allocation8 + $0x4] sm:$0xf]
        %v1079 = vld [vmem:[#allocation8 + $0x8] sm:$0xf]
        %v1080 = vld [vmem:[#allocation8 + $0xc] sm:$0xf]
        %v1081 = vld [vmem:[#allocation8 + $0x10] sm:$0xf]
        %v1082 = vld [vmem:[#allocation8 + $0x14] sm:$0xf]
        %v1083 = vld [vmem:[#allocation8 + $0x18] sm:$0xf]
        %v1084 = vld [vmem:[#allocation8 + $0x1c] sm:$0xf]
        %v1085 = vld [vmem:[#allocation8 + $0x20] sm:$0xf]
        %v1086 = vld [vmem:[#allocation8 + $0x24] sm:$0xf]
        %v1087 = vld [vmem:[#allocation8 + $0x28] sm:$0xf]
        %v1088 = vld [vmem:[#allocation8 + $0x2c] sm:$0xf]
        %v1089 = vld [vmem:[#allocation8 + $0x30] sm:$0xf]
        %v1090 = vld [vmem:[#allocation8 + $0x34] sm:$0xf]
        %v1091 = vld [vmem:[#allocation8 + $0x38] sm:$0xf]
        %v1092 = vld [vmem:[#allocation8 + $0x3c] sm:$0xf]
        %v1093 = vld [vmem:[#allocation8 + $0x40] sm:$0xf]
        %v1094 = vld [vmem:[#allocation8 + $0x44] sm:$0xf]
        %v1095 = vld [vmem:[#allocation8 + $0x48] sm:$0xf]
        %v1096 = vld [vmem:[#allocation8 + $0x4c] sm:$0xf]
        %v1097 = vld [vmem:[#allocation8 + $0x50] sm:$0xf]
        %v1098 = vld [vmem:[#allocation8 + $0x54] sm:$0xf]
        %v1099 = vld [vmem:[#allocation8 + $0x58] sm:$0xf]
        %v1100 = vld [vmem:[#allocation8 + $0x5c] sm:$0xf]
        %v1101 = vld [vmem:[#allocation8 + $0x60] sm:$0xf]
        %v1102 = vld [vmem:[#allocation8 + $0x64] sm:$0xf]
        %v1103 = vld [vmem:[#allocation8 + $0x68] sm:$0xf]
        %v1104 = vld [vmem:[#allocation8 + $0x6c] sm:$0xf]
        %v1105 = vld [vmem:[#allocation8 + $0x70] sm:$0xf]
        %v1106 = vld [vmem:[#allocation8 + $0x74] sm:$0xf]
        %v1107 = vld [vmem:[#allocation8 + $0x78] sm:$0xf]
        %v1108 = vld [vmem:[#allocation8 + $0x7c] sm:$0xf]
        %v1109 = vld [vmem:[#allocation10] sm:$0xf]
        %v1110 = vld [vmem:[#allocation10 + $0x4] sm:$0xf]
        %v1111 = vld [vmem:[#allocation10 + $0x8] sm:$0xf]
        %v1112 = vld [vmem:[#allocation10 + $0xc] sm:$0xf]
        %v1113 = vld [vmem:[#allocation10 + $0x10] sm:$0xf]
        %v1114 = vld [vmem:[#allocation10 + $0x14] sm:$0xf]
        %v1115 = vld [vmem:[#allocation10 + $0x18] sm:$0xf]
        %v1116 = vld [vmem:[#allocation10 + $0x1c] sm:$0xf]
        %v1117 = vld [vmem:[#allocation10 + $0x20] sm:$0xf]
        %v1118 = vld [vmem:[#allocation10 + $0x24] sm:$0xf]
        %v1119 = vld [vmem:[#allocation10 + $0x28] sm:$0xf]
        %v1120 = vld [vmem:[#allocation10 + $0x2c] sm:$0xf]
        %v1121 = vld [vmem:[#allocation10 + $0x30] sm:$0xf]
        %v1122 = vld [vmem:[#allocation10 + $0x34] sm:$0xf]
        %v1123 = vld [vmem:[#allocation10 + $0x38] sm:$0xf]
        %v1124 = vld [vmem:[#allocation10 + $0x3c] sm:$0xf]
        %v1125 = vld [vmem:[#allocation10 + $0x40] sm:$0xf]
        %v1126 = vld [vmem:[#allocation10 + $0x44] sm:$0xf]
        %v1127 = vld [vmem:[#allocation10 + $0x48] sm:$0xf]
        %v1128 = vld [vmem:[#allocation10 + $0x4c] sm:$0xf]
        %v1129 = vld [vmem:[#allocation10 + $0x50] sm:$0xf]
        %v1130 = vld [vmem:[#allocation10 + $0x54] sm:$0xf]
        %v1131 = vld [vmem:[#allocation10 + $0x58] sm:$0xf]
        %v1132 = vld [vmem:[#allocation10 + $0x5c] sm:$0xf]
        %v1133 = vld [vmem:[#allocation10 + $0x60] sm:$0xf]
        %v1134 = vld [vmem:[#allocation10 + $0x64] sm:$0xf]
        %v1135 = vld [vmem:[#allocation10 + $0x68] sm:$0xf]
        %v1136 = vld [vmem:[#allocation10 + $0x6c] sm:$0xf]
        %v1137 = vld [vmem:[#allocation10 + $0x70] sm:$0xf]
        %v1138 = vld [vmem:[#allocation10 + $0x74] sm:$0xf]
        %v1139 = vld [vmem:[#allocation10 + $0x78] sm:$0xf]
        %v1140 = vld [vmem:[#allocation10 + $0x7c] sm:$0xf]
        %v1165 = vunpack.c.l.b16 %v387
        %v1166 = vunpack.c.h.b16 %v387
        %v1167 = vunpack.c.l.b16 %v388
        %v1168 = vunpack.c.h.b16 %v388
        %v1169 = vunpack.c.l.b16 %v389
        %v1170 = vunpack.c.h.b16 %v389
        %v1171 = vunpack.c.l.b16 %v390
        %v1172 = vunpack.c.h.b16 %v390
        %v1173 = vunpack.c.l.b16 %v391
        %v1174 = vunpack.c.h.b16 %v391
        %v1175 = vunpack.c.l.b16 %v392
        %v1176 = vunpack.c.h.b16 %v392
        %v1177 = vunpack.c.l.b16 %v393
        %v1178 = vunpack.c.h.b16 %v393
        %v1179 = vunpack.c.l.b16 %v394
        %v1180 = vunpack.c.h.b16 %v394
        %v1181 = vunpack.c.l.b16 %v395
        %v1182 = vunpack.c.h.b16 %v395
        %v1183 = vunpack.c.l.b16 %v396
        %v1184 = vunpack.c.h.b16 %v396
        %v1185 = vunpack.c.l.b16 %v397
        %v1186 = vunpack.c.h.b16 %v397
        %v1187 = vunpack.c.l.b16 %v398
        %v1188 = vunpack.c.h.b16 %v398
        %v1189 = vunpack.c.l.b16 %v399
        %v1190 = vunpack.c.h.b16 %v399
        %v1191 = vunpack.c.l.b16 %v400
        %v1192 = vunpack.c.h.b16 %v400
        %v1193 = vunpack.c.l.b16 %v401
        %v1194 = vunpack.c.h.b16 %v401
        %v1195 = vunpack.c.l.b16 %v402
        %v1196 = vunpack.c.h.b16 %v402
        %v1197 = vunpack.c.l.b16 %v403
        %v1198 = vunpack.c.h.b16 %v403
        %v1199 = vunpack.c.l.b16 %v404
        %v1200 = vunpack.c.h.b16 %v404
        %v1201 = vunpack.c.l.b16 %v405
        %v1202 = vunpack.c.h.b16 %v405
        %v1203 = vunpack.c.l.b16 %v406
        %v1204 = vunpack.c.h.b16 %v406
        %v1205 = vunpack.c.l.b16 %v407
        %v1206 = vunpack.c.h.b16 %v407
        %v1207 = vunpack.c.l.b16 %v408
        %v1208 = vunpack.c.h.b16 %v408
        %v1209 = vunpack.c.l.b16 %v409
        %v1210 = vunpack.c.h.b16 %v409
        %v1211 = vunpack.c.l.b16 %v410
        %v1212 = vunpack.c.h.b16 %v410
        %v1213 = vpack.c.b16 %v1167, %v1165
        %v1214 = vpack.c.b16 %v1168, %v1166
        %v1215 = vpack.c.b16 %v1171, %v1169
        %v1216 = vpack.c.b16 %v1172, %v1170
        %v1217 = vpack.c.b16 %v1175, %v1173
        %v1218 = vpack.c.b16 %v1176, %v1174
        %v1219 = vpack.c.b16 %v1179, %v1177
        %v1220 = vpack.c.b16 %v1180, %v1178
        %v1221 = vpack.c.b16 %v1183, %v1181
        %v1222 = vpack.c.b16 %v1184, %v1182
        %v1223 = vpack.c.b16 %v1187, %v1185
        %v1224 = vpack.c.b16 %v1188, %v1186
        %v1225 = vpack.c.b16 %v1191, %v1189
        %v1226 = vpack.c.b16 %v1192, %v1190
        %v1227 = vpack.c.b16 %v1195, %v1193
        %v1228 = vpack.c.b16 %v1196, %v1194
        %v1229 = vpack.c.b16 %v1199, %v1197
        %v1230 = vpack.c.b16 %v1200, %v1198
        %v1231 = vpack.c.b16 %v1203, %v1201
        %v1232 = vpack.c.b16 %v1204, %v1202
        %v1233 = vpack.c.b16 %v1207, %v1205
        %v1234 = vpack.c.b16 %v1208, %v1206
        %v1235 = vpack.c.b16 %v1211, %v1209
        %v1236 = vpack.c.b16 %v1212, %v1210
        %v1293 = vunpack.c.l.b16 %v1109
        %v1294 = vunpack.c.l.b16 %v1110
        %v1295 = vunpack.c.l.b16 %v1111
        %v1296 = vunpack.c.l.b16 %v1112
        %v1297 = vunpack.c.l.b16 %v1113
        %v1298 = vunpack.c.l.b16 %v1114
        %v1299 = vunpack.c.l.b16 %v1115
        %v1300 = vunpack.c.l.b16 %v1116
        %v1301 = vunpack.c.l.b16 %v1117
        %v1302 = vunpack.c.l.b16 %v1118
        %v1303 = vunpack.c.l.b16 %v1119
        %v1304 = vunpack.c.l.b16 %v1120
        %v1305 = vunpack.c.l.b16 %v1121
        %v1306 = vunpack.c.l.b16 %v1122
        %v1307 = vunpack.c.l.b16 %v1123
        %v1308 = vunpack.c.l.b16 %v1124
        %v1309 = vunpack.c.l.b16 %v1125
        %v1310 = vunpack.c.l.b16 %v1126
        %v1311 = vunpack.c.l.b16 %v1127
        %v1312 = vunpack.c.l.b16 %v1128
        %v1313 = vunpack.c.l.b16 %v1129
        %v1314 = vunpack.c.l.b16 %v1130
        %v1315 = vunpack.c.l.b16 %v1131
        %v1316 = vunpack.c.l.b16 %v1132
        %v1317 = vunpack.c.l.b16 %v1133
        %v1318 = vunpack.c.l.b16 %v1134
        %v1319 = vunpack.c.l.b16 %v1135
        %v1320 = vunpack.c.l.b16 %v1136
        %v1321 = vunpack.c.l.b16 %v1137
        %v1322 = vunpack.c.l.b16 %v1138
        %v1323 = vunpack.c.l.b16 %v1139
        %v1324 = vunpack.c.l.b16 %v1140
        %v1325 = vpack.c.b16 %v1294, %v1293
        %v1326 = vpack.c.b16 %v1296, %v1295
        %v1327 = vpack.c.b16 %v1298, %v1297
        %v1328 = vpack.c.b16 %v1300, %v1299
        %v1329 = vpack.c.b16 %v1302, %v1301
        %v1330 = vpack.c.b16 %v1304, %v1303
        %v1331 = vpack.c.b16 %v1306, %v1305
        %v1332 = vpack.c.b16 %v1308, %v1307
        %v1333 = vpack.c.b16 %v1310, %v1309
        %v1334 = vpack.c.b16 %v1312, %v1311
        %v1335 = vpack.c.b16 %v1314, %v1313
        %v1336 = vpack.c.b16 %v1316, %v1315
        %v1337 = vpack.c.b16 %v1318, %v1317
        %v1338 = vpack.c.b16 %v1320, %v1319
        %v1339 = vpack.c.b16 %v1322, %v1321
        %v1340 = vpack.c.b16 %v1324, %v1323
        %1357 = vmatpush.bf16.msra.mxu0 %v1332
        %1358 = vmatpush.bf16.msra.mxu0 %v1331
        %1359 = vmatpush.bf16.msra.mxu0 %v1330
        %1360 = vmatpush.bf16.msra.mxu0 %v1329
        %1361 = vmatpush.bf16.msra.mxu0 %v1328
        %1362 = vmatpush.bf16.msra.mxu0 %v1327
        %1363 = vmatpush.bf16.msra.mxu0 %v1326
        %1364 = vmatpush.bf16.msra.mxu0 %v1325
        %1365 = vmatmul.bf16.gmra.mxu0 %v1213
        %v1366 = vpop.f32.mrf.mxu0
        %v1367 = vadd.f32 0.0, %v1366
        %v1368 = vpop.f32.mrf.mxu0
        %v1369 = vadd.f32 0.0, %v1368
        %1370 = vmatmul.bf16.gmra.mxu0 %v1215
        %v1371 = vpop.f32.mrf.mxu0
        %v1372 = vadd.f32 0.0, %v1371
        %v1373 = vpop.f32.mrf.mxu0
        %v1374 = vadd.f32 0.0, %v1373
        %1375 = vmatmul.bf16.gmra.mxu0 %v1217
        %v1376 = vpop.f32.mrf.mxu0
        %v1377 = vadd.f32 0.0, %v1376
        %v1378 = vpop.f32.mrf.mxu0
        %v1379 = vadd.f32 0.0, %v1378
        %1380 = vmatmul.bf16.gmra.mxu0 %v1219
        %v1381 = vpop.f32.mrf.mxu0
        %v1382 = vadd.f32 0.0, %v1381
        %v1383 = vpop.f32.mrf.mxu0
        %v1384 = vadd.f32 0.0, %v1383
        %1385 = vmatmul.bf16.gmra.mxu0 %v1221
        %v1386 = vpop.f32.mrf.mxu0
        %v1387 = vadd.f32 0.0, %v1386
        %v1388 = vpop.f32.mrf.mxu0
        %v1389 = vadd.f32 0.0, %v1388
        %1390 = vmatmul.bf16.gmra.mxu0 %v1223
        %v1391 = vpop.f32.mrf.mxu0
        %v1392 = vadd.f32 0.0, %v1391
        %v1393 = vpop.f32.mrf.mxu0
        %v1394 = vadd.f32 0.0, %v1393
        %1395 = vmatmul.bf16.gmra.mxu0 %v1225
        %v1396 = vpop.f32.mrf.mxu0
        %v1397 = vadd.f32 0.0, %v1396
        %v1398 = vpop.f32.mrf.mxu0
        %v1399 = vadd.f32 0.0, %v1398
        %1400 = vmatmul.bf16.gmra.mxu0 %v1227
        %v1401 = vpop.f32.mrf.mxu0
        %v1402 = vadd.f32 0.0, %v1401
        %v1403 = vpop.f32.mrf.mxu0
        %v1404 = vadd.f32 0.0, %v1403
        %1405 = vmatmul.bf16.gmra.mxu0 %v1229
        %v1406 = vpop.f32.mrf.mxu0
        %v1407 = vadd.f32 0.0, %v1406
        %v1408 = vpop.f32.mrf.mxu0
        %v1409 = vadd.f32 0.0, %v1408
        %1410 = vmatmul.bf16.gmra.mxu0 %v1231
        %v1411 = vpop.f32.mrf.mxu0
        %v1412 = vadd.f32 0.0, %v1411
        %v1413 = vpop.f32.mrf.mxu0
        %v1414 = vadd.f32 0.0, %v1413
        %1415 = vmatmul.bf16.gmra.mxu0 %v1233
        %v1416 = vpop.f32.mrf.mxu0
        %v1417 = vadd.f32 0.0, %v1416
        %v1418 = vpop.f32.mrf.mxu0
        %v1419 = vadd.f32 0.0, %v1418
        %1420 = vmatmul.bf16.gmra.mxu0 %v1235
        %v1421 = vpop.f32.mrf.mxu0
        %v1422 = vadd.f32 0.0, %v1421
        %v1423 = vpop.f32.mrf.mxu0
        %v1424 = vadd.f32 0.0, %v1423
        %1425 = vdwg.mxu0
        %1426 = vmatpush.bf16.msra.mxu0 %v1340
        %1427 = vmatpush.bf16.msra.mxu0 %v1339
        %1428 = vmatpush.bf16.msra.mxu0 %v1338
        %1429 = vmatpush.bf16.msra.mxu0 %v1337
        %1430 = vmatpush.bf16.msra.mxu0 %v1336
        %1431 = vmatpush.bf16.msra.mxu0 %v1335
        %1432 = vmatpush.bf16.msra.mxu0 %v1334
        %1433 = vmatpush.bf16.msra.mxu0 %v1333
        %1434 = vmatmul.bf16.gmra.mxu0 %v1214
        %v1435 = vpop.f32.mrf.mxu0
        %v1436 = vadd.f32 %v1367, %v1435
        %v1437 = vpop.f32.mrf.mxu0
        %v1438 = vadd.f32 %v1369, %v1437
        %1439 = vmatmul.bf16.gmra.mxu0 %v1216
        %v1440 = vpop.f32.mrf.mxu0
        %v1441 = vadd.f32 %v1372, %v1440
        %v1442 = vpop.f32.mrf.mxu0
        %v1443 = vadd.f32 %v1374, %v1442
        %1444 = vmatmul.bf16.gmra.mxu0 %v1218
        %v1445 = vpop.f32.mrf.mxu0
        %v1446 = vadd.f32 %v1377, %v1445
        %v1447 = vpop.f32.mrf.mxu0
        %v1448 = vadd.f32 %v1379, %v1447
        %1449 = vmatmul.bf16.gmra.mxu0 %v1220
        %v1450 = vpop.f32.mrf.mxu0
        %v1451 = vadd.f32 %v1382, %v1450
        %v1452 = vpop.f32.mrf.mxu0
        %v1453 = vadd.f32 %v1384, %v1452
        %1454 = vmatmul.bf16.gmra.mxu0 %v1222
        %v1455 = vpop.f32.mrf.mxu0
        %v1456 = vadd.f32 %v1387, %v1455
        %v1457 = vpop.f32.mrf.mxu0
        %v1458 = vadd.f32 %v1389, %v1457
        %1459 = vmatmul.bf16.gmra.mxu0 %v1224
        %v1460 = vpop.f32.mrf.mxu0
        %v1461 = vadd.f32 %v1392, %v1460
        %v1462 = vpop.f32.mrf.mxu0
        %v1463 = vadd.f32 %v1394, %v1462
        %1464 = vmatmul.bf16.gmra.mxu0 %v1226
        %v1465 = vpop.f32.mrf.mxu0
        %v1466 = vadd.f32 %v1397, %v1465
        %v1467 = vpop.f32.mrf.mxu0
        %v1468 = vadd.f32 %v1399, %v1467
        %1469 = vmatmul.bf16.gmra.mxu0 %v1228
        %v1470 = vpop.f32.mrf.mxu0
        %v1471 = vadd.f32 %v1402, %v1470
        %v1472 = vpop.f32.mrf.mxu0
        %v1473 = vadd.f32 %v1404, %v1472
        %1474 = vmatmul.bf16.gmra.mxu0 %v1230
        %v1475 = vpop.f32.mrf.mxu0
        %v1476 = vadd.f32 %v1407, %v1475
        %v1477 = vpop.f32.mrf.mxu0
        %v1478 = vadd.f32 %v1409, %v1477
        %1479 = vmatmul.bf16.gmra.mxu0 %v1232
        %v1480 = vpop.f32.mrf.mxu0
        %v1481 = vadd.f32 %v1412, %v1480
        %v1482 = vpop.f32.mrf.mxu0
        %v1483 = vadd.f32 %v1414, %v1482
        %1484 = vmatmul.bf16.gmra.mxu0 %v1234
        %v1485 = vpop.f32.mrf.mxu0
        %v1486 = vadd.f32 %v1417, %v1485
        %v1487 = vpop.f32.mrf.mxu0
        %v1488 = vadd.f32 %v1419, %v1487
        %1489 = vmatmul.bf16.gmra.mxu0 %v1236
        %v1490 = vpop.f32.mrf.mxu0
        %v1491 = vadd.f32 %v1422, %v1490
        %v1492 = vpop.f32.mrf.mxu0
        %v1493 = vadd.f32 %v1424, %v1492
        %1494 = vdwg.mxu0
        %v1527 = vunpack.c.l.b16 %v1077
        %v1528 = vunpack.c.l.b16 %v1078
        %v1529 = vunpack.c.l.b16 %v1079
        %v1530 = vunpack.c.l.b16 %v1080
        %v1531 = vunpack.c.l.b16 %v1081
        %v1532 = vunpack.c.l.b16 %v1082
        %v1533 = vunpack.c.l.b16 %v1083
        %v1534 = vunpack.c.l.b16 %v1084
        %v1535 = vunpack.c.l.b16 %v1085
        %v1536 = vunpack.c.l.b16 %v1086
        %v1537 = vunpack.c.l.b16 %v1087
        %v1538 = vunpack.c.l.b16 %v1088
        %v1539 = vunpack.c.l.b16 %v1089
        %v1540 = vunpack.c.l.b16 %v1090
        %v1541 = vunpack.c.l.b16 %v1091
        %v1542 = vunpack.c.l.b16 %v1092
        %v1543 = vunpack.c.l.b16 %v1093
        %v1544 = vunpack.c.l.b16 %v1094
        %v1545 = vunpack.c.l.b16 %v1095
        %v1546 = vunpack.c.l.b16 %v1096
        %v1547 = vunpack.c.l.b16 %v1097
        %v1548 = vunpack.c.l.b16 %v1098
        %v1549 = vunpack.c.l.b16 %v1099
        %v1550 = vunpack.c.l.b16 %v1100
        %v1551 = vunpack.c.l.b16 %v1101
        %v1552 = vunpack.c.l.b16 %v1102
        %v1553 = vunpack.c.l.b16 %v1103
        %v1554 = vunpack.c.l.b16 %v1104
        %v1555 = vunpack.c.l.b16 %v1105
        %v1556 = vunpack.c.l.b16 %v1106
        %v1557 = vunpack.c.l.b16 %v1107
        %v1558 = vunpack.c.l.b16 %v1108
        %v1559 = vpack.c.b16 %v1528, %v1527
        %v1560 = vpack.c.b16 %v1530, %v1529
        %v1561 = vpack.c.b16 %v1532, %v1531
        %v1562 = vpack.c.b16 %v1534, %v1533
        %v1563 = vpack.c.b16 %v1536, %v1535
        %v1564 = vpack.c.b16 %v1538, %v1537
        %v1565 = vpack.c.b16 %v1540, %v1539
        %v1566 = vpack.c.b16 %v1542, %v1541
        %v1567 = vpack.c.b16 %v1544, %v1543
        %v1568 = vpack.c.b16 %v1546, %v1545
        %v1569 = vpack.c.b16 %v1548, %v1547
        %v1570 = vpack.c.b16 %v1550, %v1549
        %v1571 = vpack.c.b16 %v1552, %v1551
        %v1572 = vpack.c.b16 %v1554, %v1553
        %v1573 = vpack.c.b16 %v1556, %v1555
        %v1574 = vpack.c.b16 %v1558, %v1557
        %1591 = vmatpush.bf16.msra.mxu0 %v1566
        %1592 = vmatpush.bf16.msra.mxu0 %v1565
        %1593 = vmatpush.bf16.msra.mxu0 %v1564
        %1594 = vmatpush.bf16.msra.mxu0 %v1563
        %1595 = vmatpush.bf16.msra.mxu0 %v1562
        %1596 = vmatpush.bf16.msra.mxu0 %v1561
        %1597 = vmatpush.bf16.msra.mxu0 %v1560
        %1598 = vmatpush.bf16.msra.mxu0 %v1559
        %1599 = vmatmul.bf16.gmra.mxu0 %v1053
        %v1600 = vpop.f32.mrf.mxu0
        %v1601 = vadd.f32 %v1436, %v1600
        %v1602 = vpop.f32.mrf.mxu0
        %v1603 = vadd.f32 %v1438, %v1602
        %1604 = vmatmul.bf16.gmra.mxu0 %v1055
        %v1605 = vpop.f32.mrf.mxu0
        %v1606 = vadd.f32 %v1441, %v1605
        %v1607 = vpop.f32.mrf.mxu0
        %v1608 = vadd.f32 %v1443, %v1607
        %1609 = vmatmul.bf16.gmra.mxu0 %v1057
        %v1610 = vpop.f32.mrf.mxu0
        %v1611 = vadd.f32 %v1446, %v1610
        %v1612 = vpop.f32.mrf.mxu0
        %v1613 = vadd.f32 %v1448, %v1612
        %1614 = vmatmul.bf16.gmra.mxu0 %v1059
        %v1615 = vpop.f32.mrf.mxu0
        %v1616 = vadd.f32 %v1451, %v1615
        %v1617 = vpop.f32.mrf.mxu0
        %v1618 = vadd.f32 %v1453, %v1617
        %1619 = vmatmul.bf16.gmra.mxu0 %v1061
        %v1620 = vpop.f32.mrf.mxu0
        %v1621 = vadd.f32 %v1456, %v1620
        %v1622 = vpop.f32.mrf.mxu0
        %v1623 = vadd.f32 %v1458, %v1622
        %1624 = vmatmul.bf16.gmra.mxu0 %v1063
        %v1625 = vpop.f32.mrf.mxu0
        %v1626 = vadd.f32 %v1461, %v1625
        %v1627 = vpop.f32.mrf.mxu0
        %v1628 = vadd.f32 %v1463, %v1627
        %1629 = vmatmul.bf16.gmra.mxu0 %v1065
        %v1630 = vpop.f32.mrf.mxu0
        %v1631 = vadd.f32 %v1466, %v1630
        %v1632 = vpop.f32.mrf.mxu0
        %v1633 = vadd.f32 %v1468, %v1632
        %1634 = vmatmul.bf16.gmra.mxu0 %v1067
        %v1635 = vpop.f32.mrf.mxu0
        %v1636 = vadd.f32 %v1471, %v1635
        %v1637 = vpop.f32.mrf.mxu0
        %v1638 = vadd.f32 %v1473, %v1637
        %1639 = vmatmul.bf16.gmra.mxu0 %v1069
        %v1640 = vpop.f32.mrf.mxu0
        %v1641 = vadd.f32 %v1476, %v1640
        %v1642 = vpop.f32.mrf.mxu0
        %v1643 = vadd.f32 %v1478, %v1642
        %1644 = vmatmul.bf16.gmra.mxu0 %v1071
        %v1645 = vpop.f32.mrf.mxu0
        %v1646 = vadd.f32 %v1481, %v1645
        %v1647 = vpop.f32.mrf.mxu0
        %v1648 = vadd.f32 %v1483, %v1647
        %1649 = vmatmul.bf16.gmra.mxu0 %v1073
        %v1650 = vpop.f32.mrf.mxu0
        %v1651 = vadd.f32 %v1486, %v1650
        %v1652 = vpop.f32.mrf.mxu0
        %v1653 = vadd.f32 %v1488, %v1652
        %1654 = vmatmul.bf16.gmra.mxu0 %v1075
        %v1655 = vpop.f32.mrf.mxu0
        %v1656 = vadd.f32 %v1491, %v1655
        %v1657 = vpop.f32.mrf.mxu0
        %v1658 = vadd.f32 %v1493, %v1657
        %1659 = vdwg.mxu0
        %1660 = vmatpush.bf16.msra.mxu0 %v1574
        %1661 = vmatpush.bf16.msra.mxu0 %v1573
        %1662 = vmatpush.bf16.msra.mxu0 %v1572
        %1663 = vmatpush.bf16.msra.mxu0 %v1571
        %1664 = vmatpush.bf16.msra.mxu0 %v1570
        %1665 = vmatpush.bf16.msra.mxu0 %v1569
        %1666 = vmatpush.bf16.msra.mxu0 %v1568
        %1667 = vmatpush.bf16.msra.mxu0 %v1567
        %1668 = vmatmul.bf16.gmra.mxu0 %v1054
        %v1669 = vpop.f32.mrf.mxu0
        %v1670 = vadd.f32 %v1601, %v1669
        %v1671 = vpop.f32.mrf.mxu0
        %v1672 = vadd.f32 %v1603, %v1671
        %1673 = vmatmul.bf16.gmra.mxu0 %v1056
        %v1674 = vpop.f32.mrf.mxu0
        %v1675 = vadd.f32 %v1606, %v1674
        %v1676 = vpop.f32.mrf.mxu0
        %v1677 = vadd.f32 %v1608, %v1676
        %1678 = vmatmul.bf16.gmra.mxu0 %v1058
        %v1679 = vpop.f32.mrf.mxu0
        %v1680 = vadd.f32 %v1611, %v1679
        %v1681 = vpop.f32.mrf.mxu0
        %v1682 = vadd.f32 %v1613, %v1681
        %1683 = vmatmul.bf16.gmra.mxu0 %v1060
        %v1684 = vpop.f32.mrf.mxu0
        %v1685 = vadd.f32 %v1616, %v1684
        %v1686 = vpop.f32.mrf.mxu0
        %v1687 = vadd.f32 %v1618, %v1686
        %1688 = vmatmul.bf16.gmra.mxu0 %v1062
        %v1689 = vpop.f32.mrf.mxu0
        %v1690 = vadd.f32 %v1621, %v1689
        %v1691 = vpop.f32.mrf.mxu0
        %v1692 = vadd.f32 %v1623, %v1691
        %1693 = vmatmul.bf16.gmra.mxu0 %v1064
        %v1694 = vpop.f32.mrf.mxu0
        %v1695 = vadd.f32 %v1626, %v1694
        %v1696 = vpop.f32.mrf.mxu0
        %v1697 = vadd.f32 %v1628, %v1696
        %1698 = vmatmul.bf16.gmra.mxu0 %v1066
        %v1699 = vpop.f32.mrf.mxu0
        %v1700 = vadd.f32 %v1631, %v1699
        %v1701 = vpop.f32.mrf.mxu0
        %v1702 = vadd.f32 %v1633, %v1701
        %1703 = vmatmul.bf16.gmra.mxu0 %v1068
        %v1704 = vpop.f32.mrf.mxu0
        %v1705 = vadd.f32 %v1636, %v1704
        %v1706 = vpop.f32.mrf.mxu0
        %v1707 = vadd.f32 %v1638, %v1706
        %1708 = vmatmul.bf16.gmra.mxu0 %v1070
        %v1709 = vpop.f32.mrf.mxu0
        %v1710 = vadd.f32 %v1641, %v1709
        %v1711 = vpop.f32.mrf.mxu0
        %v1712 = vadd.f32 %v1643, %v1711
        %1713 = vmatmul.bf16.gmra.mxu0 %v1072
        %v1714 = vpop.f32.mrf.mxu0
        %v1715 = vadd.f32 %v1646, %v1714
        %v1716 = vpop.f32.mrf.mxu0
        %v1717 = vadd.f32 %v1648, %v1716
        %1718 = vmatmul.bf16.gmra.mxu0 %v1074
        %v1719 = vpop.f32.mrf.mxu0
        %v1720 = vadd.f32 %v1651, %v1719
        %v1721 = vpop.f32.mrf.mxu0
        %v1722 = vadd.f32 %v1653, %v1721
        %1723 = vmatmul.bf16.gmra.mxu0 %v1076
        %v1724 = vpop.f32.mrf.mxu0
        %v1725 = vadd.f32 %v1656, %v1724
        %v1726 = vpop.f32.mrf.mxu0
        %v1727 = vadd.f32 %v1658, %v1726
        %1728 = vdwg.mxu0
        %v1729 = vld [vmem:[%s5] sm:$0x1]
        %v1731 = vperm.slane %v1729, 0
        %v1733 = vadd.f32 %v1670, %v1731
        %v1734 = vadd.f32 %v1672, %v1731
        %v1735 = vadd.f32 %v1675, %v1731
        %v1736 = vadd.f32 %v1677, %v1731
        %v1737 = vadd.f32 %v1680, %v1731
        %v1738 = vadd.f32 %v1682, %v1731
        %v1739 = vadd.f32 %v1685, %v1731
        %v1740 = vadd.f32 %v1687, %v1731
        %v1741 = vadd.f32 %v1690, %v1731
        %v1742 = vadd.f32 %v1692, %v1731
        %v1743 = vadd.f32 %v1695, %v1731
        %v1744 = vadd.f32 %v1697, %v1731
        %v1745 = vadd.f32 %v1700, %v1731
        %v1746 = vadd.f32 %v1702, %v1731
        %v1747 = vadd.f32 %v1705, %v1731
        %v1748 = vadd.f32 %v1707, %v1731
        %v1749 = vadd.f32 %v1710, %v1731
        %v1750 = vadd.f32 %v1712, %v1731
        %v1751 = vadd.f32 %v1715, %v1731
        %v1752 = vadd.f32 %v1717, %v1731
        %v1753 = vadd.f32 %v1720, %v1731
        %v1754 = vadd.f32 %v1722, %v1731
        %v1755 = vadd.f32 %v1725, %v1731
        %v1756 = vadd.f32 %v1727, %v1731
        %1757 = vst [vmem:[%s336] sm:$0xff] %v1733
        %1758 = vst [vmem:[%s336 + $0x8] sm:$0xff] %v1734
        %1759 = vst [vmem:[%s336 + $0x10] sm:$0xff] %v1735
        %1760 = vst [vmem:[%s336 + $0x18] sm:$0xff] %v1736
        %1761 = vst [vmem:[%s336 + $0x20] sm:$0xff] %v1737
        %1762 = vst [vmem:[%s336 + $0x28] sm:$0xff] %v1738
        %1763 = vst [vmem:[%s336 + $0x30] sm:$0xff] %v1739
        %1764 = vst [vmem:[%s336 + $0x38] sm:$0xff] %v1740
        %1765 = vst [vmem:[%s336 + $0x40] sm:$0xff] %v1741
        %1766 = vst [vmem:[%s336 + $0x48] sm:$0xff] %v1742
        %1767 = vst [vmem:[%s336 + $0x50] sm:$0xff] %v1743
        %1768 = vst [vmem:[%s336 + $0x58] sm:$0xff] %v1744
        %1769 = vst [vmem:[%s336 + $0x60] sm:$0xff] %v1745
        %1770 = vst [vmem:[%s336 + $0x68] sm:$0xff] %v1746
        %1771 = vst [vmem:[%s336 + $0x70] sm:$0xff] %v1747
        %1772 = vst [vmem:[%s336 + $0x78] sm:$0xff] %v1748
        %1773 = vst [vmem:[%s336 + $0x80] sm:$0xff] %v1749
        %1774 = vst [vmem:[%s336 + $0x88] sm:$0xff] %v1750
        %1775 = vst [vmem:[%s336 + $0x90] sm:$0xff] %v1751
        %1776 = vst [vmem:[%s336 + $0x98] sm:$0xff] %v1752
        %1777 = vst [vmem:[%s336 + $0xa0] sm:$0xff] %v1753
        %1778 = vst [vmem:[%s336 + $0xa8] sm:$0xff] %v1754
        %1779 = vst [vmem:[%s336 + $0xb0] sm:$0xff] %v1755
        %1780 = vst [vmem:[%s336 + $0xb8] sm:$0xff] %v1756
        %s1781 = sand.u32 %s164, 1
        %s1782 = scalar_lea.sflag [#allocation4], %s1781
        %s1783 = sand.u32 %s164, 1
        %s1784 = smul.addr %s1783, 192
        %s1785 = scalar_lea.vmem [#allocation11], %s1784
        // Predicated region
        $region65: #{tpu_custom_call.1} parent=43 // pred_check
          %p1786 = pneg %p174
        $region66: #{tpu_custom_call.1} parent=43 // pred_check_branch
          %1788 = sbr.rel (%p1786) target = $region68
        $region67: #{tpu_custom_call.1} parent=43 // pred_region
          %s1789 = smul.u32 24, %s25
          %1791 = vsyncadd %s1782, 0
          %s1792 = smul.addr %s1789, 8
          %s1793 = scalar_lea.hbm %s6, %s1792
          %s1794 = sshll.u32 %s1785, 4
          %s1795 = int_to_ptr.vmem [resolvable:$true] %s1794
          %s1796 = sshll.u32 %s1793, 4
          %s1797 = int_to_ptr.hbm [resolvable:$true] %s1796
          %1802 = dma.vmem_to_hbm [thread:$0]  %s1795, 3072, %s1797, %s1782, 128, 128, 8
        $region68: #{tpu_custom_call.1} parent=43 // pred_fallthru
          _
      $region44: #{tpu_custom_call.1} parent=5 // pred_fallthru
        _
      %p1803 = scmp.le.s32.totalorder 2, %s20
      // Predicated region
      $region69: #{tpu_custom_call.1} parent=5 // pred_check
        %p1804 = pneg %p1803
      $region70: #{tpu_custom_call.1} parent=5 // pred_check_branch
        %1806 = sbr.rel (%p1804) target = $region72
      $region71: #{tpu_custom_call.1} parent=5 // pred_region
        %s1807 = ssub.s32 %s20, 2
        // Predicated region
        $region73: #{tpu_custom_call.1} parent=71 // pred_check
          %p1808 = pneg %p180
        $region74: #{tpu_custom_call.1} parent=71 // pred_check_branch
          %1810 = sbr.rel (%p1808) target = $region76
        $region75: #{tpu_custom_call.1} parent=71 // pred_region
          %s1811 = sand.u32 %s165, 1
          %s1812 = scalar_lea.sflag [#allocation4], %s1811
          %s1813 = sand.u32 %s165, 1
          %s1814 = smul.addr %s1813, 192
          %s1815 = scalar_lea.vmem [#allocation11], %s1814
          %1817 = dma.done %s1812, 3072
        $region76: #{tpu_custom_call.1} parent=71 // pred_fallthru
          _
      $region72: #{tpu_custom_call.1} parent=5 // pred_fallthru
        _
    $region6: #{tpu_custom_call.1} parent=1 // loop_footer
      %s24 = sadd.s32 1, %s20
    $region7: #{tpu_custom_call.1} parent=1 // loop_footer_branch
      %19 = sbr.rel target = $region3
    $region8: #{tpu_custom_call.1} parent=1 // loop_exit
      _
    %1818 = vsyncpa [#allocation3], 1
    %s1819 = scalar_lea.sflag [#allocation3], 1
    %1820 = vsyncpa %s1819, 1
    %1821 = vsyncpa [#allocation6], 1
    %1822 = vsyncpa [#allocation9], 1
    %1823 = vsyncpa [#allocation4], 1
    %s1824 = scalar_lea.sflag [#allocation4], 1
    %1825 = vsyncpa %s1824, 1

</llo_original>
